<compile_context>
chip_gen: v5e
topology: v5e:2x2
jax: 0.10.0
libtpu: 0.0.40
codegen_flags: <defaults>
</compile_context>

<pallas_src>
import functools

import jax
import jax.numpy as jnp
from jax.experimental import pallas as pl
from jax.experimental.pallas import tpu as pltpu


def mha_kernel(xq_ref, xkv_ref, mask_ref, wq_ref, wkv_ref, wo_ref, bo_ref,
               out_ref, q_scr, m_scr, l_scr, acc_scr, *, n_head):
    """One (batch, q-tile, kv-tile) grid step.

    xq_ref:  [TQ, E]   query-side slice of x
    xkv_ref: [TKV, E]  key/value-side slice of x
    mask_ref:[1, TKV]  0/1 key-position mask for this kv tile
    out_ref: [TQ, E]   written on the last kv step
    """
    ki = pl.program_id(2)
    TQ, E = xq_ref.shape
    TKV = xkv_ref.shape[0]
    H = n_head
    hs = E // H

    def to_heads(a, T):                        # [T, E] bf16 -> [H, T, hs] bf16
        return jnp.transpose(a.reshape(T, H, hs), (1, 0, 2))

    @pl.when(ki == 0)
    def _():
        # Q projection (1/sqrt(E) pre-folded into wq); cache in head layout, bf16.
        q = jnp.dot(xq_ref[...].astype(jnp.bfloat16), wq_ref[...],
                    preferred_element_type=jnp.float32)               # [TQ, E]
        q_scr[...] = to_heads(q.astype(jnp.bfloat16), TQ)
        m_scr[...] = jnp.full_like(m_scr, -1e30)                      # finite, no -inf
        l_scr[...] = jnp.zeros_like(l_scr)
        acc_scr[...] = jnp.zeros_like(acc_scr)

    # Fused K|V projection for this kv tile: one [TKV,E] x [E,2E] MXU matmul.
    kv = jnp.dot(xkv_ref[...].astype(jnp.bfloat16), wkv_ref[...],
                 preferred_element_type=jnp.float32)                  # [TKV, 2E]
    kvc = kv.astype(jnp.bfloat16)                                     # relayouts in bf16
    kh = to_heads(kvc[:, :E], TKV)                                    # [H, TKV, hs]
    vh = to_heads(kvc[:, E:], TKV)                                    # [H, TKV, hs]

    # Head-batched scores, f32 accumulation (scale already folded into Q).
    s = jnp.einsum("hqd,hkd->hqk", q_scr[...], kh,
                   preferred_element_type=jnp.float32)                # [H, TQ, TKV]

    # Online softmax update.  Key mask applied multiplicatively after exp
    # ([1,1,TKV] broadcast multiply): no full-tensor add, no -inf/NaN hazard.
    kmask = mask_ref[...][None, :, :]                                 # [1, 1, TKV]
    m_prev = m_scr[...]
    m_new = jnp.maximum(m_prev, jnp.max(s, axis=-1, keepdims=True))
    alpha = jnp.exp(m_prev - m_new)
    p = jnp.exp(s - m_new) * kmask                                    # [H, TQ, TKV]
    l_scr[...] = alpha * l_scr[...] + jnp.sum(p, axis=-1, keepdims=True)
    acc_scr[...] = alpha * acc_scr[...] + jnp.einsum(
        "hqk,hkd->hqd", p.astype(jnp.bfloat16), vh,
        preferred_element_type=jnp.float32)                           # [H, TQ, hs]
    m_scr[...] = m_new
    # dropout(p) is identity at inference.
    # TODO(synk): on v6e/v7x the exp could run on bf16 inputs (EUP bf16 path) if
    # the accuracy budget allows; keep m/l in f32 either way.

    @pl.when(ki == pl.num_programs(2) - 1)
    def _():
        o = acc_scr[...] * pl.reciprocal(l_scr[...], approx=True)     # [H, TQ, hs]
        o = jnp.transpose(o.astype(jnp.bfloat16), (1, 0, 2)).reshape(TQ, E)
        out = jnp.dot(o, wo_ref[...],
                      preferred_element_type=jnp.float32) + bo_ref[...]
        out_ref[...] = out.astype(out_ref.dtype)
        # dropout(out) is identity at inference.
        # TODO(synk): training-mode dropout would need pltpu.prng_seed /
        # pltpu.prng_random_bits here.


def _const_spec(arr, buffered):
    nd = arr.ndim
    idx = lambda b, qi, ki, _n=nd: (0,) * _n
    if buffered:
        # Constant index_map -> double buffering buys nothing; single-buffer to
        # halve weight VMEM residency (matters most on v7x's 64 MiB VMEM).
        return pl.BlockSpec(arr.shape, idx, pipeline_mode=pl.Buffered(1))
    return pl.BlockSpec(arr.shape, idx)


def _default_vmem_limit():
    # Leave headroom: <= 3/4 of physical VMEM, capped at 96 MiB.
    # (v5e/v6e: 128 MiB physical -> 96 MiB request; v7x: 64 MiB -> 48 MiB.)
    try:
        phys = int(pltpu.get_tpu_info().vmem_capacity_bytes)
    except Exception:
        phys = 128 * 1024 * 1024
    return min(96 * 1024 * 1024, (phys * 3) // 4)


def multi_head_attention(x, attn_mask, wq, wk, wv, wo, bo, n_head,
                         *, block_q=None, block_kv=None, vmem_limit_bytes=None):
    """x: [B, S, E] f32, attn_mask: [B, S] (1 = keep, 0 = mask); returns [B, S, E] f32."""
    B, S, E = x.shape
    assert E % n_head == 0
    hs = E // n_head

    # v6e-friendly defaults (256-multiple q tiles, larger kv tiles); tiny S just
    # collapses to a single tile.  Tiles must divide S (multiples of 8 / 128 when < S).
    if block_q is None:
        block_q = min(S, 256)
    if block_kv is None:
        block_kv = min(S, 512)
    assert S % block_q == 0 and S % block_kv == 0
    nq, nkv = S // block_q, S // block_kv
    if vmem_limit_bytes is None:
        vmem_limit_bytes = _default_vmem_limit()

    # One-off host-side weight prep: fold 1/sqrt(E) into Wq (keeps the H*S^2 scale
    # multiply off the VALU), fuse K|V columns, cast MXU operands to bf16.
    scale = E ** (-0.5)                                             # embed_dim**-0.5 (reference)
    wq_s = (wq * scale).astype(jnp.bfloat16)                        # [E, E]
    wkv = jnp.concatenate([wk, wv], axis=1).astype(jnp.bfloat16)    # [E, 2E]
    wo_b = wo.astype(jnp.bfloat16)                                  # [E, E]
    bo2 = bo.reshape(1, E).astype(jnp.float32)                      # [1, E]
    mask3 = attn_mask.astype(jnp.float32).reshape(B, 1, S)

    weights = (wq_s, wkv, wo_b, bo2)
    operands = (x, x, mask3) + weights
    kernel = functools.partial(mha_kernel, n_head=n_head)

    def build(buffered_weights):
        in_specs = [
            pl.BlockSpec((None, block_q, E), lambda b, qi, ki: (b, qi, 0)),   # x (q side)
            pl.BlockSpec((None, block_kv, E), lambda b, qi, ki: (b, ki, 0)),  # x (kv side)
            pl.BlockSpec((None, 1, block_kv), lambda b, qi, ki: (b, 0, ki)),  # key mask
        ] + [_const_spec(w, buffered_weights) for w in weights]
        out_spec = pl.BlockSpec((None, block_q, E), lambda b, qi, ki: (b, qi, 0))
        return pl.pallas_call(
            kernel,
            out_shape=jax.ShapeDtypeStruct((B, S, E), jnp.float32),
            grid_spec=pltpu.PrefetchScalarGridSpec(
                num_scalar_prefetch=0,
                grid=(B, nq, nkv),
                in_specs=in_specs,
                out_specs=out_spec,
                scratch_shapes=[
                    pltpu.VMEM((n_head, block_q, hs), jnp.bfloat16),  # Q, head layout
                    pltpu.VMEM((n_head, block_q, 1), jnp.float32),    # running max m
                    pltpu.VMEM((n_head, block_q, 1), jnp.float32),    # running sum l
                    pltpu.VMEM((n_head, block_q, hs), jnp.float32),   # output accumulator
                ]),
            compiler_params=pltpu.CompilerParams(
                dimension_semantics=("parallel", "parallel", "arbitrary"),
                vmem_limit_bytes=int(vmem_limit_bytes)),
        )

    # TODO(synk): for tiny E (< 128 lanes, like the demo) pad the output projection
    # to 128 lanes and block several batch elements per grid step for lane-dense
    # stores; skipped to keep the kernel shape-general.
    # TODO(synk): at very large E, K/V are recomputed once per q-tile; precompute
    # them in a separate pass (or swap loop nesting) if that ever dominates.
    try:
        return build(buffered_weights=True)(*operands)
    except Exception:
        # Fallback if this JAX build rejects pipeline_mode=pl.Buffered(1).
        return build(buffered_weights=False)(*operands)


# ----------------------------- parameters ----------------------------- #

def init_params(key, embed_dim, n_head):
    """PyTorch-style init; per-head [E, hs] weights concatenated to [in, out] layout."""
    E = embed_dim
    hs = E // n_head
    ks = jax.random.split(key, 3 * n_head + 2)
    bound = 1.0 / (E ** 0.5)   # nn.Linear default uniform bound

    def lin(k, shape):
        return jax.random.uniform(k, shape, jnp.float32, -bound, bound)

    wq = jnp.concatenate([lin(ks[i], (E, hs)) for i in range(n_head)], axis=1)
    wk = jnp.concatenate([lin(ks[n_head + i], (E, hs)) for i in range(n_head)], axis=1)
    wv = jnp.concatenate([lin(ks[2 * n_head + i], (E, hs)) for i in range(n_head)], axis=1)
    wo = lin(ks[-2], (E, E))       # proj weight
    bo = lin(ks[-1], (E,))         # proj bias
    return wq, wk, wv, wo, bo


# ------------------------ pure-JAX reference ------------------------ #

def mha_reference(x, attn_mask, wq, wk, wv, wo, bo, n_head):
    B, S, E = x.shape
    hs = E // n_head

    def heads(a):
        return a.reshape(B, S, n_head, hs).transpose(0, 2, 1, 3)

    q, k, v = heads(x @ wq), heads(x @ wk), heads(x @ wv)
    s = jnp.einsum("bhqd,bhkd->bhqk", q, k) * (E ** -0.5)
    s = jnp.where(attn_mask[:, None, None, :] == 0, -jnp.inf, s)
    p = jax.nn.softmax(s, axis=-1)
    o = jnp.einsum("bhqk,bhkd->bhqd", p, v).transpose(0, 2, 1, 3).reshape(B, S, E)
    return o @ wo + bo


if __name__ == "__main__":
    embed_dim, n_head = 32, 4
    B, S = 2, 8

    key = jax.random.PRNGKey(0)
    k_w, k_x = jax.random.split(key)
    wq, wk, wv, wo, bo = init_params(k_w, embed_dim, n_head)

    x = jax.random.normal(k_x, (B, S, embed_dim), jnp.float32)
    attn_mask = jnp.array([[1, 1, 1, 1, 1, 1, 1, 1],
                           [1, 1, 1, 1, 1, 1, 0, 0]], dtype=jnp.float32)

    out = multi_head_attention(x, attn_mask, wq, wk, wv, wo, bo, n_head)
    out = jax.block_until_ready(out)

    ref = mha_reference(x, attn_mask, wq, wk, wv, wo, bo, n_head)
    assert out.shape == (B, S, embed_dim)
    assert bool(jnp.all(jnp.isfinite(out)))
    err = float(jnp.max(jnp.abs(out - ref)))
    assert bool(jnp.allclose(out, ref, atol=3e-2, rtol=3e-2)), err
    print("KERNEL_OK")
</pallas_src>

<mosaic_0001>
module attributes {stable_mosaic.version = 11 : i64} {
  func.func @mha_kernel(%arg0: i32, %arg1: i32, %arg2: i32, %arg3: memref<1x8x32xf32, #tpu.memory_space<vmem>>, %arg4: memref<1x8x32xf32, #tpu.memory_space<vmem>>, %arg5: memref<1x1x8xf32, #tpu.memory_space<vmem>>, %arg6: memref<32x32xbf16, #tpu.memory_space<vmem>>, %arg7: memref<32x64xbf16, #tpu.memory_space<vmem>>, %arg8: memref<32x32xbf16, #tpu.memory_space<vmem>>, %arg9: memref<1x32xf32, #tpu.memory_space<vmem>>, %arg10: memref<1x8x32xf32, #tpu.memory_space<vmem>>, %arg11: memref<4x8x8xbf16, #tpu.memory_space<vmem>>, %arg12: memref<4x8x1xf32, #tpu.memory_space<vmem>>, %arg13: memref<4x8x1xf32, #tpu.memory_space<vmem>>, %arg14: memref<4x8x8xf32, #tpu.memory_space<vmem>>) attributes {dimension_semantics = [#tpu.dimension_semantics<parallel>, #tpu.dimension_semantics<parallel>, #tpu.dimension_semantics<arbitrary>], iteration_bounds = array<i64: 2, 1, 1>, scalar_prefetch = 0 : i64, scratch_operands = 4 : i64, tpu.core_type = #tpu.core_type<tc>, window_params = [{transform_indices = @transform_0, window_bounds = array<i64: 1, 8, 32>}, {transform_indices = @transform_1, window_bounds = array<i64: 1, 8, 32>}, {transform_indices = @transform_2, window_bounds = array<i64: 1, 1, 8>}, {pipeline_mode = #tpu.pipeline_mode<synchronous>, transform_indices = @transform_3, window_bounds = array<i64: 32, 32>}, {pipeline_mode = #tpu.pipeline_mode<synchronous>, transform_indices = @transform_4, window_bounds = array<i64: 32, 64>}, {pipeline_mode = #tpu.pipeline_mode<synchronous>, transform_indices = @transform_5, window_bounds = array<i64: 32, 32>}, {pipeline_mode = #tpu.pipeline_mode<synchronous>, transform_indices = @transform_6, window_bounds = array<i64: 1, 32>}, {transform_indices = @transform_7, window_bounds = array<i64: 1, 8, 32>}]} {
    %c0_i32 = arith.constant 0 : i32
    %0 = arith.cmpi eq, %arg2, %c0_i32 : i32
    %1 = arith.extui %0 : i1 to i32
    %c0_i32_0 = arith.constant 0 : i32
    %2 = arith.cmpi ne, %1, %c0_i32_0 : i32
    scf.if %2 {
      %c0_35 = arith.constant 0 : index
      %c0_36 = arith.constant 0 : index
      %c0_37 = arith.constant 0 : index
      %48 = vector.load %arg3[%c0_35, %c0_36, %c0_37] : memref<1x8x32xf32, #tpu.memory_space<vmem>>, vector<1x8x32xf32>
      %49 = vector.shape_cast %48 : vector<1x8x32xf32> to vector<8x32xf32>
      %50 = arith.truncf %49 : vector<8x32xf32> to vector<8x32xbf16>
      %c0_38 = arith.constant 0 : index
      %c0_39 = arith.constant 0 : index
      %51 = vector.load %arg6[%c0_38, %c0_39] : memref<32x32xbf16, #tpu.memory_space<vmem>>, vector<32x32xbf16>
      %cst_40 = arith.constant dense<0.000000e+00> : vector<8x32xf32>
      %52 = tpu.matmul %50, %51, %cst_40 {dimension_numbers = #tpu.dot_dimension_numbers<[1], [0], [0], [1], [0, 0, 1, 1], [], []>} : vector<8x32xbf16>, vector<32x32xbf16>, vector<8x32xf32> -> vector<8x32xf32>
      %53 = arith.truncf %52 : vector<8x32xf32> to vector<8x32xbf16>
      %54 = vector.shape_cast %53 : vector<8x32xbf16> to vector<8x4x8xbf16>
      %55 = tpu.transpose %54, [1, 0, 2] : vector<8x4x8xbf16> -> vector<4x8x8xbf16>
      %c0_41 = arith.constant 0 : index
      %c0_42 = arith.constant 0 : index
      %c0_43 = arith.constant 0 : index
      %56 = vector.load %arg11[%c0_41, %c0_42, %c0_43] : memref<4x8x8xbf16, #tpu.memory_space<vmem>>, vector<4x8x8xbf16>
      tpu.vector_store %arg11[%c0_41, %c0_42, %c0_43], %55 {strides = array<i32>} : memref<4x8x8xbf16, #tpu.memory_space<vmem>>, vector<4x8x8xbf16>,
      %cst_44 = arith.constant -1.000000e+30 : f32
      %57 = vector.broadcast %cst_44 : f32 to vector<4x8x1xf32>
      %c0_45 = arith.constant 0 : index
      %c0_46 = arith.constant 0 : index
      %c0_47 = arith.constant 0 : index
      %58 = vector.load %arg12[%c0_45, %c0_46, %c0_47] : memref<4x8x1xf32, #tpu.memory_space<vmem>>, vector<4x8x1xf32>
      tpu.vector_store %arg12[%c0_45, %c0_46, %c0_47], %57 {strides = array<i32>} : memref<4x8x1xf32, #tpu.memory_space<vmem>>, vector<4x8x1xf32>,
      %cst_48 = arith.constant 0.000000e+00 : f32
      %59 = vector.broadcast %cst_48 : f32 to vector<4x8x1xf32>
      %c0_49 = arith.constant 0 : index
      %c0_50 = arith.constant 0 : index
      %c0_51 = arith.constant 0 : index
      %60 = vector.load %arg13[%c0_49, %c0_50, %c0_51] : memref<4x8x1xf32, #tpu.memory_space<vmem>>, vector<4x8x1xf32>
      tpu.vector_store %arg13[%c0_49, %c0_50, %c0_51], %59 {strides = array<i32>} : memref<4x8x1xf32, #tpu.memory_space<vmem>>, vector<4x8x1xf32>,
      %cst_52 = arith.constant 0.000000e+00 : f32
      %61 = vector.broadcast %cst_52 : f32 to vector<4x8x8xf32>
      %c0_53 = arith.constant 0 : index
      %c0_54 = arith.constant 0 : index
      %c0_55 = arith.constant 0 : index
      %62 = vector.load %arg14[%c0_53, %c0_54, %c0_55] : memref<4x8x8xf32, #tpu.memory_space<vmem>>, vector<4x8x8xf32>
      tpu.vector_store %arg14[%c0_53, %c0_54, %c0_55], %61 {strides = array<i32>} : memref<4x8x8xf32, #tpu.memory_space<vmem>>, vector<4x8x8xf32>,
    } else {
    }
    %c0 = arith.constant 0 : index
    %c0_1 = arith.constant 0 : index
    %c0_2 = arith.constant 0 : index
    %3 = vector.load %arg4[%c0, %c0_1, %c0_2] : memref<1x8x32xf32, #tpu.memory_space<vmem>>, vector<1x8x32xf32>
    %4 = vector.shape_cast %3 : vector<1x8x32xf32> to vector<8x32xf32>
    %5 = arith.truncf %4 : vector<8x32xf32> to vector<8x32xbf16>
    %c0_3 = arith.constant 0 : index
    %c0_4 = arith.constant 0 : index
    %6 = vector.load %arg7[%c0_3, %c0_4] : memref<32x64xbf16, #tpu.memory_space<vmem>>, vector<32x64xbf16>
    %cst = arith.constant dense<0.000000e+00> : vector<8x64xf32>
    %7 = tpu.matmul %5, %6, %cst {dimension_numbers = #tpu.dot_dimension_numbers<[1], [0], [0], [1], [0, 0, 1, 1], [], []>} : vector<8x32xbf16>, vector<32x64xbf16>, vector<8x64xf32> -> vector<8x64xf32>
    %8 = arith.truncf %7 : vector<8x64xf32> to vector<8x64xbf16>
    %9 = vector.extract_strided_slice %8 {offsets = [0, 0], sizes = [8, 32], strides = [1, 1]} : vector<8x64xbf16> to vector<8x32xbf16>
    %10 = vector.shape_cast %9 : vector<8x32xbf16> to vector<8x4x8xbf16>
    %11 = tpu.transpose %10, [1, 0, 2] : vector<8x4x8xbf16> -> vector<4x8x8xbf16>
    %12 = vector.extract_strided_slice %8 {offsets = [0, 32], sizes = [8, 32], strides = [1, 1]} : vector<8x64xbf16> to vector<8x32xbf16>
    %13 = vector.shape_cast %12 : vector<8x32xbf16> to vector<8x4x8xbf16>
    %14 = tpu.transpose %13, [1, 0, 2] : vector<8x4x8xbf16> -> vector<4x8x8xbf16>
    %c0_5 = arith.constant 0 : index
    %c0_6 = arith.constant 0 : index
    %c0_7 = arith.constant 0 : index
    %15 = vector.load %arg11[%c0_5, %c0_6, %c0_7] : memref<4x8x8xbf16, #tpu.memory_space<vmem>>, vector<4x8x8xbf16>
    "tpu.trace_start"() <{level = 10 : i32, message = "hqd,hkd->hqk"}> : () -> ()
    %cst_8 = arith.constant dense<0.000000e+00> : vector<4x8x8xf32>
    %16 = tpu.matmul %15, %11, %cst_8 {dimension_numbers = #tpu.dot_dimension_numbers<[2], [2], [1], [1], [0, 0, 0, 1, 1, 1], [0], [0]>} : vector<4x8x8xbf16>, vector<4x8x8xbf16>, vector<4x8x8xf32> -> vector<4x8x8xf32>
    "tpu.trace_stop"() : () -> ()
    %c0_9 = arith.constant 0 : index
    %c0_10 = arith.constant 0 : index
    %c0_11 = arith.constant 0 : index
    %17 = vector.load %arg5[%c0_9, %c0_10, %c0_11] : memref<1x1x8xf32, #tpu.memory_space<vmem>>, vector<1x1x8xf32>
    %18 = vector.shape_cast %17 : vector<1x1x8xf32> to vector<1x8xf32>
    %19 = vector.shape_cast %18 : vector<1x8xf32> to vector<1x1x8xf32>
    %c0_12 = arith.constant 0 : index
    %c0_13 = arith.constant 0 : index
    %c0_14 = arith.constant 0 : index
    %20 = vector.load %arg12[%c0_12, %c0_13, %c0_14] : memref<4x8x1xf32, #tpu.memory_space<vmem>>, vector<4x8x1xf32>
    %cst_15 = arith.constant dense<0xFF800000> : vector<4x8xf32>
    %21 = vector.multi_reduction <maximumf>, %16, %cst_15 [2] : vector<4x8x8xf32> to vector<4x8xf32>
    %22 = vector.shape_cast %21 : vector<4x8xf32> to vector<4x8x1xf32>
    %23 = arith.maximumf %20, %22 : vector<4x8x1xf32>
    %24 = arith.subf %20, %23 : vector<4x8x1xf32>
    %25 = math.exp %24 : vector<4x8x1xf32>
    %26 = vector.broadcast %23 : vector<4x8x1xf32> to vector<4x8x8xf32>
    %27 = arith.subf %16, %26 : vector<4x8x8xf32>
    %28 = math.exp %27 : vector<4x8x8xf32>
    %29 = vector.broadcast %19 : vector<1x1x8xf32> to vector<4x8x8xf32>
    %30 = arith.mulf %28, %29 : vector<4x8x8xf32>
    %c0_16 = arith.constant 0 : index
    %c0_17 = arith.constant 0 : index
    %c0_18 = arith.constant 0 : index
    %31 = vector.load %arg13[%c0_16, %c0_17, %c0_18] : memref<4x8x1xf32, #tpu.memory_space<vmem>>, vector<4x8x1xf32>
    %32 = arith.mulf %25, %31 : vector<4x8x1xf32>
    %cst_19 = arith.constant dense<0.000000e+00> : vector<4x8xf32>
    %33 = vector.multi_reduction <add>, %30, %cst_19 [2] : vector<4x8x8xf32> to vector<4x8xf32>
    %34 = vector.shape_cast %33 : vector<4x8xf32> to vector<4x8x1xf32>
    %35 = arith.addf %32, %34 : vector<4x8x1xf32>
    %c0_20 = arith.constant 0 : index
    %c0_21 = arith.constant 0 : index
    %c0_22 = arith.constant 0 : index
    %36 = vector.load %arg13[%c0_20, %c0_21, %c0_22] : memref<4x8x1xf32, #tpu.memory_space<vmem>>, vector<4x8x1xf32>
    tpu.vector_store %arg13[%c0_20, %c0_21, %c0_22], %35 {strides = array<i32>} : memref<4x8x1xf32, #tpu.memory_space<vmem>>, vector<4x8x1xf32>,
    %c0_23 = arith.constant 0 : index
    %c0_24 = arith.constant 0 : index
    %c0_25 = arith.constant 0 : index
    %37 = vector.load %arg14[%c0_23, %c0_24, %c0_25] : memref<4x8x8xf32, #tpu.memory_space<vmem>>, vector<4x8x8xf32>
    %38 = vector.broadcast %25 : vector<4x8x1xf32> to vector<4x8x8xf32>
    %39 = arith.mulf %38, %37 : vector<4x8x8xf32>
    %40 = arith.truncf %30 : vector<4x8x8xf32> to vector<4x8x8xbf16>
    "tpu.trace_start"() <{level = 10 : i32, message = "hqk,hkd->hqd"}> : () -> ()
    %cst_26 = arith.constant dense<0.000000e+00> : vector<4x8x8xf32>
    %41 = tpu.matmul %40, %14, %cst_26 {dimension_numbers = #tpu.dot_dimension_numbers<[2], [1], [1], [2], [0, 0, 0, 1, 1, 2], [0], [0]>} : vector<4x8x8xbf16>, vector<4x8x8xbf16>, vector<4x8x8xf32> -> vector<4x8x8xf32>
    "tpu.trace_stop"() : () -> ()
    %42 = arith.addf %39, %41 : vector<4x8x8xf32>
    %c0_27 = arith.constant 0 : index
    %c0_28 = arith.constant 0 : index
    %c0_29 = arith.constant 0 : index
    %43 = vector.load %arg14[%c0_27, %c0_28, %c0_29] : memref<4x8x8xf32, #tpu.memory_space<vmem>>, vector<4x8x8xf32>
    tpu.vector_store %arg14[%c0_27, %c0_28, %c0_29], %42 {strides = array<i32>} : memref<4x8x8xf32, #tpu.memory_space<vmem>>, vector<4x8x8xf32>,
    %c0_30 = arith.constant 0 : index
    %c0_31 = arith.constant 0 : index
    %c0_32 = arith.constant 0 : index
    %44 = vector.load %arg12[%c0_30, %c0_31, %c0_32] : memref<4x8x1xf32, #tpu.memory_space<vmem>>, vector<4x8x1xf32>
    tpu.vector_store %arg12[%c0_30, %c0_31, %c0_32], %23 {strides = array<i32>} : memref<4x8x1xf32, #tpu.memory_space<vmem>>, vector<4x8x1xf32>,
    %c0_i32_33 = arith.constant 0 : i32
    %45 = arith.cmpi eq, %arg2, %c0_i32_33 : i32
    %46 = arith.extui %45 : i1 to i32
    %c0_i32_34 = arith.constant 0 : i32
    %47 = arith.cmpi ne, %46, %c0_i32_34 : i32
    scf.if %47 {
      %c0_35 = arith.constant 0 : index
      %c0_36 = arith.constant 0 : index
      %c0_37 = arith.constant 0 : index
      %48 = vector.load %arg14[%c0_35, %c0_36, %c0_37] : memref<4x8x8xf32, #tpu.memory_space<vmem>>, vector<4x8x8xf32>
      %c0_38 = arith.constant 0 : index
      %c0_39 = arith.constant 0 : index
      %c0_40 = arith.constant 0 : index
      %49 = vector.load %arg13[%c0_38, %c0_39, %c0_40] : memref<4x8x1xf32, #tpu.memory_space<vmem>>, vector<4x8x1xf32>
      %50 = tpu.reciprocal %49 {approx = true} : vector<4x8x1xf32> -> vector<4x8x1xf32>
      %51 = vector.broadcast %50 : vector<4x8x1xf32> to vector<4x8x8xf32>
      %52 = arith.mulf %48, %51 : vector<4x8x8xf32>
      %53 = arith.truncf %52 : vector<4x8x8xf32> to vector<4x8x8xbf16>
      %54 = tpu.transpose %53, [1, 0, 2] : vector<4x8x8xbf16> -> vector<8x4x8xbf16>
      %55 = vector.shape_cast %54 : vector<8x4x8xbf16> to vector<8x32xbf16>
      %c0_41 = arith.constant 0 : index
      %c0_42 = arith.constant 0 : index
      %56 = vector.load %arg8[%c0_41, %c0_42] : memref<32x32xbf16, #tpu.memory_space<vmem>>, vector<32x32xbf16>
      %cst_43 = arith.constant dense<0.000000e+00> : vector<8x32xf32>
      %57 = tpu.matmul %55, %56, %cst_43 {dimension_numbers = #tpu.dot_dimension_numbers<[1], [0], [0], [1], [0, 0, 1, 1], [], []>} : vector<8x32xbf16>, vector<32x32xbf16>, vector<8x32xf32> -> vector<8x32xf32>
      %c0_44 = arith.constant 0 : index
      %c0_45 = arith.constant 0 : index
      %58 = vector.load %arg9[%c0_44, %c0_45] : memref<1x32xf32, #tpu.memory_space<vmem>>, vector<1x32xf32>
      %59 = vector.broadcast %58 : vector<1x32xf32> to vector<8x32xf32>
      %60 = arith.addf %57, %59 : vector<8x32xf32>
      %c0_46 = arith.constant 0 : index
      %c0_47 = arith.constant 0 : index
      %c0_48 = arith.constant 0 : index
      %61 = vector.load %arg10[%c0_46, %c0_47, %c0_48] : memref<1x8x32xf32, #tpu.memory_space<vmem>>, vector<1x8x32xf32>
      %62 = vector.shape_cast %61 : vector<1x8x32xf32> to vector<8x32xf32>
      %63 = vector.shape_cast %60 : vector<8x32xf32> to vector<1x8x32xf32>
      tpu.vector_store %arg10[%c0_46, %c0_47, %c0_48], %63 {strides = array<i32>} : memref<1x8x32xf32, #tpu.memory_space<vmem>>, vector<1x8x32xf32>,
    } else {
    }
    return
  }
  func.func @transform_0(%arg0: i32, %arg1: i32, %arg2: i32) -> (i32, i32, i32) {
    %c0_i32 = arith.constant 0 : i32
    %c0_i32_0 = arith.constant 0 : i32
    return %arg0, %arg1, %c0_i32 : i32, i32, i32
  }
  func.func @transform_1(%arg0: i32, %arg1: i32, %arg2: i32) -> (i32, i32, i32) {
    %c0_i32 = arith.constant 0 : i32
    %c0_i32_0 = arith.constant 0 : i32
    return %arg0, %arg2, %c0_i32 : i32, i32, i32
  }
  func.func @transform_2(%arg0: i32, %arg1: i32, %arg2: i32) -> (i32, i32, i32) {
    %c0_i32 = arith.constant 0 : i32
    %c0_i32_0 = arith.constant 0 : i32
    return %arg0, %c0_i32, %arg2 : i32, i32, i32
  }
  func.func @transform_3(%arg0: i32, %arg1: i32, %arg2: i32) -> (i32, i32) {
    %c0_i32 = arith.constant 0 : i32
    %c0_i32_0 = arith.constant 0 : i32
    %c0_i32_1 = arith.constant 0 : i32
    return %c0_i32, %c0_i32_0 : i32, i32
  }
  func.func @transform_4(%arg0: i32, %arg1: i32, %arg2: i32) -> (i32, i32) {
    %c0_i32 = arith.constant 0 : i32
    %c0_i32_0 = arith.constant 0 : i32
    %c0_i32_1 = arith.constant 0 : i32
    return %c0_i32, %c0_i32_0 : i32, i32
  }
  func.func @transform_5(%arg0: i32, %arg1: i32, %arg2: i32) -> (i32, i32) {
    %c0_i32 = arith.constant 0 : i32
    %c0_i32_0 = arith.constant 0 : i32
    %c0_i32_1 = arith.constant 0 : i32
    return %c0_i32, %c0_i32_0 : i32, i32
  }
  func.func @transform_6(%arg0: i32, %arg1: i32, %arg2: i32) -> (i32, i32) {
    %c0_i32 = arith.constant 0 : i32
    %c0_i32_0 = arith.constant 0 : i32
    %c0_i32_1 = arith.constant 0 : i32
    return %c0_i32, %c0_i32_0 : i32, i32
  }
  func.func @transform_7(%arg0: i32, %arg1: i32, %arg2: i32) -> (i32, i32, i32) {
    %c0_i32 = arith.constant 0 : i32
    %c0_i32_0 = arith.constant 0 : i32
    return %arg0, %arg1, %c0_i32 : i32, i32, i32
  }
}

module attributes {stable_mosaic.version = 11 : i64} {
  func.func @mha_kernel(%arg0: i32, %arg1: i32, %arg2: i32, %arg3: memref<1x8x32xf32, #tpu.memory_space<vmem>>, %arg4: memref<1x8x32xf32, #tpu.memory_space<vmem>>, %arg5: memref<1x1x8xf32, #tpu.memory_space<vmem>>, %arg6: memref<32x32xbf16, #tpu.memory_space<vmem>>, %arg7: memref<32x64xbf16, #tpu.memory_space<vmem>>, %arg8: memref<32x32xbf16, #tpu.memory_space<vmem>>, %arg9: memref<1x32xf32, #tpu.memory_space<vmem>>, %arg10: memref<1x8x32xf32, #tpu.memory_space<vmem>>, %arg11: memref<4x8x8xbf16, #tpu.memory_space<vmem>>, %arg12: memref<4x8x1xf32, #tpu.memory_space<vmem>>, %arg13: memref<4x8x1xf32, #tpu.memory_space<vmem>>, %arg14: memref<4x8x8xf32, #tpu.memory_space<vmem>>) attributes {dimension_semantics = [#tpu.dimension_semantics<parallel>, #tpu.dimension_semantics<parallel>, #tpu.dimension_semantics<arbitrary>], iteration_bounds = array<i64: 2, 1, 1>, scalar_prefetch = 0 : i64, scratch_operands = 4 : i64, tpu.core_type = #tpu.core_type<tc>, window_params = [{transform_indices = @transform_0, window_bounds = array<i64: 1, 8, 32>}, {transform_indices = @transform_1, window_bounds = array<i64: 1, 8, 32>}, {transform_indices = @transform_2, window_bounds = array<i64: 1, 1, 8>}, {pipeline_mode = #tpu.pipeline_mode<synchronous>, transform_indices = @transform_3, window_bounds = array<i64: 32, 32>}, {pipeline_mode = #tpu.pipeline_mode<synchronous>, transform_indices = @transform_4, window_bounds = array<i64: 32, 64>}, {pipeline_mode = #tpu.pipeline_mode<synchronous>, transform_indices = @transform_5, window_bounds = array<i64: 32, 32>}, {pipeline_mode = #tpu.pipeline_mode<synchronous>, transform_indices = @transform_6, window_bounds = array<i64: 1, 32>}, {transform_indices = @transform_7, window_bounds = array<i64: 1, 8, 32>}]} {
    %c0_i32 = arith.constant 0 : i32
    %0 = arith.cmpi eq, %arg2, %c0_i32 : i32
    %1 = arith.extui %0 : i1 to i32
    %c0_i32_0 = arith.constant 0 : i32
    %2 = arith.cmpi ne, %1, %c0_i32_0 : i32
    scf.if %2 {
      %c0_35 = arith.constant 0 : index
      %c0_36 = arith.constant 0 : index
      %c0_37 = arith.constant 0 : index
      %48 = vector.load %arg3[%c0_35, %c0_36, %c0_37] : memref<1x8x32xf32, #tpu.memory_space<vmem>>, vector<1x8x32xf32>
      %49 = vector.shape_cast %48 : vector<1x8x32xf32> to vector<8x32xf32>
      %50 = arith.truncf %49 : vector<8x32xf32> to vector<8x32xbf16>
      %c0_38 = arith.constant 0 : index
      %c0_39 = arith.constant 0 : index
      %51 = vector.load %arg6[%c0_38, %c0_39] : memref<32x32xbf16, #tpu.memory_space<vmem>>, vector<32x32xbf16>
      %cst_40 = arith.constant dense<0.000000e+00> : vector<8x32xf32>
      %52 = tpu.matmul %50, %51, %cst_40 {dimension_numbers = #tpu.dot_dimension_numbers<[1], [0], [0], [1], [0, 0, 1, 1], [], []>} : vector<8x32xbf16>, vector<32x32xbf16>, vector<8x32xf32> -> vector<8x32xf32>
      %53 = arith.truncf %52 : vector<8x32xf32> to vector<8x32xbf16>
      %54 = vector.shape_cast %53 : vector<8x32xbf16> to vector<8x4x8xbf16>
      %55 = tpu.transpose %54, [1, 0, 2] : vector<8x4x8xbf16> -> vector<4x8x8xbf16>
      %c0_41 = arith.constant 0 : index
      %c0_42 = arith.constant 0 : index
      %c0_43 = arith.constant 0 : index
      %56 = vector.load %arg11[%c0_41, %c0_42, %c0_43] : memref<4x8x8xbf16, #tpu.memory_space<vmem>>, vector<4x8x8xbf16>
      tpu.vector_store %arg11[%c0_41, %c0_42, %c0_43], %55 {strides = array<i32>} : memref<4x8x8xbf16, #tpu.memory_space<vmem>>, vector<4x8x8xbf16>,
      %cst_44 = arith.constant -1.000000e+30 : f32
      %57 = vector.broadcast %cst_44 : f32 to vector<4x8x1xf32>
      %c0_45 = arith.constant 0 : index
      %c0_46 = arith.constant 0 : index
      %c0_47 = arith.constant 0 : index
      %58 = vector.load %arg12[%c0_45, %c0_46, %c0_47] : memref<4x8x1xf32, #tpu.memory_space<vmem>>, vector<4x8x1xf32>
      tpu.vector_store %arg12[%c0_45, %c0_46, %c0_47], %57 {strides = array<i32>} : memref<4x8x1xf32, #tpu.memory_space<vmem>>, vector<4x8x1xf32>,
      %cst_48 = arith.constant 0.000000e+00 : f32
      %59 = vector.broadcast %cst_48 : f32 to vector<4x8x1xf32>
      %c0_49 = arith.constant 0 : index
      %c0_50 = arith.constant 0 : index
      %c0_51 = arith.constant 0 : index
      %60 = vector.load %arg13[%c0_49, %c0_50, %c0_51] : memref<4x8x1xf32, #tpu.memory_space<vmem>>, vector<4x8x1xf32>
      tpu.vector_store %arg13[%c0_49, %c0_50, %c0_51], %59 {strides = array<i32>} : memref<4x8x1xf32, #tpu.memory_space<vmem>>, vector<4x8x1xf32>,
      %cst_52 = arith.constant 0.000000e+00 : f32
      %61 = vector.broadcast %cst_52 : f32 to vector<4x8x8xf32>
      %c0_53 = arith.constant 0 : index
      %c0_54 = arith.constant 0 : index
      %c0_55 = arith.constant 0 : index
      %62 = vector.load %arg14[%c0_53, %c0_54, %c0_55] : memref<4x8x8xf32, #tpu.memory_space<vmem>>, vector<4x8x8xf32>
      tpu.vector_store %arg14[%c0_53, %c0_54, %c0_55], %61 {strides = array<i32>} : memref<4x8x8xf32, #tpu.memory_space<vmem>>, vector<4x8x8xf32>,
    } else {
    }
    %c0 = arith.constant 0 : index
    %c0_1 = arith.constant 0 : index
    %c0_2 = arith.constant 0 : index
    %3 = vector.load %arg4[%c0, %c0_1, %c0_2] : memref<1x8x32xf32, #tpu.memory_space<vmem>>, vector<1x8x32xf32>
    %4 = vector.shape_cast %3 : vector<1x8x32xf32> to vector<8x32xf32>
    %5 = arith.truncf %4 : vector<8x32xf32> to vector<8x32xbf16>
    %c0_3 = arith.constant 0 : index
    %c0_4 = arith.constant 0 : index
    %6 = vector.load %arg7[%c0_3, %c0_4] : memref<32x64xbf16, #tpu.memory_space<vmem>>, vector<32x64xbf16>
    %cst = arith.constant dense<0.000000e+00> : vector<8x64xf32>
    %7 = tpu.matmul %5, %6, %cst {dimension_numbers = #tpu.dot_dimension_numbers<[1], [0], [0], [1], [0, 0, 1, 1], [], []>} : vector<8x32xbf16>, vector<32x64xbf16>, vector<8x64xf32> -> vector<8x64xf32>
    %8 = arith.truncf %7 : vector<8x64xf32> to vector<8x64xbf16>
    %9 = vector.extract_strided_slice %8 {offsets = [0, 0], sizes = [8, 32], strides = [1, 1]} : vector<8x64xbf16> to vector<8x32xbf16>
    %10 = vector.shape_cast %9 : vector<8x32xbf16> to vector<8x4x8xbf16>
    %11 = tpu.transpose %10, [1, 0, 2] : vector<8x4x8xbf16> -> vector<4x8x8xbf16>
    %12 = vector.extract_strided_slice %8 {offsets = [0, 32], sizes = [8, 32], strides = [1, 1]} : vector<8x64xbf16> to vector<8x32xbf16>
    %13 = vector.shape_cast %12 : vector<8x32xbf16> to vector<8x4x8xbf16>
    %14 = tpu.transpose %13, [1, 0, 2] : vector<8x4x8xbf16> -> vector<4x8x8xbf16>
    %c0_5 = arith.constant 0 : index
    %c0_6 = arith.constant 0 : index
    %c0_7 = arith.constant 0 : index
    %15 = vector.load %arg11[%c0_5, %c0_6, %c0_7] : memref<4x8x8xbf16, #tpu.memory_space<vmem>>, vector<4x8x8xbf16>
    "tpu.trace_start"() <{level = 10 : i32, message = "hqd,hkd->hqk"}> : () -> ()
    %cst_8 = arith.constant dense<0.000000e+00> : vector<4x8x8xf32>
    %16 = tpu.matmul %15, %11, %cst_8 {dimension_numbers = #tpu.dot_dimension_numbers<[2], [2], [1], [1], [0, 0, 0, 1, 1, 1], [0], [0]>} : vector<4x8x8xbf16>, vector<4x8x8xbf16>, vector<4x8x8xf32> -> vector<4x8x8xf32>
    "tpu.trace_stop"() : () -> ()
    %c0_9 = arith.constant 0 : index
    %c0_10 = arith.constant 0 : index
    %c0_11 = arith.constant 0 : index
    %17 = vector.load %arg5[%c0_9, %c0_10, %c0_11] : memref<1x1x8xf32, #tpu.memory_space<vmem>>, vector<1x1x8xf32>
    %18 = vector.shape_cast %17 : vector<1x1x8xf32> to vector<1x8xf32>
    %19 = vector.shape_cast %18 : vector<1x8xf32> to vector<1x1x8xf32>
    %c0_12 = arith.constant 0 : index
    %c0_13 = arith.constant 0 : index
    %c0_14 = arith.constant 0 : index
    %20 = vector.load %arg12[%c0_12, %c0_13, %c0_14] : memref<4x8x1xf32, #tpu.memory_space<vmem>>, vector<4x8x1xf32>
    %cst_15 = arith.constant dense<0xFF800000> : vector<4x8xf32>
    %21 = vector.multi_reduction <maximumf>, %16, %cst_15 [2] : vector<4x8x8xf32> to vector<4x8xf32>
    %22 = vector.shape_cast %21 : vector<4x8xf32> to vector<4x8x1xf32>
    %23 = arith.maximumf %20, %22 : vector<4x8x1xf32>
    %24 = arith.subf %20, %23 : vector<4x8x1xf32>
    %25 = math.exp %24 : vector<4x8x1xf32>
    %26 = vector.broadcast %23 : vector<4x8x1xf32> to vector<4x8x8xf32>
    %27 = arith.subf %16, %26 : vector<4x8x8xf32>
    %28 = math.exp %27 : vector<4x8x8xf32>
    %29 = vector.broadcast %19 : vector<1x1x8xf32> to vector<4x8x8xf32>
    %30 = arith.mulf %28, %29 : vector<4x8x8xf32>
    %c0_16 = arith.constant 0 : index
    %c0_17 = arith.constant 0 : index
    %c0_18 = arith.constant 0 : index
    %31 = vector.load %arg13[%c0_16, %c0_17, %c0_18] : memref<4x8x1xf32, #tpu.memory_space<vmem>>, vector<4x8x1xf32>
    %32 = arith.mulf %25, %31 : vector<4x8x1xf32>
    %cst_19 = arith.constant dense<0.000000e+00> : vector<4x8xf32>
    %33 = vector.multi_reduction <add>, %30, %cst_19 [2] : vector<4x8x8xf32> to vector<4x8xf32>
    %34 = vector.shape_cast %33 : vector<4x8xf32> to vector<4x8x1xf32>
    %35 = arith.addf %32, %34 : vector<4x8x1xf32>
    %c0_20 = arith.constant 0 : index
    %c0_21 = arith.constant 0 : index
    %c0_22 = arith.constant 0 : index
    %36 = vector.load %arg13[%c0_20, %c0_21, %c0_22] : memref<4x8x1xf32, #tpu.memory_space<vmem>>, vector<4x8x1xf32>
    tpu.vector_store %arg13[%c0_20, %c0_21, %c0_22], %35 {strides = array<i32>} : memref<4x8x1xf32, #tpu.memory_space<vmem>>, vector<4x8x1xf32>,
    %c0_23 = arith.constant 0 : index
    %c0_24 = arith.constant 0 : index
    %c0_25 = arith.constant 0 : index
    %37 = vector.load %arg14[%c0_23, %c0_24, %c0_25] : memref<4x8x8xf32, #tpu.memory_space<vmem>>, vector<4x8x8xf32>
    %38 = vector.broadcast %25 : vector<4x8x1xf32> to vector<4x8x8xf32>
    %39 = arith.mulf %38, %37 : vector<4x8x8xf32>
    %40 = arith.truncf %30 : vector<4x8x8xf32> to vector<4x8x8xbf16>
    "tpu.trace_start"() <{level = 10 : i32, message = "hqk,hkd->hqd"}> : () -> ()
    %cst_26 = arith.constant dense<0.000000e+00> : vector<4x8x8xf32>
    %41 = tpu.matmul %40, %14, %cst_26 {dimension_numbers = #tpu.dot_dimension_numbers<[2], [1], [1], [2], [0, 0, 0, 1, 1, 2], [0], [0]>} : vector<4x8x8xbf16>, vector<4x8x8xbf16>, vector<4x8x8xf32> -> vector<4x8x8xf32>
    "tpu.trace_stop"() : () -> ()
    %42 = arith.addf %39, %41 : vector<4x8x8xf32>
    %c0_27 = arith.constant 0 : index
    %c0_28 = arith.constant 0 : index
    %c0_29 = arith.constant 0 : index
    %43 = vector.load %arg14[%c0_27, %c0_28, %c0_29] : memref<4x8x8xf32, #tpu.memory_space<vmem>>, vector<4x8x8xf32>
    tpu.vector_store %arg14[%c0_27, %c0_28, %c0_29], %42 {strides = array<i32>} : memref<4x8x8xf32, #tpu.memory_space<vmem>>, vector<4x8x8xf32>,
    %c0_30 = arith.constant 0 : index
    %c0_31 = arith.constant 0 : index
    %c0_32 = arith.constant 0 : index
    %44 = vector.load %arg12[%c0_30, %c0_31, %c0_32] : memref<4x8x1xf32, #tpu.memory_space<vmem>>, vector<4x8x1xf32>
    tpu.vector_store %arg12[%c0_30, %c0_31, %c0_32], %23 {strides = array<i32>} : memref<4x8x1xf32, #tpu.memory_space<vmem>>, vector<4x8x1xf32>,
    %c0_i32_33 = arith.constant 0 : i32
    %45 = arith.cmpi eq, %arg2, %c0_i32_33 : i32
    %46 = arith.extui %45 : i1 to i32
    %c0_i32_34 = arith.constant 0 : i32
    %47 = arith.cmpi ne, %46, %c0_i32_34 : i32
    scf.if %47 {
      %c0_35 = arith.constant 0 : index
      %c0_36 = arith.constant 0 : index
      %c0_37 = arith.constant 0 : index
      %48 = vector.load %arg14[%c0_35, %c0_36, %c0_37] : memref<4x8x8xf32, #tpu.memory_space<vmem>>, vector<4x8x8xf32>
      %c0_38 = arith.constant 0 : index
      %c0_39 = arith.constant 0 : index
      %c0_40 = arith.constant 0 : index
      %49 = vector.load %arg13[%c0_38, %c0_39, %c0_40] : memref<4x8x1xf32, #tpu.memory_space<vmem>>, vector<4x8x1xf32>
      %50 = tpu.reciprocal %49 {approx = true} : vector<4x8x1xf32> -> vector<4x8x1xf32>
      %51 = vector.broadcast %50 : vector<4x8x1xf32> to vector<4x8x8xf32>
      %52 = arith.mulf %48, %51 : vector<4x8x8xf32>
      %53 = arith.truncf %52 : vector<4x8x8xf32> to vector<4x8x8xbf16>
      %54 = tpu.transpose %53, [1, 0, 2] : vector<4x8x8xbf16> -> vector<8x4x8xbf16>
      %55 = vector.shape_cast %54 : vector<8x4x8xbf16> to vector<8x32xbf16>
      %c0_41 = arith.constant 0 : index
      %c0_42 = arith.constant 0 : index
      %56 = vector.load %arg8[%c0_41, %c0_42] : memref<32x32xbf16, #tpu.memory_space<vmem>>, vector<32x32xbf16>
      %cst_43 = arith.constant dense<0.000000e+00> : vector<8x32xf32>
      %57 = tpu.matmul %55, %56, %cst_43 {dimension_numbers = #tpu.dot_dimension_numbers<[1], [0], [0], [1], [0, 0, 1, 1], [], []>} : vector<8x32xbf16>, vector<32x32xbf16>, vector<8x32xf32> -> vector<8x32xf32>
      %c0_44 = arith.constant 0 : index
      %c0_45 = arith.constant 0 : index
      %58 = vector.load %arg9[%c0_44, %c0_45] : memref<1x32xf32, #tpu.memory_space<vmem>>, vector<1x32xf32>
      %59 = vector.broadcast %58 : vector<1x32xf32> to vector<8x32xf32>
      %60 = arith.addf %57, %59 : vector<8x32xf32>
      %c0_46 = arith.constant 0 : index
      %c0_47 = arith.constant 0 : index
      %c0_48 = arith.constant 0 : index
      %61 = vector.load %arg10[%c0_46, %c0_47, %c0_48] : memref<1x8x32xf32, #tpu.memory_space<vmem>>, vector<1x8x32xf32>
      %62 = vector.shape_cast %61 : vector<1x8x32xf32> to vector<8x32xf32>
      %63 = vector.shape_cast %60 : vector<8x32xf32> to vector<1x8x32xf32>
      tpu.vector_store %arg10[%c0_46, %c0_47, %c0_48], %63 {strides = array<i32>} : memref<1x8x32xf32, #tpu.memory_space<vmem>>, vector<1x8x32xf32>,
    } else {
    }
    return
  }
  func.func @transform_0(%arg0: i32, %arg1: i32, %arg2: i32) -> (i32, i32, i32) {
    %c0_i32 = arith.constant 0 : i32
    %c0_i32_0 = arith.constant 0 : i32
    return %arg0, %arg1, %c0_i32 : i32, i32, i32
  }
  func.func @transform_1(%arg0: i32, %arg1: i32, %arg2: i32) -> (i32, i32, i32) {
    %c0_i32 = arith.constant 0 : i32
    %c0_i32_0 = arith.constant 0 : i32
    return %arg0, %arg2, %c0_i32 : i32, i32, i32
  }
  func.func @transform_2(%arg0: i32, %arg1: i32, %arg2: i32) -> (i32, i32, i32) {
    %c0_i32 = arith.constant 0 : i32
    %c0_i32_0 = arith.constant 0 : i32
    return %arg0, %c0_i32, %arg2 : i32, i32, i32
  }
  func.func @transform_3(%arg0: i32, %arg1: i32, %arg2: i32) -> (i32, i32) {
    %c0_i32 = arith.constant 0 : i32
    %c0_i32_0 = arith.constant 0 : i32
    %c0_i32_1 = arith.constant 0 : i32
    return %c0_i32, %c0_i32_0 : i32, i32
  }
  func.func @transform_4(%arg0: i32, %arg1: i32, %arg2: i32) -> (i32, i32) {
    %c0_i32 = arith.constant 0 : i32
    %c0_i32_0 = arith.constant 0 : i32
    %c0_i32_1 = arith.constant 0 : i32
    return %c0_i32, %c0_i32_0 : i32, i32
  }
  func.func @transform_5(%arg0: i32, %arg1: i32, %arg2: i32) -> (i32, i32) {
    %c0_i32 = arith.constant 0 : i32
    %c0_i32_0 = arith.constant 0 : i32
    %c0_i32_1 = arith.constant 0 : i32
    return %c0_i32, %c0_i32_0 : i32, i32
  }
  func.func @transform_6(%arg0: i32, %arg1: i32, %arg2: i32) -> (i32, i32) {
    %c0_i32 = arith.constant 0 : i32
    %c0_i32_0 = arith.constant 0 : i32
    %c0_i32_1 = arith.constant 0 : i32
    return %c0_i32, %c0_i32_0 : i32, i32
  }
  func.func @transform_7(%arg0: i32, %arg1: i32, %arg2: i32) -> (i32, i32, i32) {
    %c0_i32 = arith.constant 0 : i32
    %c0_i32_0 = arith.constant 0 : i32
    return %arg0, %arg1, %c0_i32 : i32, i32, i32
  }
}

</mosaic_0001>

<llo_original>
// kernel: tpu_custom_call.1
$region0: #{tpu_custom_call.1}
  #allocation0 [shape = 'u32[]', space=smem, size = 0x4, offset = 0x4, fixed_abs, tag = 'smem constant byte address 0x4 - core index']
  #allocation1 [shape = 'u32[72,128]{1,0:T(1,128)}', space=vmem, size = 0x9000, scoped, tag = 'internal scratch']
  #allocation2 [shape = 'bf16[4,8,8]{2,1,0:T(8,128)(2,1)}', space=vmem, size = 0x2000, scoped, tag = 'scratch operand']
  #allocation3 [shape = 'f32[4,8,1]{2,1,0:T(8,128)}', space=vmem, size = 0x4000, scoped, tag = 'scratch operand']
  #allocation4 [shape = 'f32[4,8,1]{2,1,0:T(8,128)}', space=vmem, size = 0x4000, scoped, tag = 'scratch operand']
  #allocation5 [shape = 'f32[4,8,8]{2,1,0:T(8,128)}', space=vmem, size = 0x4000, scoped, tag = 'scratch operand']
  %s0 = inlined_call_operand.hbm [shape: f32[2,8,32], index: 0, kind: input, shape index: {}]
  %s1 = inlined_call_operand.hbm [shape: f32[2,8,32], index: 1, kind: input, shape index: {}]
  %s2 = inlined_call_operand.hbm [shape: f32[2,1,8], index: 2, kind: input, shape index: {}]
  %s3 = inlined_call_operand.hbm [shape: bf16[32,32], index: 3, kind: input, shape index: {}]
  %s4 = inlined_call_operand.hbm [shape: bf16[32,64], index: 4, kind: input, shape index: {}]
  %s5 = inlined_call_operand.hbm [shape: bf16[32,32], index: 5, kind: input, shape index: {}]
  %s6 = inlined_call_operand.vmem [shape: f32[1,32], index: 6, kind: input, shape index: {}]
  %s7 = inlined_call_operand.hbm [shape: f32[2,8,32], index: 7, kind: output, shape index: {}]
  %s8 = sld [smem:[#allocation0]]
  $region93: #{tpu_custom_call.1} parent=0
    _
  %s10 = ssub.s32 1, %s8
  %s11 = scalar_select 0, %s10, %s8
  $region1: #{tpu_custom_call.1} parent=0
    #allocation6 [shape = 'u8[8192]{0}', space=vmem, size = 0x2000, scoped, tag = 'input window, operand 0']
    #allocation7 [shape = 's32[2]{0}', space=sflag, size = 0x8, scoped, tag = 'scoped memory for tpu_custom_call.1']
    #allocation8 [shape = 's32[2]{0}', space=sflag, size = 0x8, scoped, tag = 'scoped memory for tpu_custom_call.1']
    #allocation9 [shape = 'u8[8192]{0}', space=vmem, size = 0x2000, scoped, tag = 'input window, operand 1']
    #allocation10 [shape = 's32[2]{0}', space=sflag, size = 0x8, scoped, tag = 'scoped memory for tpu_custom_call.1']
    #allocation11 [shape = 'u8[1024]{0}', space=vmem, size = 0x400, scoped, tag = 'input window, operand 2']
    #allocation12 [shape = 'u8[8192]{0}', space=vmem, size = 0x2000, scoped, tag = 'input window, operand 3, single buffered']
    #allocation13 [shape = 's32[1]{0}', space=sflag, size = 0x4, scoped, tag = 'scoped memory for tpu_custom_call.1']
    #allocation14 [shape = 'u8[8192]{0}', space=vmem, size = 0x2000, scoped, tag = 'input window, operand 4, single buffered']
    #allocation15 [shape = 'u8[8192]{0}', space=vmem, size = 0x2000, scoped, tag = 'input window, operand 5, single buffered']
    #allocation16 [shape = 's32[1]{0}', space=sflag, size = 0x4, scoped, tag = 'scoped memory for tpu_custom_call.1']
    #allocation17 [shape = 'u8[8192]{0}', space=vmem, size = 0x2000, scoped, tag = 'output window, operand 0']
    %12 = vsyncpa [#allocation7], 0
    %s13 = scalar_lea.sflag [#allocation7], 1
    %14 = vsyncpa %s13, 0
    %15 = vsyncpa [#allocation10], 0
    %s16 = scalar_lea.sflag [#allocation10], 1
    %17 = vsyncpa %s16, 0
    %18 = vsyncpa [#allocation13], 0
    %19 = vsyncpa [#allocation16], 0
    %20 = vsyncpa [#allocation8], 0
    %s21 = scalar_lea.sflag [#allocation8], 1
    %22 = vsyncpa %s21, 0
    loop: start=0, step=1, limit=4
    $region2: #{tpu_custom_call.1} parent=1 // loop_pre_header
      _
    $region3: #{tpu_custom_call.1} parent=1 // loop_header
      %s24 = sphi 0, %s28
      %p25 = scmp.ge.s32.totalorder %s24, 4
      %s31 = sphi 0, %s50
      %s32 = sphi 0, %s46
      %s33 = sphi 0, %s42
      %s34 = sphi 0, %s31
      %s35 = sphi 0, %s32
      %s36 = sphi 0, %s33
      %s37 = sphi 0, %s34
      %s38 = sphi 0, %s35
      %s39 = sphi 0, %s36
      %s55 = sphi 0, %s57
      %s58 = sphi 0, %s55
      %s59 = sphi 0, %s58
      %s75 = sphi 0, %s59
      %s83 = sphi 0, %s85
      %s86 = sphi 0, %s83
      %s87 = sphi 0, %s86
      %s103 = sphi 0, %s87
      %s111 = sphi 0, %s113
      %s114 = sphi 0, %s111
      %s115 = sphi 0, %s114
      %s131 = sphi 0, %s115
      %s135 = sphi 0, %s135
      %s137 = sphi 0, %s135
      %s138 = sphi 0, %s137
      %s152 = sphi 0, %s138
      %s156 = sphi 0, %s156
      %s158 = sphi 0, %s156
      %s159 = sphi 0, %s158
      %s173 = sphi 0, %s159
      %s177 = sphi 0, %s177
      %s179 = sphi 0, %s177
      %s180 = sphi 0, %s179
      %s194 = sphi 0, %s180
      %s198 = sphi 0, %s198
      %s200 = sphi 0, %s198
      %s201 = sphi 0, %s200
      %s215 = sphi 0, %s201
      %s223 = sphi 0, %s225
      %s226 = sphi 0, %s223
      %s227 = sphi 0, %s226
      %s243 = sphi 0, %s227
    $region4: #{tpu_custom_call.1} parent=1 // loop_header_branch
      %27 = sbr.rel (%p25) target = $region8
    $region5: #{tpu_custom_call.1} parent=1 // loop_body
      %s29 = ssub.s32 %s24, 1
      %s30 = ssub.s32 %s24, 2
      %s40 = sadd.s32 1, %s33
      %p41 = scmp.ge.s32.totalorder %s40, 1
      %s42 = scalar_select %p41, 0, %s40
      %s43 = sadd.s32 1, %s32
      %s44 = scalar_select %p41, %s43, %s32
      %p45 = scmp.ge.s32.totalorder %s44, 1
      %s46 = scalar_select %p45, 0, %s44
      %s47 = sadd.s32 1, %s31
      %s48 = scalar_select %p45, %s47, %s31
      %p49 = scmp.ge.s32.totalorder %s48, 2
      %s50 = scalar_select %p49, 0, %s48
      %s51 = ssub.s32 %s31, %s50
      %s52 = ssub.s32 %s32, %s46
      %s53 = sor.u32 %s51, %s52
      %p54 = scmp.eq.s32.totalorder %s53, 0
      %s56 = sadd.s32 %s55, 1
      %s57 = scalar_select %p54, %s55, %s56
      %p60 = pneg %p54
      %p61 = scmp.eq.s32.totalorder %s24, 1
      %p62 = por %p60, %p61
      %p63 = scmp.ne.s32.totalorder %s55, %s58
      %p64 = scmp.eq.s32.totalorder %s24, 0
      %p65 = por %p63, %p64
      %p66 = scmp.ne.s32.totalorder %s55, %s58
      %p67 = scmp.eq.s32.totalorder %s29, 1
      %p68 = por %p66, %p67
      %p69 = scmp.ne.s32.totalorder %s58, %s59
      %p70 = scmp.eq.s32.totalorder %s29, 0
      %p71 = por %p69, %p70
      %p72 = scmp.ne.s32.totalorder %s58, %s59
      %p73 = scmp.eq.s32.totalorder %s30, 1
      %p74 = por %p72, %p73
      %p76 = scmp.ne.s32.totalorder %s59, %s75
      %p77 = scmp.eq.s32.totalorder %s30, 0
      %p78 = por %p76, %p77
      %s79 = ssub.s32 %s31, %s50
      %s80 = ssub.s32 %s33, %s42
      %s81 = sor.u32 %s79, %s80
      %p82 = scmp.eq.s32.totalorder %s81, 0
      %s84 = sadd.s32 %s83, 1
      %s85 = scalar_select %p82, %s83, %s84
      %p88 = pneg %p82
      %p89 = scmp.eq.s32.totalorder %s24, 1
      %p90 = por %p88, %p89
      %p91 = scmp.ne.s32.totalorder %s83, %s86
      %p92 = scmp.eq.s32.totalorder %s24, 0
      %p93 = por %p91, %p92
      %p94 = scmp.ne.s32.totalorder %s83, %s86
      %p95 = scmp.eq.s32.totalorder %s29, 1
      %p96 = por %p94, %p95
      %p97 = scmp.ne.s32.totalorder %s86, %s87
      %p98 = scmp.eq.s32.totalorder %s29, 0
      %p99 = por %p97, %p98
      %p100 = scmp.ne.s32.totalorder %s86, %s87
      %p101 = scmp.eq.s32.totalorder %s30, 1
      %p102 = por %p100, %p101
      %p104 = scmp.ne.s32.totalorder %s87, %s103
      %p105 = scmp.eq.s32.totalorder %s30, 0
      %p106 = por %p104, %p105
      %s107 = ssub.s32 %s31, %s50
      %s108 = ssub.s32 %s33, %s42
      %s109 = sor.u32 %s107, %s108
      %p110 = scmp.eq.s32.totalorder %s109, 0
      %s112 = sadd.s32 %s111, 1
      %s113 = scalar_select %p110, %s111, %s112
      %p116 = pneg %p110
      %p117 = scmp.eq.s32.totalorder %s24, 1
      %p118 = por %p116, %p117
      %p119 = scmp.ne.s32.totalorder %s111, %s114
      %p120 = scmp.eq.s32.totalorder %s24, 0
      %p121 = por %p119, %p120
      %p122 = scmp.ne.s32.totalorder %s111, %s114
      %p123 = scmp.eq.s32.totalorder %s29, 1
      %p124 = por %p122, %p123
      %p125 = scmp.ne.s32.totalorder %s114, %s115
      %p126 = scmp.eq.s32.totalorder %s29, 0
      %p127 = por %p125, %p126
      %p128 = scmp.ne.s32.totalorder %s114, %s115
      %p129 = scmp.eq.s32.totalorder %s30, 1
      %p130 = por %p128, %p129
      %p132 = scmp.ne.s32.totalorder %s115, %s131
      %p133 = scmp.eq.s32.totalorder %s30, 0
      %p134 = por %p132, %p133
      %s136 = sadd.s32 %s135, 1
      %p139 = scmp.eq.s32.totalorder %s24, 1
      %p140 = scmp.ne.s32.totalorder %s135, %s137
      %p141 = scmp.eq.s32.totalorder %s24, 0
      %p142 = por %p140, %p141
      %p143 = scmp.ne.s32.totalorder %s135, %s137
      %p144 = scmp.eq.s32.totalorder %s29, 1
      %p145 = por %p143, %p144
      %p146 = scmp.ne.s32.totalorder %s137, %s138
      %p147 = scmp.eq.s32.totalorder %s29, 0
      %p148 = por %p146, %p147
      %p149 = scmp.ne.s32.totalorder %s137, %s138
      %p150 = scmp.eq.s32.totalorder %s30, 1
      %p151 = por %p149, %p150
      %p153 = scmp.ne.s32.totalorder %s138, %s152
      %p154 = scmp.eq.s32.totalorder %s30, 0
      %p155 = por %p153, %p154
      %s157 = sadd.s32 %s156, 1
      %p160 = scmp.eq.s32.totalorder %s24, 1
      %p161 = scmp.ne.s32.totalorder %s156, %s158
      %p162 = scmp.eq.s32.totalorder %s24, 0
      %p163 = por %p161, %p162
      %p164 = scmp.ne.s32.totalorder %s156, %s158
      %p165 = scmp.eq.s32.totalorder %s29, 1
      %p166 = por %p164, %p165
      %p167 = scmp.ne.s32.totalorder %s158, %s159
      %p168 = scmp.eq.s32.totalorder %s29, 0
      %p169 = por %p167, %p168
      %p170 = scmp.ne.s32.totalorder %s158, %s159
      %p171 = scmp.eq.s32.totalorder %s30, 1
      %p172 = por %p170, %p171
      %p174 = scmp.ne.s32.totalorder %s159, %s173
      %p175 = scmp.eq.s32.totalorder %s30, 0
      %p176 = por %p174, %p175
      %s178 = sadd.s32 %s177, 1
      %p181 = scmp.eq.s32.totalorder %s24, 1
      %p182 = scmp.ne.s32.totalorder %s177, %s179
      %p183 = scmp.eq.s32.totalorder %s24, 0
      %p184 = por %p182, %p183
      %p185 = scmp.ne.s32.totalorder %s177, %s179
      %p186 = scmp.eq.s32.totalorder %s29, 1
      %p187 = por %p185, %p186
      %p188 = scmp.ne.s32.totalorder %s179, %s180
      %p189 = scmp.eq.s32.totalorder %s29, 0
      %p190 = por %p188, %p189
      %p191 = scmp.ne.s32.totalorder %s179, %s180
      %p192 = scmp.eq.s32.totalorder %s30, 1
      %p193 = por %p191, %p192
      %p195 = scmp.ne.s32.totalorder %s180, %s194
      %p196 = scmp.eq.s32.totalorder %s30, 0
      %p197 = por %p195, %p196
      %s199 = sadd.s32 %s198, 1
      %p202 = scmp.eq.s32.totalorder %s24, 1
      %p203 = scmp.ne.s32.totalorder %s198, %s200
      %p204 = scmp.eq.s32.totalorder %s24, 0
      %p205 = por %p203, %p204
      %p206 = scmp.ne.s32.totalorder %s198, %s200
      %p207 = scmp.eq.s32.totalorder %s29, 1
      %p208 = por %p206, %p207
      %p209 = scmp.ne.s32.totalorder %s200, %s201
      %p210 = scmp.eq.s32.totalorder %s29, 0
      %p211 = por %p209, %p210
      %p212 = scmp.ne.s32.totalorder %s200, %s201
      %p213 = scmp.eq.s32.totalorder %s30, 1
      %p214 = por %p212, %p213
      %p216 = scmp.ne.s32.totalorder %s201, %s215
      %p217 = scmp.eq.s32.totalorder %s30, 0
      %p218 = por %p216, %p217
      %s219 = ssub.s32 %s31, %s50
      %s220 = ssub.s32 %s32, %s46
      %s221 = sor.u32 %s219, %s220
      %p222 = scmp.eq.s32.totalorder %s221, 0
      %s224 = sadd.s32 %s223, 1
      %s225 = scalar_select %p222, %s223, %s224
      %p228 = pneg %p222
      %p229 = scmp.eq.s32.totalorder %s24, 1
      %p230 = por %p228, %p229
      %p231 = scmp.ne.s32.totalorder %s223, %s226
      %p232 = scmp.eq.s32.totalorder %s24, 0
      %p233 = por %p231, %p232
      %p234 = scmp.ne.s32.totalorder %s223, %s226
      %p235 = scmp.eq.s32.totalorder %s29, 1
      %p236 = por %p234, %p235
      %p237 = scmp.ne.s32.totalorder %s226, %s227
      %p238 = scmp.eq.s32.totalorder %s29, 0
      %p239 = por %p237, %p238
      %p240 = scmp.ne.s32.totalorder %s226, %s227
      %p241 = scmp.eq.s32.totalorder %s30, 1
      %p242 = por %p240, %p241
      %p244 = scmp.ne.s32.totalorder %s227, %s243
      %p245 = scmp.eq.s32.totalorder %s30, 0
      %p246 = por %p244, %p245
      %p247 = scmp.le.s32.totalorder 1, %s24
      %p248 = scmp.lt.s32.totalorder %s24, 3
      %p249 = pnand %p247, %p248
      %p250 = pneg %p249
      // Predicated region
      $region9: #{tpu_custom_call.1} parent=5 // pred_check
        _
      $region10: #{tpu_custom_call.1} parent=5 // pred_check_branch
        %252 = sbr.rel (%p249) target = $region12
      $region11: #{tpu_custom_call.1} parent=5 // pred_region
        %s253 = ssub.s32 %s24, 1
        // Predicated region
        $region13: #{tpu_custom_call.1} parent=11 // pred_check
          %p254 = pneg %p148
        $region14: #{tpu_custom_call.1} parent=11 // pred_check_branch
          %256 = sbr.rel (%p254) target = $region16
        $region15: #{tpu_custom_call.1} parent=11 // pred_region
          %258 = vsyncadd [#allocation13], 0
          %s259 = sshll.u32 %s3, 4
          %s260 = int_to_ptr.hbm [resolvable:$true] %s259
          %s261 = sshll.u32 [#allocation12], 4
          %s262 = int_to_ptr.vmem [resolvable:$true] %s261
          %267 = dma.hbm_to_vmem [thread:$0]  %s260, 256, %s262, [#allocation13], 64, 64, 4
        $region16: #{tpu_custom_call.1} parent=11 // pred_fallthru
          _
        // Predicated region
        $region17: #{tpu_custom_call.1} parent=11 // pred_check
          %p268 = pneg %p169
        $region18: #{tpu_custom_call.1} parent=11 // pred_check_branch
          %270 = sbr.rel (%p268) target = $region20
        $region19: #{tpu_custom_call.1} parent=11 // pred_region
          %272 = vsyncadd [#allocation13], 0
          %s273 = sshll.u32 %s4, 4
          %s274 = int_to_ptr.hbm [resolvable:$true] %s273
          %s275 = sshll.u32 [#allocation14], 4
          %s276 = int_to_ptr.vmem [resolvable:$true] %s275
          %281 = dma.hbm_to_vmem [thread:$0]  %s274, 256, %s276, [#allocation13], 64, 64, 4
        $region20: #{tpu_custom_call.1} parent=11 // pred_fallthru
          _
        // Predicated region
        $region21: #{tpu_custom_call.1} parent=11 // pred_check
          %p282 = pneg %p190
        $region22: #{tpu_custom_call.1} parent=11 // pred_check_branch
          %284 = sbr.rel (%p282) target = $region24
        $region23: #{tpu_custom_call.1} parent=11 // pred_region
          %286 = vsyncadd [#allocation16], 0
          %s287 = sshll.u32 %s5, 4
          %s288 = int_to_ptr.hbm [resolvable:$true] %s287
          %s289 = sshll.u32 [#allocation15], 4
          %s290 = int_to_ptr.vmem [resolvable:$true] %s289
          %295 = dma.hbm_to_vmem [thread:$0]  %s288, 256, %s290, [#allocation16], 64, 64, 4
        $region24: #{tpu_custom_call.1} parent=11 // pred_fallthru
          _
        // Predicated region
        $region25: #{tpu_custom_call.1} parent=11 // pred_check
          %p296 = pneg %p211
        $region26: #{tpu_custom_call.1} parent=11 // pred_check_branch
          %298 = sbr.rel (%p296) target = $region28
        $region27: #{tpu_custom_call.1} parent=11 // pred_region
          _
        $region28: #{tpu_custom_call.1} parent=11 // pred_fallthru
          _
      $region12: #{tpu_custom_call.1} parent=5 // pred_fallthru
        _
      %p299 = scmp.lt.s32.totalorder %s24, 2
      // Predicated region
      $region29: #{tpu_custom_call.1} parent=5 // pred_check
        %p300 = pneg %p299
      $region30: #{tpu_custom_call.1} parent=5 // pred_check_branch
        %302 = sbr.rel (%p300) target = $region32
      $region31: #{tpu_custom_call.1} parent=5 // pred_region
        // Predicated region
        $region33: #{tpu_custom_call.1} parent=31 // pred_check
          %p303 = pneg %p65
        $region34: #{tpu_custom_call.1} parent=31 // pred_check_branch
          %305 = sbr.rel (%p303) target = $region36
        $region35: #{tpu_custom_call.1} parent=31 // pred_region
          %s306 = sand.u32 %s55, 1
          %s307 = scalar_lea.sflag [#allocation7], %s306
          %s308 = sand.u32 %s55, 1
          %s309 = smul.addr %s308, 8
          %s310 = scalar_lea.vmem [#allocation6], %s309
          %312 = vsyncadd %s307, 0
          %s313 = sadd.s32 %s32, %s31
          %s314 = smul.addr %s313, 8
          %s315 = scalar_lea.hbm %s0, %s314
          %s317 = sshll.u32 %s315, 4
          %s318 = int_to_ptr.hbm [resolvable:$true] %s317
          %s319 = sshll.u32 %s310, 4
          %s320 = int_to_ptr.vmem [resolvable:$true] %s319
          %322 = dma.hbm_to_vmem [thread:$0]  %s318, 128, %s320, %s307
        $region36: #{tpu_custom_call.1} parent=31 // pred_fallthru
          _
        // Predicated region
        $region37: #{tpu_custom_call.1} parent=31 // pred_check
          %p323 = pneg %p93
        $region38: #{tpu_custom_call.1} parent=31 // pred_check_branch
          %325 = sbr.rel (%p323) target = $region40
        $region39: #{tpu_custom_call.1} parent=31 // pred_region
          %s326 = sand.u32 %s24, 1
          %s327 = scalar_lea.sflag [#allocation10], %s326
          %s328 = sand.u32 %s83, 1
          %s329 = smul.addr %s328, 8
          %s330 = scalar_lea.vmem [#allocation9], %s329
          %332 = vsyncadd %s327, 0
          %s333 = sadd.s32 %s33, %s31
          %s334 = smul.addr %s333, 8
          %s335 = scalar_lea.hbm %s1, %s334
          %s337 = sshll.u32 %s335, 4
          %s338 = int_to_ptr.hbm [resolvable:$true] %s337
          %s339 = sshll.u32 %s330, 4
          %s340 = int_to_ptr.vmem [resolvable:$true] %s339
          %342 = dma.hbm_to_vmem [thread:$0]  %s338, 128, %s340, %s327
        $region40: #{tpu_custom_call.1} parent=31 // pred_fallthru
          _
        // Predicated region
        $region41: #{tpu_custom_call.1} parent=31 // pred_check
          %p343 = pneg %p121
        $region42: #{tpu_custom_call.1} parent=31 // pred_check_branch
          %345 = sbr.rel (%p343) target = $region44
        $region43: #{tpu_custom_call.1} parent=31 // pred_region
          %s346 = sand.u32 %s24, 1
          %s347 = scalar_lea.sflag [#allocation10], %s346
          %s348 = sand.u32 %s111, 1
          %s349 = scalar_lea.vmem [#allocation11], %s348
          %351 = vsyncadd %s347, 0
          %s352 = sadd.s32 %s33, %s31
          %s353 = scalar_lea.hbm %s2, %s352
          %s355 = sshll.u32 %s353, 4
          %s356 = int_to_ptr.hbm [resolvable:$true] %s355
          %s357 = sshll.u32 %s349, 4
          %s358 = int_to_ptr.vmem [resolvable:$true] %s357
          %360 = dma.hbm_to_vmem [thread:$0]  %s356, 16, %s358, %s347
        $region44: #{tpu_custom_call.1} parent=31 // pred_fallthru
          _
      $region32: #{tpu_custom_call.1} parent=5 // pred_fallthru
        _
      %p361 = scmp.le.s32.totalorder 1, %s24
      %p362 = scmp.lt.s32.totalorder %s24, 3
      %p363 = pnand %p361, %p362
      %p364 = pneg %p363
      // Predicated region
      $region45: #{tpu_custom_call.1} parent=5 // pred_check
        _
      $region46: #{tpu_custom_call.1} parent=5 // pred_check_branch
        %366 = sbr.rel (%p363) target = $region48
      $region47: #{tpu_custom_call.1} parent=5 // pred_region
        %s367 = ssub.s32 %s24, 1
        %s368 = sand.u32 %s58, 1
        %s369 = scalar_lea.sflag [#allocation7], %s368
        %s370 = sand.u32 %s58, 1
        %s371 = smul.addr %s370, 8
        %s372 = scalar_lea.vmem [#allocation6], %s371
        // Predicated region
        $region49: #{tpu_custom_call.1} parent=47 // pred_check
          %p373 = pneg %p71
        $region50: #{tpu_custom_call.1} parent=47 // pred_check_branch
          %375 = sbr.rel (%p373) target = $region52
        $region51: #{tpu_custom_call.1} parent=47 // pred_region
          %377 = dma.done %s369, 128
        $region52: #{tpu_custom_call.1} parent=47 // pred_fallthru
          _
        %s378 = sand.u32 %s29, 1
        %s379 = scalar_lea.sflag [#allocation10], %s378
        %s380 = sand.u32 %s86, 1
        %s381 = smul.addr %s380, 8
        %s382 = scalar_lea.vmem [#allocation9], %s381
        // Predicated region
        $region53: #{tpu_custom_call.1} parent=47 // pred_check
          %p383 = pneg %p99
        $region54: #{tpu_custom_call.1} parent=47 // pred_check_branch
          %385 = sbr.rel (%p383) target = $region56
        $region55: #{tpu_custom_call.1} parent=47 // pred_region
          %387 = dma.done %s379, 128
        $region56: #{tpu_custom_call.1} parent=47 // pred_fallthru
          _
        %s388 = sand.u32 %s29, 1
        %s389 = scalar_lea.sflag [#allocation10], %s388
        %s390 = sand.u32 %s114, 1
        %s391 = scalar_lea.vmem [#allocation11], %s390
        // Predicated region
        $region57: #{tpu_custom_call.1} parent=47 // pred_check
          %p392 = pneg %p127
        $region58: #{tpu_custom_call.1} parent=47 // pred_check_branch
          %394 = sbr.rel (%p392) target = $region60
        $region59: #{tpu_custom_call.1} parent=47 // pred_region
          %396 = dma.done %s389, 16
        $region60: #{tpu_custom_call.1} parent=47 // pred_fallthru
          _
        // Predicated region
        $region61: #{tpu_custom_call.1} parent=47 // pred_check
          %p397 = pneg %p148
        $region62: #{tpu_custom_call.1} parent=47 // pred_check_branch
          %399 = sbr.rel (%p397) target = $region64
        $region63: #{tpu_custom_call.1} parent=47 // pred_region
          %401 = dma.done [#allocation13], 256
        $region64: #{tpu_custom_call.1} parent=47 // pred_fallthru
          _
        // Predicated region
        $region65: #{tpu_custom_call.1} parent=47 // pred_check
          %p402 = pneg %p169
        $region66: #{tpu_custom_call.1} parent=47 // pred_check_branch
          %404 = sbr.rel (%p402) target = $region68
        $region67: #{tpu_custom_call.1} parent=47 // pred_region
          %406 = dma.done [#allocation13], 256
        $region68: #{tpu_custom_call.1} parent=47 // pred_fallthru
          _
        // Predicated region
        $region69: #{tpu_custom_call.1} parent=47 // pred_check
          %p407 = pneg %p190
        $region70: #{tpu_custom_call.1} parent=47 // pred_check_branch
          %409 = sbr.rel (%p407) target = $region72
        $region71: #{tpu_custom_call.1} parent=47 // pred_region
          %411 = dma.done [#allocation16], 256
        $region72: #{tpu_custom_call.1} parent=47 // pred_fallthru
          _
        %s412 = sand.u32 %s58, 1
        %s413 = scalar_lea.sflag [#allocation7], %s412
        %s414 = sand.u32 %s58, 1
        %s415 = smul.addr %s414, 8
        %s416 = scalar_lea.vmem [#allocation6], %s415
        %p417 = pneg %p71
        %p418 = pneg %p68
        %s419 = sand.u32 %s29, 1
        %s420 = scalar_lea.sflag [#allocation10], %s419
        %s421 = sand.u32 %s86, 1
        %s422 = smul.addr %s421, 8
        %s423 = scalar_lea.vmem [#allocation9], %s422
        %p424 = pneg %p99
        %p425 = pneg %p96
        %s426 = sand.u32 %s29, 1
        %s427 = scalar_lea.sflag [#allocation10], %s426
        %s428 = sand.u32 %s114, 1
        %s429 = scalar_lea.vmem [#allocation11], %s428
        %p430 = pneg %p127
        %p431 = pneg %p124
        %p432 = pneg %p148
        %p433 = pneg %p145
        %p434 = pneg %p169
        %p435 = pneg %p166
        %p436 = pneg %p190
        %p437 = pneg %p187
        %p438 = pneg %p211
        %p439 = pneg %p208
        %p440 = pneg %p239
        %p441 = pneg %p236
        %s442 = sand.u32 %s226, 1
        %s443 = scalar_lea.sflag [#allocation8], %s442
        %s444 = sand.u32 %s226, 1
        %s445 = smul.addr %s444, 8
        %s446 = scalar_lea.vmem [#allocation17], %s445
        %p448 = scmp.eq.s32.totalorder %s36, 0
        // Predicated region
        $region73: #{tpu_custom_call.1} parent=47 // pred_check
          %p449 = pneg %p448
        $region74: #{tpu_custom_call.1} parent=47 // pred_check_branch
          %451 = sbr.rel (%p449) target = $region76
        $region75: #{tpu_custom_call.1} parent=47 // pred_region
          %v452 = vld [vmem:[%s372] sm:$0xff]
          %v453 = vpack.c.bf16 %v452, %v452
          %v454 = vld [vmem:[#allocation12] sm:$0xf]
          %v455 = vld [vmem:[#allocation12 + $0x4] sm:$0xf]
          %v456 = vld [vmem:[#allocation12 + $0x8] sm:$0xf]
          %v457 = vld [vmem:[#allocation12 + $0xc] sm:$0xf]
          %v462 = vunpack.c.l.b16 %v454
          %v463 = vunpack.c.l.b16 %v455
          %v464 = vunpack.c.l.b16 %v456
          %v465 = vunpack.c.l.b16 %v457
          %v466 = vpack.c.b16 %v463, %v462
          %v467 = vpack.c.b16 %v465, %v464
          %vm470 = vcmask 261120
          %v472 = vsel %vm470, %v453, 0
          %474 = vmatpush.bf16.msra.mxu0 0
          %475 = vmatpush.bf16.msra.mxu0 0
          %476 = vmatpush.bf16.msra.mxu0 0
          %477 = vmatpush.bf16.msra.mxu0 0
          %478 = vmatpush.bf16.msra.mxu0 0
          %479 = vmatpush.bf16.msra.mxu0 0
          %480 = vmatpush.bf16.msra.mxu0 %v467
          %481 = vmatpush.bf16.msra.mxu0 %v466
          %482 = vmatmul.bf16.gmra.mxu0 %v472
          %v483 = vpop.f32.mrf.mxu0
          %v484 = vadd.f32 0.0, %v483
          %v485 = vpop.f32.mrf.mxu0
          %486 = vdwg.mxu0
          %v487 = vpack.c.bf16 %v484, %v484
          %489 = vrot.lane.b32.xlu0 %v487, 120
          %v490 = vpop.permute.xlu0 %489
          %491 = vrot.lane.b32.xlu0 %v487, 112
          %v492 = vpop.permute.xlu0 %491
          %493 = vrot.lane.b32.xlu0 %v487, 104
          %v494 = vpop.permute.xlu0 %493
          %v497 = vpack.i.b16 %v490, %v487
          %v498 = vshrl.u32 %v487, 16
          %v499 = vshrl.u32 %v490, 16
          %v500 = vpack.i.b16 %v499, %v498
          %v503 = vpack.i.b16 %v494, %v492
          %v504 = vshrl.u32 %v492, 16
          %v505 = vshrl.u32 %v494, 16
          %v506 = vpack.i.b16 %v505, %v504
          %v509 = vunpack.c.l.s4 1983009808
          %v510 = vunpack.c.0.s8 %v509
          %v511 = vperm.slane %v497, %v510
          %v514 = vunpack.c.l.s4 1983009808
          %v515 = vunpack.c.0.s8 %v514
          %v516 = vperm.slane %v503, %v515
          %v517 = vrot.slane %v516, 4
          %vm518 = vcmask 1047556
          %v519 = vsel %vm518, %v517, %v511
          %v520 = vrot.slane %v511, 4
          %v521 = vsel %vm518, %v516, %v520
          %v523 = vunpack.c.l.s4 1934713408
          %v524 = vunpack.c.0.s8 %v523
          %v525 = vperm.slane %v519, %v524
          %v527 = vunpack.c.l.s4 1934713408
          %v528 = vunpack.c.0.s8 %v527
          %v529 = vperm.slane %v521, %v528
          %v530 = vrot.slane %v525, 4
          %v531 = vsel %vm518, 0, %v530
          %v532 = vrot.slane %v529, 4
          %v533 = vsel %vm518, 0, %v532
          %v536 = vunpack.c.l.s4 1983009808
          %v537 = vunpack.c.0.s8 %v536
          %v538 = vperm.slane %v500, %v537
          %v541 = vunpack.c.l.s4 1983009808
          %v542 = vunpack.c.0.s8 %v541
          %v543 = vperm.slane %v506, %v542
          %v544 = vrot.slane %v543, 4
          %v545 = vsel %vm518, %v544, %v538
          %v546 = vrot.slane %v538, 4
          %v547 = vsel %vm518, %v543, %v546
          %v549 = vunpack.c.l.s4 1934713408
          %v550 = vunpack.c.0.s8 %v549
          %v551 = vperm.slane %v545, %v550
          %v553 = vunpack.c.l.s4 1934713408
          %v554 = vunpack.c.0.s8 %v553
          %v555 = vperm.slane %v547, %v554
          %v556 = vrot.slane %v551, 4
          %v557 = vsel %vm518, 0, %v556
          %v558 = vrot.slane %v555, 4
          %v559 = vsel %vm518, 0, %v558
          %v560 = vsel %vm518, %v532, %v525
          %v562 = vunpack.c.l.s4 1983009808
          %v563 = vunpack.c.0.s8 %v562
          %v564 = vperm.slane %v560, %v563
          %v565 = vrot.slane %v533, 4
          %v566 = vsel %vm518, %v565, %v531
          %v568 = vunpack.c.l.s4 1983009808
          %v569 = vunpack.c.0.s8 %v568
          %v570 = vperm.slane %v566, %v569
          %v571 = vrot.slane %v570, 4
          %v572 = vsel %vm518, %v571, %v564
          %v574 = vunpack.c.l.s4 1934713408
          %v575 = vunpack.c.0.s8 %v574
          %v576 = vperm.slane %v572, %v575
          %v577 = vrot.slane %v576, 4
          %v578 = vsel %vm518, 0, %v577
          %v579 = vsel %vm518, %v558, %v551
          %v581 = vunpack.c.l.s4 1983009808
          %v582 = vunpack.c.0.s8 %v581
          %v583 = vperm.slane %v579, %v582
          %v584 = vrot.slane %v559, 4
          %v585 = vsel %vm518, %v584, %v557
          %v587 = vunpack.c.l.s4 1983009808
          %v588 = vunpack.c.0.s8 %v587
          %v589 = vperm.slane %v585, %v588
          %v590 = vrot.slane %v589, 4
          %v591 = vsel %vm518, %v590, %v583
          %v593 = vunpack.c.l.s4 1934713408
          %v594 = vunpack.c.0.s8 %v593
          %v595 = vperm.slane %v591, %v594
          %v596 = vrot.slane %v595, 4
          %v597 = vsel %vm518, 0, %v596
          %v600 = vpack.i.b16 %v595, %v576
          %v602 = vshrl.u32 %v576, 16
          %v603 = vshrl.u32 %v595, 16
          %v604 = vpack.i.b16 %v603, %v602
          %v608 = vpack.i.b16 %v597, %v578
          %v610 = vshrl.u32 %v578, 16
          %v611 = vshrl.u32 %v597, 16
          %v612 = vpack.i.b16 %v611, %v610
          %vm614 = vcmask 60416
          %615 = vst.msk [vmem:[#allocation2] sm:$0xf] %vm614, %v600
          %616 = vst.msk [vmem:[#allocation2 + $0x4] sm:$0xf] %vm614, %v604
          %617 = vst.msk [vmem:[#allocation2 + $0x8] sm:$0xf] %vm614, %v608
          %618 = vst.msk [vmem:[#allocation2 + $0xc] sm:$0xf] %vm614, %v612
          %vm619 = vcmask 7168
          %620 = vst.msk [vmem:[#allocation3] sm:$0xff] %vm619, -1e+30
          %621 = vst.msk [vmem:[#allocation3 + $0x8] sm:$0xff] %vm619, -1e+30
          %622 = vst.msk [vmem:[#allocation3 + $0x10] sm:$0xff] %vm619, -1e+30
          %623 = vst.msk [vmem:[#allocation3 + $0x18] sm:$0xff] %vm619, -1e+30
          %624 = vst.msk [vmem:[#allocation4] sm:$0xff] %vm619, 0.0
          %625 = vst.msk [vmem:[#allocation4 + $0x8] sm:$0xff] %vm619, 0.0
          %626 = vst.msk [vmem:[#allocation4 + $0x10] sm:$0xff] %vm619, 0.0
          %627 = vst.msk [vmem:[#allocation4 + $0x18] sm:$0xff] %vm619, 0.0
          %vm628 = vcmask 64512
          %629 = vst.msk [vmem:[#allocation5] sm:$0xff] %vm628, 0.0
          %630 = vst.msk [vmem:[#allocation5 + $0x8] sm:$0xff] %vm628, 0.0
          %631 = vst.msk [vmem:[#allocation5 + $0x10] sm:$0xff] %vm628, 0.0
          %632 = vst.msk [vmem:[#allocation5 + $0x18] sm:$0xff] %vm628, 0.0
        $region76: #{tpu_custom_call.1} parent=47 // pred_fallthru
          _
        %v633 = vld [vmem:[%s382] sm:$0xff]
        %v634 = vpack.c.bf16 %v633, %v633
        %v635 = vld [vmem:[#allocation14] sm:$0xf]
        %v636 = vld [vmem:[#allocation14 + $0x4] sm:$0xf]
        %v637 = vld [vmem:[#allocation14 + $0x8] sm:$0xf]
        %v638 = vld [vmem:[#allocation14 + $0xc] sm:$0xf]
        %v643 = vunpack.c.l.b16 %v635
        %v644 = vunpack.c.l.b16 %v636
        %v645 = vunpack.c.l.b16 %v637
        %v646 = vunpack.c.l.b16 %v638
        %v647 = vpack.c.b16 %v644, %v643
        %v648 = vpack.c.b16 %v646, %v645
        %vm651 = vcmask 261120
        %v653 = vsel %vm651, %v634, 0
        %655 = vmatpush.bf16.msra.mxu0 0
        %656 = vmatpush.bf16.msra.mxu0 0
        %657 = vmatpush.bf16.msra.mxu0 0
        %658 = vmatpush.bf16.msra.mxu0 0
        %659 = vmatpush.bf16.msra.mxu0 0
        %660 = vmatpush.bf16.msra.mxu0 0
        %661 = vmatpush.bf16.msra.mxu0 %v648
        %662 = vmatpush.bf16.msra.mxu0 %v647
        %663 = vmatmul.bf16.gmra.mxu0 %v653
        %v664 = vpop.f32.mrf.mxu0
        %v665 = vadd.f32 0.0, %v664
        %v666 = vpop.f32.mrf.mxu0
        %667 = vdwg.mxu0
        %v668 = vpack.c.bf16 %v665, %v665
        %670 = vrot.lane.b32.xlu0 %v668, 120
        %v671 = vpop.permute.xlu0 %670
        %672 = vrot.lane.b32.xlu0 %v668, 112
        %v673 = vpop.permute.xlu0 %672
        %674 = vrot.lane.b32.xlu0 %v668, 104
        %v675 = vpop.permute.xlu0 %674
        %v678 = vpack.i.b16 %v671, %v668
        %v679 = vshrl.u32 %v668, 16
        %v680 = vshrl.u32 %v671, 16
        %v681 = vpack.i.b16 %v680, %v679
        %v684 = vpack.i.b16 %v675, %v673
        %v685 = vshrl.u32 %v673, 16
        %v686 = vshrl.u32 %v675, 16
        %v687 = vpack.i.b16 %v686, %v685
        %v690 = vunpack.c.l.s4 1983009808
        %v691 = vunpack.c.0.s8 %v690
        %v692 = vperm.slane %v678, %v691
        %v695 = vunpack.c.l.s4 1983009808
        %v696 = vunpack.c.0.s8 %v695
        %v697 = vperm.slane %v684, %v696
        %v698 = vrot.slane %v697, 4
        %vm699 = vcmask 1047556
        %v700 = vsel %vm699, %v698, %v692
        %v701 = vrot.slane %v692, 4
        %v702 = vsel %vm699, %v697, %v701
        %v704 = vunpack.c.l.s4 1934713408
        %v705 = vunpack.c.0.s8 %v704
        %v706 = vperm.slane %v700, %v705
        %v708 = vunpack.c.l.s4 1934713408
        %v709 = vunpack.c.0.s8 %v708
        %v710 = vperm.slane %v702, %v709
        %v711 = vrot.slane %v706, 4
        %v712 = vsel %vm699, 0, %v711
        %v713 = vrot.slane %v710, 4
        %v714 = vsel %vm699, 0, %v713
        %v717 = vunpack.c.l.s4 1983009808
        %v718 = vunpack.c.0.s8 %v717
        %v719 = vperm.slane %v681, %v718
        %v722 = vunpack.c.l.s4 1983009808
        %v723 = vunpack.c.0.s8 %v722
        %v724 = vperm.slane %v687, %v723
        %v725 = vrot.slane %v724, 4
        %v726 = vsel %vm699, %v725, %v719
        %v727 = vrot.slane %v719, 4
        %v728 = vsel %vm699, %v724, %v727
        %v730 = vunpack.c.l.s4 1934713408
        %v731 = vunpack.c.0.s8 %v730
        %v732 = vperm.slane %v726, %v731
        %v734 = vunpack.c.l.s4 1934713408
        %v735 = vunpack.c.0.s8 %v734
        %v736 = vperm.slane %v728, %v735
        %v737 = vrot.slane %v732, 4
        %v738 = vsel %vm699, 0, %v737
        %v739 = vrot.slane %v736, 4
        %v740 = vsel %vm699, 0, %v739
        %v741 = vsel %vm699, %v713, %v706
        %v743 = vunpack.c.l.s4 1983009808
        %v744 = vunpack.c.0.s8 %v743
        %v745 = vperm.slane %v741, %v744
        %v746 = vrot.slane %v714, 4
        %v747 = vsel %vm699, %v746, %v712
        %v749 = vunpack.c.l.s4 1983009808
        %v750 = vunpack.c.0.s8 %v749
        %v751 = vperm.slane %v747, %v750
        %v752 = vrot.slane %v751, 4
        %v753 = vsel %vm699, %v752, %v745
        %v755 = vunpack.c.l.s4 1934713408
        %v756 = vunpack.c.0.s8 %v755
        %v757 = vperm.slane %v753, %v756
        %v758 = vrot.slane %v757, 4
        %v759 = vsel %vm699, 0, %v758
        %v760 = vsel %vm699, %v739, %v732
        %v762 = vunpack.c.l.s4 1983009808
        %v763 = vunpack.c.0.s8 %v762
        %v764 = vperm.slane %v760, %v763
        %v765 = vrot.slane %v740, 4
        %v766 = vsel %vm699, %v765, %v738
        %v768 = vunpack.c.l.s4 1983009808
        %v769 = vunpack.c.0.s8 %v768
        %v770 = vperm.slane %v766, %v769
        %v771 = vrot.slane %v770, 4
        %v772 = vsel %vm699, %v771, %v764
        %v774 = vunpack.c.l.s4 1934713408
        %v775 = vunpack.c.0.s8 %v774
        %v776 = vperm.slane %v772, %v775
        %v777 = vrot.slane %v776, 4
        %v778 = vsel %vm699, 0, %v777
        %v781 = vpack.i.b16 %v776, %v757
        %v782 = vshrl.u32 %v757, 16
        %v783 = vshrl.u32 %v776, 16
        %v784 = vpack.i.b16 %v783, %v782
        %v787 = vpack.i.b16 %v778, %v759
        %v788 = vshrl.u32 %v759, 16
        %v789 = vshrl.u32 %v778, 16
        %v790 = vpack.i.b16 %v789, %v788
        %791 = vrot.lane.b32.xlu0 %v668, 96
        %v792 = vpop.permute.xlu0 %791
        %793 = vrot.lane.b32.xlu0 %v671, 96
        %v794 = vpop.permute.xlu0 %793
        %795 = vrot.lane.b32.xlu0 %v673, 96
        %v796 = vpop.permute.xlu0 %795
        %797 = vrot.lane.b32.xlu0 %v675, 96
        %v798 = vpop.permute.xlu0 %797
        %v801 = vpack.i.b16 %v794, %v792
        %v802 = vshrl.u32 %v792, 16
        %v803 = vshrl.u32 %v794, 16
        %v804 = vpack.i.b16 %v803, %v802
        %v807 = vpack.i.b16 %v798, %v796
        %v808 = vshrl.u32 %v796, 16
        %v809 = vshrl.u32 %v798, 16
        %v810 = vpack.i.b16 %v809, %v808
        %v813 = vunpack.c.l.s4 1983009808
        %v814 = vunpack.c.0.s8 %v813
        %v815 = vperm.slane %v801, %v814
        %v818 = vunpack.c.l.s4 1983009808
        %v819 = vunpack.c.0.s8 %v818
        %v820 = vperm.slane %v807, %v819
        %v821 = vrot.slane %v820, 4
        %v822 = vsel %vm699, %v821, %v815
        %v823 = vrot.slane %v815, 4
        %v824 = vsel %vm699, %v820, %v823
        %v826 = vunpack.c.l.s4 1934713408
        %v827 = vunpack.c.0.s8 %v826
        %v828 = vperm.slane %v822, %v827
        %v830 = vunpack.c.l.s4 1934713408
        %v831 = vunpack.c.0.s8 %v830
        %v832 = vperm.slane %v824, %v831
        %v833 = vrot.slane %v828, 4
        %v834 = vsel %vm699, 0, %v833
        %v835 = vrot.slane %v832, 4
        %v836 = vsel %vm699, 0, %v835
        %v839 = vunpack.c.l.s4 1983009808
        %v840 = vunpack.c.0.s8 %v839
        %v841 = vperm.slane %v804, %v840
        %v844 = vunpack.c.l.s4 1983009808
        %v845 = vunpack.c.0.s8 %v844
        %v846 = vperm.slane %v810, %v845
        %v847 = vrot.slane %v846, 4
        %v848 = vsel %vm699, %v847, %v841
        %v849 = vrot.slane %v841, 4
        %v850 = vsel %vm699, %v846, %v849
        %v852 = vunpack.c.l.s4 1934713408
        %v853 = vunpack.c.0.s8 %v852
        %v854 = vperm.slane %v848, %v853
        %v856 = vunpack.c.l.s4 1934713408
        %v857 = vunpack.c.0.s8 %v856
        %v858 = vperm.slane %v850, %v857
        %v859 = vrot.slane %v854, 4
        %v860 = vsel %vm699, 0, %v859
        %v861 = vrot.slane %v858, 4
        %v862 = vsel %vm699, 0, %v861
        %v863 = vsel %vm699, %v835, %v828
        %v865 = vunpack.c.l.s4 1983009808
        %v866 = vunpack.c.0.s8 %v865
        %v867 = vperm.slane %v863, %v866
        %v868 = vrot.slane %v836, 4
        %v869 = vsel %vm699, %v868, %v834
        %v871 = vunpack.c.l.s4 1983009808
        %v872 = vunpack.c.0.s8 %v871
        %v873 = vperm.slane %v869, %v872
        %v874 = vrot.slane %v873, 4
        %v875 = vsel %vm699, %v874, %v867
        %v877 = vunpack.c.l.s4 1934713408
        %v878 = vunpack.c.0.s8 %v877
        %v879 = vperm.slane %v875, %v878
        %v880 = vrot.slane %v879, 4
        %v881 = vsel %vm699, 0, %v880
        %v882 = vsel %vm699, %v861, %v854
        %v884 = vunpack.c.l.s4 1983009808
        %v885 = vunpack.c.0.s8 %v884
        %v886 = vperm.slane %v882, %v885
        %v887 = vrot.slane %v862, 4
        %v888 = vsel %vm699, %v887, %v860
        %v890 = vunpack.c.l.s4 1983009808
        %v891 = vunpack.c.0.s8 %v890
        %v892 = vperm.slane %v888, %v891
        %v893 = vrot.slane %v892, 4
        %v894 = vsel %vm699, %v893, %v886
        %v896 = vunpack.c.l.s4 1934713408
        %v897 = vunpack.c.0.s8 %v896
        %v898 = vperm.slane %v894, %v897
        %v899 = vrot.slane %v898, 4
        %v900 = vsel %vm699, 0, %v899
        %v903 = vpack.i.b16 %v898, %v879
        %v904 = vshrl.u32 %v879, 16
        %v905 = vshrl.u32 %v898, 16
        %v906 = vpack.i.b16 %v905, %v904
        %v909 = vpack.i.b16 %v900, %v881
        %v910 = vshrl.u32 %v881, 16
        %v911 = vshrl.u32 %v900, 16
        %v912 = vpack.i.b16 %v911, %v910
        %v913 = vld [vmem:[#allocation2] sm:$0xf]
        %v914 = vld [vmem:[#allocation2 + $0x4] sm:$0xf]
        %v915 = vld [vmem:[#allocation2 + $0x8] sm:$0xf]
        %v916 = vld [vmem:[#allocation2 + $0xc] sm:$0xf]
        %vm917 = vcmask 64512
        %v919 = vsel %vm917, %v913, 0
        %v922 = vsel %vm917, %v781, 0
        %924 = vmatpush.bf16.xpose.msra.mxu0 0
        %925 = vmatpush.bf16.xpose.msra.mxu0 0
        %926 = vmatpush.bf16.xpose.msra.mxu0 0
        %927 = vmatpush.bf16.xpose.msra.mxu0 0
        %928 = vmatpush.bf16.xpose.msra.mxu0 0
        %929 = vmatpush.bf16.xpose.msra.mxu0 0
        %930 = vmatpush.bf16.xpose.msra.mxu0 0
        %931 = vmatpush.bf16.xpose.msra.mxu0 %v922
        %932 = vmatmul.bf16.gmra.mxu0 %v919
        %v933 = vpop.f32.mrf.mxu0
        %v934 = vadd.f32 0.0, %v933
        %v935 = vpop.f32.mrf.mxu0
        %936 = vdwg.mxu0
        %v938 = vsel %vm917, %v914, 0
        %v941 = vsel %vm917, %v784, 0
        %943 = vmatpush.bf16.xpose.msra.mxu0 0
        %944 = vmatpush.bf16.xpose.msra.mxu0 0
        %945 = vmatpush.bf16.xpose.msra.mxu0 0
        %946 = vmatpush.bf16.xpose.msra.mxu0 0
        %947 = vmatpush.bf16.xpose.msra.mxu0 0
        %948 = vmatpush.bf16.xpose.msra.mxu0 0
        %949 = vmatpush.bf16.xpose.msra.mxu0 0
        %950 = vmatpush.bf16.xpose.msra.mxu0 %v941
        %951 = vmatmul.bf16.gmra.mxu0 %v938
        %v952 = vpop.f32.mrf.mxu0
        %v953 = vadd.f32 0.0, %v952
        %v954 = vpop.f32.mrf.mxu0
        %955 = vdwg.mxu0
        %v957 = vsel %vm917, %v915, 0
        %v960 = vsel %vm917, %v787, 0
        %962 = vmatpush.bf16.xpose.msra.mxu0 0
        %963 = vmatpush.bf16.xpose.msra.mxu0 0
        %964 = vmatpush.bf16.xpose.msra.mxu0 0
        %965 = vmatpush.bf16.xpose.msra.mxu0 0
        %966 = vmatpush.bf16.xpose.msra.mxu0 0
        %967 = vmatpush.bf16.xpose.msra.mxu0 0
        %968 = vmatpush.bf16.xpose.msra.mxu0 0
        %969 = vmatpush.bf16.xpose.msra.mxu0 %v960
        %970 = vmatmul.bf16.gmra.mxu0 %v957
        %v971 = vpop.f32.mrf.mxu0
        %v972 = vadd.f32 0.0, %v971
        %v973 = vpop.f32.mrf.mxu0
        %974 = vdwg.mxu0
        %v976 = vsel %vm917, %v916, 0
        %v979 = vsel %vm917, %v790, 0
        %981 = vmatpush.bf16.xpose.msra.mxu0 0
        %982 = vmatpush.bf16.xpose.msra.mxu0 0
        %983 = vmatpush.bf16.xpose.msra.mxu0 0
        %984 = vmatpush.bf16.xpose.msra.mxu0 0
        %985 = vmatpush.bf16.xpose.msra.mxu0 0
        %986 = vmatpush.bf16.xpose.msra.mxu0 0
        %987 = vmatpush.bf16.xpose.msra.mxu0 0
        %988 = vmatpush.bf16.xpose.msra.mxu0 %v979
        %989 = vmatmul.bf16.gmra.mxu0 %v976
        %v990 = vpop.f32.mrf.mxu0
        %v991 = vadd.f32 0.0, %v990
        %v992 = vpop.f32.mrf.mxu0
        %993 = vdwg.mxu0
        %v994 = vld [vmem:[%s391] sm:$0x1]
        %v995 = vld [vmem:[#allocation3] sm:$0xff]
        %v996 = vld [vmem:[#allocation3 + $0x8] sm:$0xff]
        %v997 = vld [vmem:[#allocation3 + $0x10] sm:$0xff]
        %v998 = vld [vmem:[#allocation3 + $0x18] sm:$0xff]
        %v999 = vsel %vm917, %v934, -inf
        %1000 = vmax.xlane.f32.xlu0 %v999
        %v1001 = vpop.xlane.xlu0 %1000
        %v1002 = vsel %vm917, %v953, -inf
        %1003 = vmax.xlane.f32.xlu0 %v1002
        %v1004 = vpop.xlane.xlu0 %1003
        %v1005 = vsel %vm917, %v972, -inf
        %1006 = vmax.xlane.f32.xlu0 %v1005
        %v1007 = vpop.xlane.xlu0 %1006
        %v1008 = vsel %vm917, %v991, -inf
        %1009 = vmax.xlane.f32.xlu0 %v1008
        %v1010 = vpop.xlane.xlu0 %1009
        %v1011 = vmax.f32 %v995, %v1001
        %v1012 = vmax.f32 %v996, %v1004
        %v1013 = vmax.f32 %v997, %v1007
        %v1014 = vmax.f32 %v998, %v1010
        %v1015 = vsub.f32 %v995, %v1011
        %v1016 = vsub.f32 %v996, %v1012
        %v1017 = vsub.f32 %v997, %v1013
        %v1018 = vsub.f32 %v998, %v1014
        %v1019 = vmul.f32 %v1015, 1.442695
        %v1020 = vpow.pop %v1019
        %v1021 = vmul.f32 %v1016, 1.442695
        %v1022 = vpow.pop %v1021
        %v1023 = vmul.f32 %v1017, 1.442695
        %v1024 = vpow.pop %v1023
        %v1025 = vmul.f32 %v1018, 1.442695
        %v1026 = vpow.pop %v1025
        %1028 = vset.pattern.permute.xlu0 0
        %1029 = vperm.xlu0 %1028, %v1011
        %v1030 = vpop.permute.xlu0 %1029
        %1033 = vset.pattern.permute.xlu0 0
        %1034 = vperm.xlu0 %1033, %v1012
        %v1035 = vpop.permute.xlu0 %1034
        %1038 = vset.pattern.permute.xlu0 0
        %1039 = vperm.xlu0 %1038, %v1013
        %v1040 = vpop.permute.xlu0 %1039
        %1043 = vset.pattern.permute.xlu0 0
        %1044 = vperm.xlu0 %1043, %v1014
        %v1045 = vpop.permute.xlu0 %1044
        %v1047 = vsub.f32 %v934, %v1030
        %v1048 = vsub.f32 %v953, %v1035
        %v1049 = vsub.f32 %v972, %v1040
        %v1050 = vsub.f32 %v991, %v1045
        %v1051 = vmul.f32 %v1047, 1.442695
        %v1052 = vpow.pop %v1051
        %v1053 = vmul.f32 %v1048, 1.442695
        %v1054 = vpow.pop %v1053
        %v1055 = vmul.f32 %v1049, 1.442695
        %v1056 = vpow.pop %v1055
        %v1057 = vmul.f32 %v1050, 1.442695
        %v1058 = vpow.pop %v1057
        %v1060 = vperm.slane %v994, 0
        %v1062 = vmul.f32 %v1052, %v1060
        %v1063 = vmul.f32 %v1054, %v1060
        %v1064 = vmul.f32 %v1056, %v1060
        %v1065 = vmul.f32 %v1058, %v1060
        %v1066 = vld [vmem:[#allocation4] sm:$0xff]
        %v1067 = vld [vmem:[#allocation4 + $0x8] sm:$0xff]
        %v1068 = vld [vmem:[#allocation4 + $0x10] sm:$0xff]
        %v1069 = vld [vmem:[#allocation4 + $0x18] sm:$0xff]
        %v1070 = vmul.f32 %v1020, %v1066
        %v1071 = vmul.f32 %v1022, %v1067
        %v1072 = vmul.f32 %v1024, %v1068
        %v1073 = vmul.f32 %v1026, %v1069
        %v1074 = vsel %vm917, %v1062, 0.0
        %1075 = vadd.xlane.f32.xlu0 %v1074
        %v1076 = vpop.xlane.xlu0 %1075
        %v1077 = vsel %vm917, %v1063, 0.0
        %1078 = vadd.xlane.f32.xlu0 %v1077
        %v1079 = vpop.xlane.xlu0 %1078
        %v1080 = vsel %vm917, %v1064, 0.0
        %1081 = vadd.xlane.f32.xlu0 %v1080
        %v1082 = vpop.xlane.xlu0 %1081
        %v1083 = vsel %vm917, %v1065, 0.0
        %1084 = vadd.xlane.f32.xlu0 %v1083
        %v1085 = vpop.xlane.xlu0 %1084
        %v1086 = vadd.f32 %v1070, %v1076
        %v1087 = vadd.f32 %v1071, %v1079
        %v1088 = vadd.f32 %v1072, %v1082
        %v1089 = vadd.f32 %v1073, %v1085
        %vm1090 = vcmask 7168
        %1091 = vst.msk [vmem:[#allocation4] sm:$0xff] %vm1090, %v1086
        %1092 = vst.msk [vmem:[#allocation4 + $0x8] sm:$0xff] %vm1090, %v1087
        %1093 = vst.msk [vmem:[#allocation4 + $0x10] sm:$0xff] %vm1090, %v1088
        %1094 = vst.msk [vmem:[#allocation4 + $0x18] sm:$0xff] %vm1090, %v1089
        %v1095 = vld [vmem:[#allocation5] sm:$0xff]
        %v1096 = vld [vmem:[#allocation5 + $0x8] sm:$0xff]
        %v1097 = vld [vmem:[#allocation5 + $0x10] sm:$0xff]
        %v1098 = vld [vmem:[#allocation5 + $0x18] sm:$0xff]
        %1100 = vset.pattern.permute.xlu0 0
        %1101 = vperm.xlu0 %1100, %v1020
        %v1102 = vpop.permute.xlu0 %1101
        %1105 = vset.pattern.permute.xlu0 0
        %1106 = vperm.xlu0 %1105, %v1022
        %v1107 = vpop.permute.xlu0 %1106
        %1110 = vset.pattern.permute.xlu0 0
        %1111 = vperm.xlu0 %1110, %v1024
        %v1112 = vpop.permute.xlu0 %1111
        %1115 = vset.pattern.permute.xlu0 0
        %1116 = vperm.xlu0 %1115, %v1026
        %v1117 = vpop.permute.xlu0 %1116
        %v1119 = vmul.f32 %v1102, %v1095
        %v1120 = vmul.f32 %v1107, %v1096
        %v1121 = vmul.f32 %v1112, %v1097
        %v1122 = vmul.f32 %v1117, %v1098
        %v1123 = vpack.c.bf16 %v1062, %v1062
        %v1124 = vpack.c.bf16 %v1063, %v1063
        %v1125 = vpack.c.bf16 %v1064, %v1064
        %v1126 = vpack.c.bf16 %v1065, %v1065
        %v1128 = vsel %vm917, %v1123, 0
        %vm1130 = vcmask 1043456
        %v1132 = vsel %vm1130, %v903, 0
        %1134 = vmatpush.bf16.msra.mxu0 0
        %1135 = vmatpush.bf16.msra.mxu0 0
        %1136 = vmatpush.bf16.msra.mxu0 0
        %1137 = vmatpush.bf16.msra.mxu0 0
        %1138 = vmatpush.bf16.msra.mxu0 0
        %1139 = vmatpush.bf16.msra.mxu0 0
        %1140 = vmatpush.bf16.msra.mxu0 0
        %1141 = vmatpush.bf16.msra.mxu0 %v1132
        %1142 = vmatmul.bf16.gmra.mxu0 %v1128
        %v1143 = vpop.f32.mrf.mxu0
        %v1144 = vadd.f32 0.0, %v1143
        %v1145 = vpop.f32.mrf.mxu0
        %1146 = vdwg.mxu0
        %v1148 = vsel %vm917, %v1124, 0
        %v1151 = vsel %vm1130, %v906, 0
        %1153 = vmatpush.bf16.msra.mxu0 0
        %1154 = vmatpush.bf16.msra.mxu0 0
        %1155 = vmatpush.bf16.msra.mxu0 0
        %1156 = vmatpush.bf16.msra.mxu0 0
        %1157 = vmatpush.bf16.msra.mxu0 0
        %1158 = vmatpush.bf16.msra.mxu0 0
        %1159 = vmatpush.bf16.msra.mxu0 0
        %1160 = vmatpush.bf16.msra.mxu0 %v1151
        %1161 = vmatmul.bf16.gmra.mxu0 %v1148
        %v1162 = vpop.f32.mrf.mxu0
        %v1163 = vadd.f32 0.0, %v1162
        %v1164 = vpop.f32.mrf.mxu0
        %1165 = vdwg.mxu0
        %v1167 = vsel %vm917, %v1125, 0
        %v1170 = vsel %vm1130, %v909, 0
        %1172 = vmatpush.bf16.msra.mxu0 0
        %1173 = vmatpush.bf16.msra.mxu0 0
        %1174 = vmatpush.bf16.msra.mxu0 0
        %1175 = vmatpush.bf16.msra.mxu0 0
        %1176 = vmatpush.bf16.msra.mxu0 0
        %1177 = vmatpush.bf16.msra.mxu0 0
        %1178 = vmatpush.bf16.msra.mxu0 0
        %1179 = vmatpush.bf16.msra.mxu0 %v1170
        %1180 = vmatmul.bf16.gmra.mxu0 %v1167
        %v1181 = vpop.f32.mrf.mxu0
        %v1182 = vadd.f32 0.0, %v1181
        %v1183 = vpop.f32.mrf.mxu0
        %1184 = vdwg.mxu0
        %v1186 = vsel %vm917, %v1126, 0
        %v1189 = vsel %vm1130, %v912, 0
        %1191 = vmatpush.bf16.msra.mxu0 0
        %1192 = vmatpush.bf16.msra.mxu0 0
        %1193 = vmatpush.bf16.msra.mxu0 0
        %1194 = vmatpush.bf16.msra.mxu0 0
        %1195 = vmatpush.bf16.msra.mxu0 0
        %1196 = vmatpush.bf16.msra.mxu0 0
        %1197 = vmatpush.bf16.msra.mxu0 0
        %1198 = vmatpush.bf16.msra.mxu0 %v1189
        %1199 = vmatmul.bf16.gmra.mxu0 %v1186
        %v1200 = vpop.f32.mrf.mxu0
        %v1201 = vadd.f32 0.0, %v1200
        %v1202 = vpop.f32.mrf.mxu0
        %1203 = vdwg.mxu0
        %v1204 = vadd.f32 %v1119, %v1144
        %v1205 = vadd.f32 %v1120, %v1163
        %v1206 = vadd.f32 %v1121, %v1182
        %v1207 = vadd.f32 %v1122, %v1201
        %1208 = vst.msk [vmem:[#allocation5] sm:$0xff] %vm917, %v1204
        %1209 = vst.msk [vmem:[#allocation5 + $0x8] sm:$0xff] %vm917, %v1205
        %1210 = vst.msk [vmem:[#allocation5 + $0x10] sm:$0xff] %vm917, %v1206
        %1211 = vst.msk [vmem:[#allocation5 + $0x18] sm:$0xff] %vm917, %v1207
        %1212 = vst.msk [vmem:[#allocation3] sm:$0xff] %vm1090, %v1011
        %1213 = vst.msk [vmem:[#allocation3 + $0x8] sm:$0xff] %vm1090, %v1012
        %1214 = vst.msk [vmem:[#allocation3 + $0x10] sm:$0xff] %vm1090, %v1013
        %1215 = vst.msk [vmem:[#allocation3 + $0x18] sm:$0xff] %vm1090, %v1014
        // Predicated region
        $region77: #{tpu_custom_call.1} parent=47 // pred_check
          %p1216 = pneg %p448
        $region78: #{tpu_custom_call.1} parent=47 // pred_check_branch
          %1218 = sbr.rel (%p1216) target = $region80
        $region79: #{tpu_custom_call.1} parent=47 // pred_region
          %v1219 = vld [vmem:[#allocation5] sm:$0xff]
          %v1220 = vld [vmem:[#allocation5 + $0x8] sm:$0xff]
          %v1221 = vld [vmem:[#allocation5 + $0x10] sm:$0xff]
          %v1222 = vld [vmem:[#allocation5 + $0x18] sm:$0xff]
          %v1223 = vld [vmem:[#allocation4] sm:$0xff]
          %v1224 = vld [vmem:[#allocation4 + $0x8] sm:$0xff]
          %v1225 = vld [vmem:[#allocation4 + $0x10] sm:$0xff]
          %v1226 = vld [vmem:[#allocation4 + $0x18] sm:$0xff]
          %v1227 = vrcp.pop %v1223
          %v1228 = vrcp.pop %v1224
          %v1229 = vrcp.pop %v1225
          %v1230 = vrcp.pop %v1226
          %1232 = vset.pattern.permute.xlu0 0
          %1233 = vperm.xlu0 %1232, %v1227
          %v1234 = vpop.permute.xlu0 %1233
          %1237 = vset.pattern.permute.xlu0 0
          %1238 = vperm.xlu0 %1237, %v1228
          %v1239 = vpop.permute.xlu0 %1238
          %1242 = vset.pattern.permute.xlu0 0
          %1243 = vperm.xlu0 %1242, %v1229
          %v1244 = vpop.permute.xlu0 %1243
          %1247 = vset.pattern.permute.xlu0 0
          %1248 = vperm.xlu0 %1247, %v1230
          %v1249 = vpop.permute.xlu0 %1248
          %v1251 = vmul.f32 %v1219, %v1234
          %v1252 = vmul.f32 %v1220, %v1239
          %v1253 = vmul.f32 %v1221, %v1244
          %v1254 = vmul.f32 %v1222, %v1249
          %v1255 = vpack.c.bf16 %v1251, %v1251
          %v1256 = vpack.c.bf16 %v1252, %v1252
          %v1257 = vpack.c.bf16 %v1253, %v1253
          %v1258 = vpack.c.bf16 %v1254, %v1254
          %v1261 = vpack.i.b16 %v1256, %v1255
          %v1262 = vshrl.u32 %v1255, 16
          %v1263 = vshrl.u32 %v1256, 16
          %v1264 = vpack.i.b16 %v1263, %v1262
          %v1267 = vpack.i.b16 %v1258, %v1257
          %v1268 = vshrl.u32 %v1257, 16
          %v1269 = vshrl.u32 %v1258, 16
          %v1270 = vpack.i.b16 %v1269, %v1268
          %v1273 = vunpack.c.l.s4 1983009808
          %v1274 = vunpack.c.0.s8 %v1273
          %v1275 = vperm.slane %v1261, %v1274
          %v1278 = vunpack.c.l.s4 1983009808
          %v1279 = vunpack.c.0.s8 %v1278
          %v1280 = vperm.slane %v1267, %v1279
          %v1281 = vrot.slane %v1280, 4
          %v1282 = vsel %vm699, %v1281, %v1275
          %v1283 = vrot.slane %v1275, 4
          %v1284 = vsel %vm699, %v1280, %v1283
          %v1286 = vunpack.c.l.s4 1934713408
          %v1287 = vunpack.c.0.s8 %v1286
          %v1288 = vperm.slane %v1282, %v1287
          %v1290 = vunpack.c.l.s4 1934713408
          %v1291 = vunpack.c.0.s8 %v1290
          %v1292 = vperm.slane %v1284, %v1291
          %v1293 = vrot.slane %v1288, 4
          %v1294 = vsel %vm699, 0, %v1293
          %v1295 = vrot.slane %v1292, 4
          %v1296 = vsel %vm699, 0, %v1295
          %v1299 = vunpack.c.l.s4 1983009808
          %v1300 = vunpack.c.0.s8 %v1299
          %v1301 = vperm.slane %v1264, %v1300
          %v1304 = vunpack.c.l.s4 1983009808
          %v1305 = vunpack.c.0.s8 %v1304
          %v1306 = vperm.slane %v1270, %v1305
          %v1307 = vrot.slane %v1306, 4
          %v1308 = vsel %vm699, %v1307, %v1301
          %v1309 = vrot.slane %v1301, 4
          %v1310 = vsel %vm699, %v1306, %v1309
          %v1312 = vunpack.c.l.s4 1934713408
          %v1313 = vunpack.c.0.s8 %v1312
          %v1314 = vperm.slane %v1308, %v1313
          %v1316 = vunpack.c.l.s4 1934713408
          %v1317 = vunpack.c.0.s8 %v1316
          %v1318 = vperm.slane %v1310, %v1317
          %v1319 = vrot.slane %v1314, 4
          %v1320 = vsel %vm699, 0, %v1319
          %v1321 = vrot.slane %v1318, 4
          %v1322 = vsel %vm699, 0, %v1321
          %v1323 = vsel %vm699, %v1295, %v1288
          %v1325 = vunpack.c.l.s4 1983009808
          %v1326 = vunpack.c.0.s8 %v1325
          %v1327 = vperm.slane %v1323, %v1326
          %v1328 = vrot.slane %v1296, 4
          %v1329 = vsel %vm699, %v1328, %v1294
          %v1331 = vunpack.c.l.s4 1983009808
          %v1332 = vunpack.c.0.s8 %v1331
          %v1333 = vperm.slane %v1329, %v1332
          %v1334 = vrot.slane %v1333, 4
          %v1335 = vsel %vm699, %v1334, %v1327
          %v1337 = vunpack.c.l.s4 1934713408
          %v1338 = vunpack.c.0.s8 %v1337
          %v1339 = vperm.slane %v1335, %v1338
          %v1340 = vrot.slane %v1339, 4
          %v1341 = vsel %vm699, 0, %v1340
          %v1342 = vsel %vm699, %v1321, %v1314
          %v1344 = vunpack.c.l.s4 1983009808
          %v1345 = vunpack.c.0.s8 %v1344
          %v1346 = vperm.slane %v1342, %v1345
          %v1347 = vrot.slane %v1322, 4
          %v1348 = vsel %vm699, %v1347, %v1320
          %v1350 = vunpack.c.l.s4 1983009808
          %v1351 = vunpack.c.0.s8 %v1350
          %v1352 = vperm.slane %v1348, %v1351
          %v1353 = vrot.slane %v1352, 4
          %v1354 = vsel %vm699, %v1353, %v1346
          %v1356 = vunpack.c.l.s4 1934713408
          %v1357 = vunpack.c.0.s8 %v1356
          %v1358 = vperm.slane %v1354, %v1357
          %v1359 = vrot.slane %v1358, 4
          %v1360 = vsel %vm699, 0, %v1359
          %v1363 = vpack.i.b16 %v1358, %v1339
          %v1364 = vshrl.u32 %v1339, 16
          %v1365 = vshrl.u32 %v1358, 16
          %v1366 = vpack.i.b16 %v1365, %v1364
          %v1369 = vpack.i.b16 %v1360, %v1341
          %v1370 = vshrl.u32 %v1341, 16
          %v1371 = vshrl.u32 %v1360, 16
          %v1372 = vpack.i.b16 %v1371, %v1370
          %v1373 = vunpack.c.l.b16 %v1366
          %v1374 = vpack.c.b16 %v1373, %v1373
          %1375 = vrot.lane.b32.xlu0 %v1374, 8
          %v1376 = vpop.permute.xlu0 %1375
          %v1377 = vunpack.c.l.b16 %v1369
          %v1378 = vpack.c.b16 %v1377, %v1377
          %1379 = vrot.lane.b32.xlu0 %v1378, 16
          %v1380 = vpop.permute.xlu0 %1379
          %v1381 = vunpack.c.l.b16 %v1372
          %v1382 = vpack.c.b16 %v1381, %v1381
          %1383 = vrot.lane.b32.xlu0 %v1382, 24
          %v1384 = vpop.permute.xlu0 %1383
          %v1387 = vsel %vm917, %v1363, %v1376
          %vm1388 = vcmask 130048
          %v1390 = vsel %vm1388, %v1387, %v1380
          %vm1391 = vcmask 195584
          %v1393 = vsel %vm1391, %v1390, %v1384
          %v1394 = vld [vmem:[#allocation15] sm:$0xf]
          %v1395 = vld [vmem:[#allocation15 + $0x4] sm:$0xf]
          %v1396 = vld [vmem:[#allocation15 + $0x8] sm:$0xf]
          %v1397 = vld [vmem:[#allocation15 + $0xc] sm:$0xf]
          %v1398 = vld [vmem:[%s6] sm:$0x1]
          %v1400 = vperm.slane %v1398, 0
          %v1406 = vunpack.c.l.b16 %v1394
          %v1407 = vunpack.c.l.b16 %v1395
          %v1408 = vunpack.c.l.b16 %v1396
          %v1409 = vunpack.c.l.b16 %v1397
          %v1410 = vpack.c.b16 %v1407, %v1406
          %v1411 = vpack.c.b16 %v1409, %v1408
          %v1414 = vsel %vm651, %v1393, 0
          %1416 = vmatpush.bf16.msra.mxu0 0
          %1417 = vmatpush.bf16.msra.mxu0 0
          %1418 = vmatpush.bf16.msra.mxu0 0
          %1419 = vmatpush.bf16.msra.mxu0 0
          %1420 = vmatpush.bf16.msra.mxu0 0
          %1421 = vmatpush.bf16.msra.mxu0 0
          %1422 = vmatpush.bf16.msra.mxu0 %v1411
          %1423 = vmatpush.bf16.msra.mxu0 %v1410
          %1424 = vmatmul.bf16.gmra.mxu0 %v1414
          %v1425 = vpop.f32.mrf.mxu0
          %v1426 = vadd.f32 %v1400, %v1425
          %v1427 = vpop.f32.mrf.mxu0
          %1428 = vdwg.mxu0
          %1429 = vst.msk [vmem:[%s446] sm:$0xff] %vm651, %v1426
        $region80: #{tpu_custom_call.1} parent=47 // pred_fallthru
          _
        %s1430 = sand.u32 %s226, 1
        %s1431 = scalar_lea.sflag [#allocation8], %s1430
        %s1432 = sand.u32 %s226, 1
        %s1433 = smul.addr %s1432, 8
        %s1434 = scalar_lea.vmem [#allocation17], %s1433
        // Predicated region
        $region81: #{tpu_custom_call.1} parent=47 // pred_check
          %p1435 = pneg %p236
        $region82: #{tpu_custom_call.1} parent=47 // pred_check_branch
          %1437 = sbr.rel (%p1435) target = $region84
        $region83: #{tpu_custom_call.1} parent=47 // pred_region
          %1439 = vsyncadd %s1431, 0
          %s1440 = sadd.s32 %s35, %s34
          %s1441 = smul.addr %s1440, 8
          %s1442 = scalar_lea.hbm %s7, %s1441
          %s1444 = sshll.u32 %s1434, 4
          %s1445 = int_to_ptr.vmem [resolvable:$true] %s1444
          %s1446 = sshll.u32 %s1442, 4
          %s1447 = int_to_ptr.hbm [resolvable:$true] %s1446
          %1449 = dma.vmem_to_hbm [thread:$0]  %s1445, 128, %s1447, %s1431
        $region84: #{tpu_custom_call.1} parent=47 // pred_fallthru
          _
      $region48: #{tpu_custom_call.1} parent=5 // pred_fallthru
        _
      %p1450 = scmp.le.s32.totalorder 2, %s24
      // Predicated region
      $region85: #{tpu_custom_call.1} parent=5 // pred_check
        %p1451 = pneg %p1450
      $region86: #{tpu_custom_call.1} parent=5 // pred_check_branch
        %1453 = sbr.rel (%p1451) target = $region88
      $region87: #{tpu_custom_call.1} parent=5 // pred_region
        %s1454 = ssub.s32 %s24, 2
        // Predicated region
        $region89: #{tpu_custom_call.1} parent=87 // pred_check
          %p1455 = pneg %p242
        $region90: #{tpu_custom_call.1} parent=87 // pred_check_branch
          %1457 = sbr.rel (%p1455) target = $region92
        $region91: #{tpu_custom_call.1} parent=87 // pred_region
          %s1458 = sand.u32 %s227, 1
          %s1459 = scalar_lea.sflag [#allocation8], %s1458
          %s1460 = sand.u32 %s227, 1
          %s1461 = smul.addr %s1460, 8
          %s1462 = scalar_lea.vmem [#allocation17], %s1461
          %1464 = dma.done %s1459, 128
        $region92: #{tpu_custom_call.1} parent=87 // pred_fallthru
          _
      $region88: #{tpu_custom_call.1} parent=5 // pred_fallthru
        _
    $region6: #{tpu_custom_call.1} parent=1 // loop_footer
      %s28 = sadd.s32 1, %s24
    $region7: #{tpu_custom_call.1} parent=1 // loop_footer_branch
      %23 = sbr.rel target = $region3
    $region8: #{tpu_custom_call.1} parent=1 // loop_exit
      _
    %1465 = vsyncpa [#allocation7], 1
    %s1466 = scalar_lea.sflag [#allocation7], 1
    %1467 = vsyncpa %s1466, 1
    %1468 = vsyncpa [#allocation10], 1
    %s1469 = scalar_lea.sflag [#allocation10], 1
    %1470 = vsyncpa %s1469, 1
    %1471 = vsyncpa [#allocation13], 1
    %1472 = vsyncpa [#allocation16], 1
    %1473 = vsyncpa [#allocation8], 1
    %s1474 = scalar_lea.sflag [#allocation8], 1
    %1475 = vsyncpa %s1474, 1

// kernel: tpu_custom_call.1
$region0: #{tpu_custom_call.1}
  #allocation0 [shape = 'u32[]', space=smem, size = 0x4, offset = 0x4, fixed_abs, tag = 'smem constant byte address 0x4 - core index']
  #allocation1 [shape = 'u32[72,128]{1,0:T(1,128)}', space=vmem, size = 0x9000, scoped, tag = 'internal scratch']
  #allocation2 [shape = 'bf16[4,8,8]{2,1,0:T(8,128)(2,1)}', space=vmem, size = 0x2000, scoped, tag = 'scratch operand']
  #allocation3 [shape = 'f32[4,8,1]{2,1,0:T(8,128)}', space=vmem, size = 0x4000, scoped, tag = 'scratch operand']
  #allocation4 [shape = 'f32[4,8,1]{2,1,0:T(8,128)}', space=vmem, size = 0x4000, scoped, tag = 'scratch operand']
  #allocation5 [shape = 'f32[4,8,8]{2,1,0:T(8,128)}', space=vmem, size = 0x4000, scoped, tag = 'scratch operand']
  %s0 = inlined_call_operand.hbm [shape: f32[2,8,32], index: 0, kind: input, shape index: {}]
  %s1 = inlined_call_operand.hbm [shape: f32[2,8,32], index: 1, kind: input, shape index: {}]
  %s2 = inlined_call_operand.hbm [shape: f32[2,1,8], index: 2, kind: input, shape index: {}]
  %s3 = inlined_call_operand.hbm [shape: bf16[32,32], index: 3, kind: input, shape index: {}]
  %s4 = inlined_call_operand.hbm [shape: bf16[32,64], index: 4, kind: input, shape index: {}]
  %s5 = inlined_call_operand.hbm [shape: bf16[32,32], index: 5, kind: input, shape index: {}]
  %s6 = inlined_call_operand.vmem [shape: f32[1,32], index: 6, kind: input, shape index: {}]
  %s7 = inlined_call_operand.hbm [shape: f32[2,8,32], index: 7, kind: output, shape index: {}]
  %s8 = sld [smem:[#allocation0]]
  $region93: #{tpu_custom_call.1} parent=0
    _
  %s10 = ssub.s32 1, %s8
  %s11 = scalar_select 0, %s10, %s8
  $region1: #{tpu_custom_call.1} parent=0
    #allocation6 [shape = 'u8[8192]{0}', space=vmem, size = 0x2000, scoped, tag = 'input window, operand 0']
    #allocation7 [shape = 's32[2]{0}', space=sflag, size = 0x8, scoped, tag = 'scoped memory for tpu_custom_call.1']
    #allocation8 [shape = 's32[2]{0}', space=sflag, size = 0x8, scoped, tag = 'scoped memory for tpu_custom_call.1']
    #allocation9 [shape = 'u8[8192]{0}', space=vmem, size = 0x2000, scoped, tag = 'input window, operand 1']
    #allocation10 [shape = 's32[2]{0}', space=sflag, size = 0x8, scoped, tag = 'scoped memory for tpu_custom_call.1']
    #allocation11 [shape = 'u8[1024]{0}', space=vmem, size = 0x400, scoped, tag = 'input window, operand 2']
    #allocation12 [shape = 'u8[8192]{0}', space=vmem, size = 0x2000, scoped, tag = 'input window, operand 3, single buffered']
    #allocation13 [shape = 's32[1]{0}', space=sflag, size = 0x4, scoped, tag = 'scoped memory for tpu_custom_call.1']
    #allocation14 [shape = 'u8[8192]{0}', space=vmem, size = 0x2000, scoped, tag = 'input window, operand 4, single buffered']
    #allocation15 [shape = 'u8[8192]{0}', space=vmem, size = 0x2000, scoped, tag = 'input window, operand 5, single buffered']
    #allocation16 [shape = 's32[1]{0}', space=sflag, size = 0x4, scoped, tag = 'scoped memory for tpu_custom_call.1']
    #allocation17 [shape = 'u8[8192]{0}', space=vmem, size = 0x2000, scoped, tag = 'output window, operand 0']
    %12 = vsyncpa [#allocation7], 0
    %s13 = scalar_lea.sflag [#allocation7], 1
    %14 = vsyncpa %s13, 0
    %15 = vsyncpa [#allocation10], 0
    %s16 = scalar_lea.sflag [#allocation10], 1
    %17 = vsyncpa %s16, 0
    %18 = vsyncpa [#allocation13], 0
    %19 = vsyncpa [#allocation16], 0
    %20 = vsyncpa [#allocation8], 0
    %s21 = scalar_lea.sflag [#allocation8], 1
    %22 = vsyncpa %s21, 0
    loop: start=0, step=1, limit=4
    $region2: #{tpu_custom_call.1} parent=1 // loop_pre_header
      _
    $region3: #{tpu_custom_call.1} parent=1 // loop_header
      %s24 = sphi 0, %s28
      %p25 = scmp.ge.s32.totalorder %s24, 4
      %s31 = sphi 0, %s50
      %s32 = sphi 0, %s46
      %s33 = sphi 0, %s42
      %s34 = sphi 0, %s31
      %s35 = sphi 0, %s32
      %s36 = sphi 0, %s33
      %s37 = sphi 0, %s34
      %s38 = sphi 0, %s35
      %s39 = sphi 0, %s36
      %s55 = sphi 0, %s57
      %s58 = sphi 0, %s55
      %s59 = sphi 0, %s58
      %s75 = sphi 0, %s59
      %s83 = sphi 0, %s85
      %s86 = sphi 0, %s83
      %s87 = sphi 0, %s86
      %s103 = sphi 0, %s87
      %s111 = sphi 0, %s113
      %s114 = sphi 0, %s111
      %s115 = sphi 0, %s114
      %s131 = sphi 0, %s115
      %s135 = sphi 0, %s135
      %s137 = sphi 0, %s135
      %s138 = sphi 0, %s137
      %s152 = sphi 0, %s138
      %s156 = sphi 0, %s156
      %s158 = sphi 0, %s156
      %s159 = sphi 0, %s158
      %s173 = sphi 0, %s159
      %s177 = sphi 0, %s177
      %s179 = sphi 0, %s177
      %s180 = sphi 0, %s179
      %s194 = sphi 0, %s180
      %s198 = sphi 0, %s198
      %s200 = sphi 0, %s198
      %s201 = sphi 0, %s200
      %s215 = sphi 0, %s201
      %s223 = sphi 0, %s225
      %s226 = sphi 0, %s223
      %s227 = sphi 0, %s226
      %s243 = sphi 0, %s227
    $region4: #{tpu_custom_call.1} parent=1 // loop_header_branch
      %27 = sbr.rel (%p25) target = $region8
    $region5: #{tpu_custom_call.1} parent=1 // loop_body
      %s29 = ssub.s32 %s24, 1
      %s30 = ssub.s32 %s24, 2
      %s40 = sadd.s32 1, %s33
      %p41 = scmp.ge.s32.totalorder %s40, 1
      %s42 = scalar_select %p41, 0, %s40
      %s43 = sadd.s32 1, %s32
      %s44 = scalar_select %p41, %s43, %s32
      %p45 = scmp.ge.s32.totalorder %s44, 1
      %s46 = scalar_select %p45, 0, %s44
      %s47 = sadd.s32 1, %s31
      %s48 = scalar_select %p45, %s47, %s31
      %p49 = scmp.ge.s32.totalorder %s48, 2
      %s50 = scalar_select %p49, 0, %s48
      %s51 = ssub.s32 %s31, %s50
      %s52 = ssub.s32 %s32, %s46
      %s53 = sor.u32 %s51, %s52
      %p54 = scmp.eq.s32.totalorder %s53, 0
      %s56 = sadd.s32 %s55, 1
      %s57 = scalar_select %p54, %s55, %s56
      %p60 = pneg %p54
      %p61 = scmp.eq.s32.totalorder %s24, 1
      %p62 = por %p60, %p61
      %p63 = scmp.ne.s32.totalorder %s55, %s58
      %p64 = scmp.eq.s32.totalorder %s24, 0
      %p65 = por %p63, %p64
      %p66 = scmp.ne.s32.totalorder %s55, %s58
      %p67 = scmp.eq.s32.totalorder %s29, 1
      %p68 = por %p66, %p67
      %p69 = scmp.ne.s32.totalorder %s58, %s59
      %p70 = scmp.eq.s32.totalorder %s29, 0
      %p71 = por %p69, %p70
      %p72 = scmp.ne.s32.totalorder %s58, %s59
      %p73 = scmp.eq.s32.totalorder %s30, 1
      %p74 = por %p72, %p73
      %p76 = scmp.ne.s32.totalorder %s59, %s75
      %p77 = scmp.eq.s32.totalorder %s30, 0
      %p78 = por %p76, %p77
      %s79 = ssub.s32 %s31, %s50
      %s80 = ssub.s32 %s33, %s42
      %s81 = sor.u32 %s79, %s80
      %p82 = scmp.eq.s32.totalorder %s81, 0
      %s84 = sadd.s32 %s83, 1
      %s85 = scalar_select %p82, %s83, %s84
      %p88 = pneg %p82
      %p89 = scmp.eq.s32.totalorder %s24, 1
      %p90 = por %p88, %p89
      %p91 = scmp.ne.s32.totalorder %s83, %s86
      %p92 = scmp.eq.s32.totalorder %s24, 0
      %p93 = por %p91, %p92
      %p94 = scmp.ne.s32.totalorder %s83, %s86
      %p95 = scmp.eq.s32.totalorder %s29, 1
      %p96 = por %p94, %p95
      %p97 = scmp.ne.s32.totalorder %s86, %s87
      %p98 = scmp.eq.s32.totalorder %s29, 0
      %p99 = por %p97, %p98
      %p100 = scmp.ne.s32.totalorder %s86, %s87
      %p101 = scmp.eq.s32.totalorder %s30, 1
      %p102 = por %p100, %p101
      %p104 = scmp.ne.s32.totalorder %s87, %s103
      %p105 = scmp.eq.s32.totalorder %s30, 0
      %p106 = por %p104, %p105
      %s107 = ssub.s32 %s31, %s50
      %s108 = ssub.s32 %s33, %s42
      %s109 = sor.u32 %s107, %s108
      %p110 = scmp.eq.s32.totalorder %s109, 0
      %s112 = sadd.s32 %s111, 1
      %s113 = scalar_select %p110, %s111, %s112
      %p116 = pneg %p110
      %p117 = scmp.eq.s32.totalorder %s24, 1
      %p118 = por %p116, %p117
      %p119 = scmp.ne.s32.totalorder %s111, %s114
      %p120 = scmp.eq.s32.totalorder %s24, 0
      %p121 = por %p119, %p120
      %p122 = scmp.ne.s32.totalorder %s111, %s114
      %p123 = scmp.eq.s32.totalorder %s29, 1
      %p124 = por %p122, %p123
      %p125 = scmp.ne.s32.totalorder %s114, %s115
      %p126 = scmp.eq.s32.totalorder %s29, 0
      %p127 = por %p125, %p126
      %p128 = scmp.ne.s32.totalorder %s114, %s115
      %p129 = scmp.eq.s32.totalorder %s30, 1
      %p130 = por %p128, %p129
      %p132 = scmp.ne.s32.totalorder %s115, %s131
      %p133 = scmp.eq.s32.totalorder %s30, 0
      %p134 = por %p132, %p133
      %s136 = sadd.s32 %s135, 1
      %p139 = scmp.eq.s32.totalorder %s24, 1
      %p140 = scmp.ne.s32.totalorder %s135, %s137
      %p141 = scmp.eq.s32.totalorder %s24, 0
      %p142 = por %p140, %p141
      %p143 = scmp.ne.s32.totalorder %s135, %s137
      %p144 = scmp.eq.s32.totalorder %s29, 1
      %p145 = por %p143, %p144
      %p146 = scmp.ne.s32.totalorder %s137, %s138
      %p147 = scmp.eq.s32.totalorder %s29, 0
      %p148 = por %p146, %p147
      %p149 = scmp.ne.s32.totalorder %s137, %s138
      %p150 = scmp.eq.s32.totalorder %s30, 1
      %p151 = por %p149, %p150
      %p153 = scmp.ne.s32.totalorder %s138, %s152
      %p154 = scmp.eq.s32.totalorder %s30, 0
      %p155 = por %p153, %p154
      %s157 = sadd.s32 %s156, 1
      %p160 = scmp.eq.s32.totalorder %s24, 1
      %p161 = scmp.ne.s32.totalorder %s156, %s158
      %p162 = scmp.eq.s32.totalorder %s24, 0
      %p163 = por %p161, %p162
      %p164 = scmp.ne.s32.totalorder %s156, %s158
      %p165 = scmp.eq.s32.totalorder %s29, 1
      %p166 = por %p164, %p165
      %p167 = scmp.ne.s32.totalorder %s158, %s159
      %p168 = scmp.eq.s32.totalorder %s29, 0
      %p169 = por %p167, %p168
      %p170 = scmp.ne.s32.totalorder %s158, %s159
      %p171 = scmp.eq.s32.totalorder %s30, 1
      %p172 = por %p170, %p171
      %p174 = scmp.ne.s32.totalorder %s159, %s173
      %p175 = scmp.eq.s32.totalorder %s30, 0
      %p176 = por %p174, %p175
      %s178 = sadd.s32 %s177, 1
      %p181 = scmp.eq.s32.totalorder %s24, 1
      %p182 = scmp.ne.s32.totalorder %s177, %s179
      %p183 = scmp.eq.s32.totalorder %s24, 0
      %p184 = por %p182, %p183
      %p185 = scmp.ne.s32.totalorder %s177, %s179
      %p186 = scmp.eq.s32.totalorder %s29, 1
      %p187 = por %p185, %p186
      %p188 = scmp.ne.s32.totalorder %s179, %s180
      %p189 = scmp.eq.s32.totalorder %s29, 0
      %p190 = por %p188, %p189
      %p191 = scmp.ne.s32.totalorder %s179, %s180
      %p192 = scmp.eq.s32.totalorder %s30, 1
      %p193 = por %p191, %p192
      %p195 = scmp.ne.s32.totalorder %s180, %s194
      %p196 = scmp.eq.s32.totalorder %s30, 0
      %p197 = por %p195, %p196
      %s199 = sadd.s32 %s198, 1
      %p202 = scmp.eq.s32.totalorder %s24, 1
      %p203 = scmp.ne.s32.totalorder %s198, %s200
      %p204 = scmp.eq.s32.totalorder %s24, 0
      %p205 = por %p203, %p204
      %p206 = scmp.ne.s32.totalorder %s198, %s200
      %p207 = scmp.eq.s32.totalorder %s29, 1
      %p208 = por %p206, %p207
      %p209 = scmp.ne.s32.totalorder %s200, %s201
      %p210 = scmp.eq.s32.totalorder %s29, 0
      %p211 = por %p209, %p210
      %p212 = scmp.ne.s32.totalorder %s200, %s201
      %p213 = scmp.eq.s32.totalorder %s30, 1
      %p214 = por %p212, %p213
      %p216 = scmp.ne.s32.totalorder %s201, %s215
      %p217 = scmp.eq.s32.totalorder %s30, 0
      %p218 = por %p216, %p217
      %s219 = ssub.s32 %s31, %s50
      %s220 = ssub.s32 %s32, %s46
      %s221 = sor.u32 %s219, %s220
      %p222 = scmp.eq.s32.totalorder %s221, 0
      %s224 = sadd.s32 %s223, 1
      %s225 = scalar_select %p222, %s223, %s224
      %p228 = pneg %p222
      %p229 = scmp.eq.s32.totalorder %s24, 1
      %p230 = por %p228, %p229
      %p231 = scmp.ne.s32.totalorder %s223, %s226
      %p232 = scmp.eq.s32.totalorder %s24, 0
      %p233 = por %p231, %p232
      %p234 = scmp.ne.s32.totalorder %s223, %s226
      %p235 = scmp.eq.s32.totalorder %s29, 1
      %p236 = por %p234, %p235
      %p237 = scmp.ne.s32.totalorder %s226, %s227
      %p238 = scmp.eq.s32.totalorder %s29, 0
      %p239 = por %p237, %p238
      %p240 = scmp.ne.s32.totalorder %s226, %s227
      %p241 = scmp.eq.s32.totalorder %s30, 1
      %p242 = por %p240, %p241
      %p244 = scmp.ne.s32.totalorder %s227, %s243
      %p245 = scmp.eq.s32.totalorder %s30, 0
      %p246 = por %p244, %p245
      %p247 = scmp.le.s32.totalorder 1, %s24
      %p248 = scmp.lt.s32.totalorder %s24, 3
      %p249 = pnand %p247, %p248
      %p250 = pneg %p249
      // Predicated region
      $region9: #{tpu_custom_call.1} parent=5 // pred_check
        _
      $region10: #{tpu_custom_call.1} parent=5 // pred_check_branch
        %252 = sbr.rel (%p249) target = $region12
      $region11: #{tpu_custom_call.1} parent=5 // pred_region
        %s253 = ssub.s32 %s24, 1
        // Predicated region
        $region13: #{tpu_custom_call.1} parent=11 // pred_check
          %p254 = pneg %p148
        $region14: #{tpu_custom_call.1} parent=11 // pred_check_branch
          %256 = sbr.rel (%p254) target = $region16
        $region15: #{tpu_custom_call.1} parent=11 // pred_region
          %258 = vsyncadd [#allocation13], 0
          %s259 = sshll.u32 %s3, 4
          %s260 = int_to_ptr.hbm [resolvable:$true] %s259
          %s261 = sshll.u32 [#allocation12], 4
          %s262 = int_to_ptr.vmem [resolvable:$true] %s261
          %267 = dma.hbm_to_vmem [thread:$0]  %s260, 256, %s262, [#allocation13], 64, 64, 4
        $region16: #{tpu_custom_call.1} parent=11 // pred_fallthru
          _
        // Predicated region
        $region17: #{tpu_custom_call.1} parent=11 // pred_check
          %p268 = pneg %p169
        $region18: #{tpu_custom_call.1} parent=11 // pred_check_branch
          %270 = sbr.rel (%p268) target = $region20
        $region19: #{tpu_custom_call.1} parent=11 // pred_region
          %272 = vsyncadd [#allocation13], 0
          %s273 = sshll.u32 %s4, 4
          %s274 = int_to_ptr.hbm [resolvable:$true] %s273
          %s275 = sshll.u32 [#allocation14], 4
          %s276 = int_to_ptr.vmem [resolvable:$true] %s275
          %281 = dma.hbm_to_vmem [thread:$0]  %s274, 256, %s276, [#allocation13], 64, 64, 4
        $region20: #{tpu_custom_call.1} parent=11 // pred_fallthru
          _
        // Predicated region
        $region21: #{tpu_custom_call.1} parent=11 // pred_check
          %p282 = pneg %p190
        $region22: #{tpu_custom_call.1} parent=11 // pred_check_branch
          %284 = sbr.rel (%p282) target = $region24
        $region23: #{tpu_custom_call.1} parent=11 // pred_region
          %286 = vsyncadd [#allocation16], 0
          %s287 = sshll.u32 %s5, 4
          %s288 = int_to_ptr.hbm [resolvable:$true] %s287
          %s289 = sshll.u32 [#allocation15], 4
          %s290 = int_to_ptr.vmem [resolvable:$true] %s289
          %295 = dma.hbm_to_vmem [thread:$0]  %s288, 256, %s290, [#allocation16], 64, 64, 4
        $region24: #{tpu_custom_call.1} parent=11 // pred_fallthru
          _
        // Predicated region
        $region25: #{tpu_custom_call.1} parent=11 // pred_check
          %p296 = pneg %p211
        $region26: #{tpu_custom_call.1} parent=11 // pred_check_branch
          %298 = sbr.rel (%p296) target = $region28
        $region27: #{tpu_custom_call.1} parent=11 // pred_region
          _
        $region28: #{tpu_custom_call.1} parent=11 // pred_fallthru
          _
      $region12: #{tpu_custom_call.1} parent=5 // pred_fallthru
        _
      %p299 = scmp.lt.s32.totalorder %s24, 2
      // Predicated region
      $region29: #{tpu_custom_call.1} parent=5 // pred_check
        %p300 = pneg %p299
      $region30: #{tpu_custom_call.1} parent=5 // pred_check_branch
        %302 = sbr.rel (%p300) target = $region32
      $region31: #{tpu_custom_call.1} parent=5 // pred_region
        // Predicated region
        $region33: #{tpu_custom_call.1} parent=31 // pred_check
          %p303 = pneg %p65
        $region34: #{tpu_custom_call.1} parent=31 // pred_check_branch
          %305 = sbr.rel (%p303) target = $region36
        $region35: #{tpu_custom_call.1} parent=31 // pred_region
          %s306 = sand.u32 %s55, 1
          %s307 = scalar_lea.sflag [#allocation7], %s306
          %s308 = sand.u32 %s55, 1
          %s309 = smul.addr %s308, 8
          %s310 = scalar_lea.vmem [#allocation6], %s309
          %312 = vsyncadd %s307, 0
          %s313 = sadd.s32 %s32, %s31
          %s314 = smul.addr %s313, 8
          %s315 = scalar_lea.hbm %s0, %s314
          %s317 = sshll.u32 %s315, 4
          %s318 = int_to_ptr.hbm [resolvable:$true] %s317
          %s319 = sshll.u32 %s310, 4
          %s320 = int_to_ptr.vmem [resolvable:$true] %s319
          %322 = dma.hbm_to_vmem [thread:$0]  %s318, 128, %s320, %s307
        $region36: #{tpu_custom_call.1} parent=31 // pred_fallthru
          _
        // Predicated region
        $region37: #{tpu_custom_call.1} parent=31 // pred_check
          %p323 = pneg %p93
        $region38: #{tpu_custom_call.1} parent=31 // pred_check_branch
          %325 = sbr.rel (%p323) target = $region40
        $region39: #{tpu_custom_call.1} parent=31 // pred_region
          %s326 = sand.u32 %s24, 1
          %s327 = scalar_lea.sflag [#allocation10], %s326
          %s328 = sand.u32 %s83, 1
          %s329 = smul.addr %s328, 8
          %s330 = scalar_lea.vmem [#allocation9], %s329
          %332 = vsyncadd %s327, 0
          %s333 = sadd.s32 %s33, %s31
          %s334 = smul.addr %s333, 8
          %s335 = scalar_lea.hbm %s1, %s334
          %s337 = sshll.u32 %s335, 4
          %s338 = int_to_ptr.hbm [resolvable:$true] %s337
          %s339 = sshll.u32 %s330, 4
          %s340 = int_to_ptr.vmem [resolvable:$true] %s339
          %342 = dma.hbm_to_vmem [thread:$0]  %s338, 128, %s340, %s327
        $region40: #{tpu_custom_call.1} parent=31 // pred_fallthru
          _
        // Predicated region
        $region41: #{tpu_custom_call.1} parent=31 // pred_check
          %p343 = pneg %p121
        $region42: #{tpu_custom_call.1} parent=31 // pred_check_branch
          %345 = sbr.rel (%p343) target = $region44
        $region43: #{tpu_custom_call.1} parent=31 // pred_region
          %s346 = sand.u32 %s24, 1
          %s347 = scalar_lea.sflag [#allocation10], %s346
          %s348 = sand.u32 %s111, 1
          %s349 = scalar_lea.vmem [#allocation11], %s348
          %351 = vsyncadd %s347, 0
          %s352 = sadd.s32 %s33, %s31
          %s353 = scalar_lea.hbm %s2, %s352
          %s355 = sshll.u32 %s353, 4
          %s356 = int_to_ptr.hbm [resolvable:$true] %s355
          %s357 = sshll.u32 %s349, 4
          %s358 = int_to_ptr.vmem [resolvable:$true] %s357
          %360 = dma.hbm_to_vmem [thread:$0]  %s356, 16, %s358, %s347
        $region44: #{tpu_custom_call.1} parent=31 // pred_fallthru
          _
      $region32: #{tpu_custom_call.1} parent=5 // pred_fallthru
        _
      %p361 = scmp.le.s32.totalorder 1, %s24
      %p362 = scmp.lt.s32.totalorder %s24, 3
      %p363 = pnand %p361, %p362
      %p364 = pneg %p363
      // Predicated region
      $region45: #{tpu_custom_call.1} parent=5 // pred_check
        _
      $region46: #{tpu_custom_call.1} parent=5 // pred_check_branch
        %366 = sbr.rel (%p363) target = $region48
      $region47: #{tpu_custom_call.1} parent=5 // pred_region
        %s367 = ssub.s32 %s24, 1
        %s368 = sand.u32 %s58, 1
        %s369 = scalar_lea.sflag [#allocation7], %s368
        %s370 = sand.u32 %s58, 1
        %s371 = smul.addr %s370, 8
        %s372 = scalar_lea.vmem [#allocation6], %s371
        // Predicated region
        $region49: #{tpu_custom_call.1} parent=47 // pred_check
          %p373 = pneg %p71
        $region50: #{tpu_custom_call.1} parent=47 // pred_check_branch
          %375 = sbr.rel (%p373) target = $region52
        $region51: #{tpu_custom_call.1} parent=47 // pred_region
          %377 = dma.done %s369, 128
        $region52: #{tpu_custom_call.1} parent=47 // pred_fallthru
          _
        %s378 = sand.u32 %s29, 1
        %s379 = scalar_lea.sflag [#allocation10], %s378
        %s380 = sand.u32 %s86, 1
        %s381 = smul.addr %s380, 8
        %s382 = scalar_lea.vmem [#allocation9], %s381
        // Predicated region
        $region53: #{tpu_custom_call.1} parent=47 // pred_check
          %p383 = pneg %p99
        $region54: #{tpu_custom_call.1} parent=47 // pred_check_branch
          %385 = sbr.rel (%p383) target = $region56
        $region55: #{tpu_custom_call.1} parent=47 // pred_region
          %387 = dma.done %s379, 128
        $region56: #{tpu_custom_call.1} parent=47 // pred_fallthru
          _
        %s388 = sand.u32 %s29, 1
        %s389 = scalar_lea.sflag [#allocation10], %s388
        %s390 = sand.u32 %s114, 1
        %s391 = scalar_lea.vmem [#allocation11], %s390
        // Predicated region
        $region57: #{tpu_custom_call.1} parent=47 // pred_check
          %p392 = pneg %p127
        $region58: #{tpu_custom_call.1} parent=47 // pred_check_branch
          %394 = sbr.rel (%p392) target = $region60
        $region59: #{tpu_custom_call.1} parent=47 // pred_region
          %396 = dma.done %s389, 16
        $region60: #{tpu_custom_call.1} parent=47 // pred_fallthru
          _
        // Predicated region
        $region61: #{tpu_custom_call.1} parent=47 // pred_check
          %p397 = pneg %p148
        $region62: #{tpu_custom_call.1} parent=47 // pred_check_branch
          %399 = sbr.rel (%p397) target = $region64
        $region63: #{tpu_custom_call.1} parent=47 // pred_region
          %401 = dma.done [#allocation13], 256
        $region64: #{tpu_custom_call.1} parent=47 // pred_fallthru
          _
        // Predicated region
        $region65: #{tpu_custom_call.1} parent=47 // pred_check
          %p402 = pneg %p169
        $region66: #{tpu_custom_call.1} parent=47 // pred_check_branch
          %404 = sbr.rel (%p402) target = $region68
        $region67: #{tpu_custom_call.1} parent=47 // pred_region
          %406 = dma.done [#allocation13], 256
        $region68: #{tpu_custom_call.1} parent=47 // pred_fallthru
          _
        // Predicated region
        $region69: #{tpu_custom_call.1} parent=47 // pred_check
          %p407 = pneg %p190
        $region70: #{tpu_custom_call.1} parent=47 // pred_check_branch
          %409 = sbr.rel (%p407) target = $region72
        $region71: #{tpu_custom_call.1} parent=47 // pred_region
          %411 = dma.done [#allocation16], 256
        $region72: #{tpu_custom_call.1} parent=47 // pred_fallthru
          _
        %s412 = sand.u32 %s58, 1
        %s413 = scalar_lea.sflag [#allocation7], %s412
        %s414 = sand.u32 %s58, 1
        %s415 = smul.addr %s414, 8
        %s416 = scalar_lea.vmem [#allocation6], %s415
        %p417 = pneg %p71
        %p418 = pneg %p68
        %s419 = sand.u32 %s29, 1
        %s420 = scalar_lea.sflag [#allocation10], %s419
        %s421 = sand.u32 %s86, 1
        %s422 = smul.addr %s421, 8
        %s423 = scalar_lea.vmem [#allocation9], %s422
        %p424 = pneg %p99
        %p425 = pneg %p96
        %s426 = sand.u32 %s29, 1
        %s427 = scalar_lea.sflag [#allocation10], %s426
        %s428 = sand.u32 %s114, 1
        %s429 = scalar_lea.vmem [#allocation11], %s428
        %p430 = pneg %p127
        %p431 = pneg %p124
        %p432 = pneg %p148
        %p433 = pneg %p145
        %p434 = pneg %p169
        %p435 = pneg %p166
        %p436 = pneg %p190
        %p437 = pneg %p187
        %p438 = pneg %p211
        %p439 = pneg %p208
        %p440 = pneg %p239
        %p441 = pneg %p236
        %s442 = sand.u32 %s226, 1
        %s443 = scalar_lea.sflag [#allocation8], %s442
        %s444 = sand.u32 %s226, 1
        %s445 = smul.addr %s444, 8
        %s446 = scalar_lea.vmem [#allocation17], %s445
        %p448 = scmp.eq.s32.totalorder %s36, 0
        // Predicated region
        $region73: #{tpu_custom_call.1} parent=47 // pred_check
          %p449 = pneg %p448
        $region74: #{tpu_custom_call.1} parent=47 // pred_check_branch
          %451 = sbr.rel (%p449) target = $region76
        $region75: #{tpu_custom_call.1} parent=47 // pred_region
          %v452 = vld [vmem:[%s372] sm:$0xff]
          %v453 = vpack.c.bf16 %v452, %v452
          %v454 = vld [vmem:[#allocation12] sm:$0xf]
          %v455 = vld [vmem:[#allocation12 + $0x4] sm:$0xf]
          %v456 = vld [vmem:[#allocation12 + $0x8] sm:$0xf]
          %v457 = vld [vmem:[#allocation12 + $0xc] sm:$0xf]
          %v462 = vunpack.c.l.b16 %v454
          %v463 = vunpack.c.l.b16 %v455
          %v464 = vunpack.c.l.b16 %v456
          %v465 = vunpack.c.l.b16 %v457
          %v466 = vpack.c.b16 %v463, %v462
          %v467 = vpack.c.b16 %v465, %v464
          %vm470 = vcmask 261120
          %v472 = vsel %vm470, %v453, 0
          %474 = vmatpush.bf16.msra.mxu0 0
          %475 = vmatpush.bf16.msra.mxu0 0
          %476 = vmatpush.bf16.msra.mxu0 0
          %477 = vmatpush.bf16.msra.mxu0 0
          %478 = vmatpush.bf16.msra.mxu0 0
          %479 = vmatpush.bf16.msra.mxu0 0
          %480 = vmatpush.bf16.msra.mxu0 %v467
          %481 = vmatpush.bf16.msra.mxu0 %v466
          %482 = vmatmul.bf16.gmra.mxu0 %v472
          %v483 = vpop.f32.mrf.mxu0
          %v484 = vadd.f32 0.0, %v483
          %v485 = vpop.f32.mrf.mxu0
          %486 = vdwg.mxu0
          %v487 = vpack.c.bf16 %v484, %v484
          %489 = vrot.lane.b32.xlu0 %v487, 120
          %v490 = vpop.permute.xlu0 %489
          %491 = vrot.lane.b32.xlu0 %v487, 112
          %v492 = vpop.permute.xlu0 %491
          %493 = vrot.lane.b32.xlu0 %v487, 104
          %v494 = vpop.permute.xlu0 %493
          %v497 = vpack.i.b16 %v490, %v487
          %v498 = vshrl.u32 %v487, 16
          %v499 = vshrl.u32 %v490, 16
          %v500 = vpack.i.b16 %v499, %v498
          %v503 = vpack.i.b16 %v494, %v492
          %v504 = vshrl.u32 %v492, 16
          %v505 = vshrl.u32 %v494, 16
          %v506 = vpack.i.b16 %v505, %v504
          %v509 = vunpack.c.l.s4 1983009808
          %v510 = vunpack.c.0.s8 %v509
          %v511 = vperm.slane %v497, %v510
          %v514 = vunpack.c.l.s4 1983009808
          %v515 = vunpack.c.0.s8 %v514
          %v516 = vperm.slane %v503, %v515
          %v517 = vrot.slane %v516, 4
          %vm518 = vcmask 1047556
          %v519 = vsel %vm518, %v517, %v511
          %v520 = vrot.slane %v511, 4
          %v521 = vsel %vm518, %v516, %v520
          %v523 = vunpack.c.l.s4 1934713408
          %v524 = vunpack.c.0.s8 %v523
          %v525 = vperm.slane %v519, %v524
          %v527 = vunpack.c.l.s4 1934713408
          %v528 = vunpack.c.0.s8 %v527
          %v529 = vperm.slane %v521, %v528
          %v530 = vrot.slane %v525, 4
          %v531 = vsel %vm518, 0, %v530
          %v532 = vrot.slane %v529, 4
          %v533 = vsel %vm518, 0, %v532
          %v536 = vunpack.c.l.s4 1983009808
          %v537 = vunpack.c.0.s8 %v536
          %v538 = vperm.slane %v500, %v537
          %v541 = vunpack.c.l.s4 1983009808
          %v542 = vunpack.c.0.s8 %v541
          %v543 = vperm.slane %v506, %v542
          %v544 = vrot.slane %v543, 4
          %v545 = vsel %vm518, %v544, %v538
          %v546 = vrot.slane %v538, 4
          %v547 = vsel %vm518, %v543, %v546
          %v549 = vunpack.c.l.s4 1934713408
          %v550 = vunpack.c.0.s8 %v549
          %v551 = vperm.slane %v545, %v550
          %v553 = vunpack.c.l.s4 1934713408
          %v554 = vunpack.c.0.s8 %v553
          %v555 = vperm.slane %v547, %v554
          %v556 = vrot.slane %v551, 4
          %v557 = vsel %vm518, 0, %v556
          %v558 = vrot.slane %v555, 4
          %v559 = vsel %vm518, 0, %v558
          %v560 = vsel %vm518, %v532, %v525
          %v562 = vunpack.c.l.s4 1983009808
          %v563 = vunpack.c.0.s8 %v562
          %v564 = vperm.slane %v560, %v563
          %v565 = vrot.slane %v533, 4
          %v566 = vsel %vm518, %v565, %v531
          %v568 = vunpack.c.l.s4 1983009808
          %v569 = vunpack.c.0.s8 %v568
          %v570 = vperm.slane %v566, %v569
          %v571 = vrot.slane %v570, 4
          %v572 = vsel %vm518, %v571, %v564
          %v574 = vunpack.c.l.s4 1934713408
          %v575 = vunpack.c.0.s8 %v574
          %v576 = vperm.slane %v572, %v575
          %v577 = vrot.slane %v576, 4
          %v578 = vsel %vm518, 0, %v577
          %v579 = vsel %vm518, %v558, %v551
          %v581 = vunpack.c.l.s4 1983009808
          %v582 = vunpack.c.0.s8 %v581
          %v583 = vperm.slane %v579, %v582
          %v584 = vrot.slane %v559, 4
          %v585 = vsel %vm518, %v584, %v557
          %v587 = vunpack.c.l.s4 1983009808
          %v588 = vunpack.c.0.s8 %v587
          %v589 = vperm.slane %v585, %v588
          %v590 = vrot.slane %v589, 4
          %v591 = vsel %vm518, %v590, %v583
          %v593 = vunpack.c.l.s4 1934713408
          %v594 = vunpack.c.0.s8 %v593
          %v595 = vperm.slane %v591, %v594
          %v596 = vrot.slane %v595, 4
          %v597 = vsel %vm518, 0, %v596
          %v600 = vpack.i.b16 %v595, %v576
          %v602 = vshrl.u32 %v576, 16
          %v603 = vshrl.u32 %v595, 16
          %v604 = vpack.i.b16 %v603, %v602
          %v608 = vpack.i.b16 %v597, %v578
          %v610 = vshrl.u32 %v578, 16
          %v611 = vshrl.u32 %v597, 16
          %v612 = vpack.i.b16 %v611, %v610
          %vm614 = vcmask 60416
          %615 = vst.msk [vmem:[#allocation2] sm:$0xf] %vm614, %v600
          %616 = vst.msk [vmem:[#allocation2 + $0x4] sm:$0xf] %vm614, %v604
          %617 = vst.msk [vmem:[#allocation2 + $0x8] sm:$0xf] %vm614, %v608
          %618 = vst.msk [vmem:[#allocation2 + $0xc] sm:$0xf] %vm614, %v612
          %vm619 = vcmask 7168
          %620 = vst.msk [vmem:[#allocation3] sm:$0xff] %vm619, -1e+30
          %621 = vst.msk [vmem:[#allocation3 + $0x8] sm:$0xff] %vm619, -1e+30
          %622 = vst.msk [vmem:[#allocation3 + $0x10] sm:$0xff] %vm619, -1e+30
          %623 = vst.msk [vmem:[#allocation3 + $0x18] sm:$0xff] %vm619, -1e+30
          %624 = vst.msk [vmem:[#allocation4] sm:$0xff] %vm619, 0.0
          %625 = vst.msk [vmem:[#allocation4 + $0x8] sm:$0xff] %vm619, 0.0
          %626 = vst.msk [vmem:[#allocation4 + $0x10] sm:$0xff] %vm619, 0.0
          %627 = vst.msk [vmem:[#allocation4 + $0x18] sm:$0xff] %vm619, 0.0
          %vm628 = vcmask 64512
          %629 = vst.msk [vmem:[#allocation5] sm:$0xff] %vm628, 0.0
          %630 = vst.msk [vmem:[#allocation5 + $0x8] sm:$0xff] %vm628, 0.0
          %631 = vst.msk [vmem:[#allocation5 + $0x10] sm:$0xff] %vm628, 0.0
          %632 = vst.msk [vmem:[#allocation5 + $0x18] sm:$0xff] %vm628, 0.0
        $region76: #{tpu_custom_call.1} parent=47 // pred_fallthru
          _
        %v633 = vld [vmem:[%s382] sm:$0xff]
        %v634 = vpack.c.bf16 %v633, %v633
        %v635 = vld [vmem:[#allocation14] sm:$0xf]
        %v636 = vld [vmem:[#allocation14 + $0x4] sm:$0xf]
        %v637 = vld [vmem:[#allocation14 + $0x8] sm:$0xf]
        %v638 = vld [vmem:[#allocation14 + $0xc] sm:$0xf]
        %v643 = vunpack.c.l.b16 %v635
        %v644 = vunpack.c.l.b16 %v636
        %v645 = vunpack.c.l.b16 %v637
        %v646 = vunpack.c.l.b16 %v638
        %v647 = vpack.c.b16 %v644, %v643
        %v648 = vpack.c.b16 %v646, %v645
        %vm651 = vcmask 261120
        %v653 = vsel %vm651, %v634, 0
        %655 = vmatpush.bf16.msra.mxu0 0
        %656 = vmatpush.bf16.msra.mxu0 0
        %657 = vmatpush.bf16.msra.mxu0 0
        %658 = vmatpush.bf16.msra.mxu0 0
        %659 = vmatpush.bf16.msra.mxu0 0
        %660 = vmatpush.bf16.msra.mxu0 0
        %661 = vmatpush.bf16.msra.mxu0 %v648
        %662 = vmatpush.bf16.msra.mxu0 %v647
        %663 = vmatmul.bf16.gmra.mxu0 %v653
        %v664 = vpop.f32.mrf.mxu0
        %v665 = vadd.f32 0.0, %v664
        %v666 = vpop.f32.mrf.mxu0
        %667 = vdwg.mxu0
        %v668 = vpack.c.bf16 %v665, %v665
        %670 = vrot.lane.b32.xlu0 %v668, 120
        %v671 = vpop.permute.xlu0 %670
        %672 = vrot.lane.b32.xlu0 %v668, 112
        %v673 = vpop.permute.xlu0 %672
        %674 = vrot.lane.b32.xlu0 %v668, 104
        %v675 = vpop.permute.xlu0 %674
        %v678 = vpack.i.b16 %v671, %v668
        %v679 = vshrl.u32 %v668, 16
        %v680 = vshrl.u32 %v671, 16
        %v681 = vpack.i.b16 %v680, %v679
        %v684 = vpack.i.b16 %v675, %v673
        %v685 = vshrl.u32 %v673, 16
        %v686 = vshrl.u32 %v675, 16
        %v687 = vpack.i.b16 %v686, %v685
        %v690 = vunpack.c.l.s4 1983009808
        %v691 = vunpack.c.0.s8 %v690
        %v692 = vperm.slane %v678, %v691
        %v695 = vunpack.c.l.s4 1983009808
        %v696 = vunpack.c.0.s8 %v695
        %v697 = vperm.slane %v684, %v696
        %v698 = vrot.slane %v697, 4
        %vm699 = vcmask 1047556
        %v700 = vsel %vm699, %v698, %v692
        %v701 = vrot.slane %v692, 4
        %v702 = vsel %vm699, %v697, %v701
        %v704 = vunpack.c.l.s4 1934713408
        %v705 = vunpack.c.0.s8 %v704
        %v706 = vperm.slane %v700, %v705
        %v708 = vunpack.c.l.s4 1934713408
        %v709 = vunpack.c.0.s8 %v708
        %v710 = vperm.slane %v702, %v709
        %v711 = vrot.slane %v706, 4
        %v712 = vsel %vm699, 0, %v711
        %v713 = vrot.slane %v710, 4
        %v714 = vsel %vm699, 0, %v713
        %v717 = vunpack.c.l.s4 1983009808
        %v718 = vunpack.c.0.s8 %v717
        %v719 = vperm.slane %v681, %v718
        %v722 = vunpack.c.l.s4 1983009808
        %v723 = vunpack.c.0.s8 %v722
        %v724 = vperm.slane %v687, %v723
        %v725 = vrot.slane %v724, 4
        %v726 = vsel %vm699, %v725, %v719
        %v727 = vrot.slane %v719, 4
        %v728 = vsel %vm699, %v724, %v727
        %v730 = vunpack.c.l.s4 1934713408
        %v731 = vunpack.c.0.s8 %v730
        %v732 = vperm.slane %v726, %v731
        %v734 = vunpack.c.l.s4 1934713408
        %v735 = vunpack.c.0.s8 %v734
        %v736 = vperm.slane %v728, %v735
        %v737 = vrot.slane %v732, 4
        %v738 = vsel %vm699, 0, %v737
        %v739 = vrot.slane %v736, 4
        %v740 = vsel %vm699, 0, %v739
        %v741 = vsel %vm699, %v713, %v706
        %v743 = vunpack.c.l.s4 1983009808
        %v744 = vunpack.c.0.s8 %v743
        %v745 = vperm.slane %v741, %v744
        %v746 = vrot.slane %v714, 4
        %v747 = vsel %vm699, %v746, %v712
        %v749 = vunpack.c.l.s4 1983009808
        %v750 = vunpack.c.0.s8 %v749
        %v751 = vperm.slane %v747, %v750
        %v752 = vrot.slane %v751, 4
        %v753 = vsel %vm699, %v752, %v745
        %v755 = vunpack.c.l.s4 1934713408
        %v756 = vunpack.c.0.s8 %v755
        %v757 = vperm.slane %v753, %v756
        %v758 = vrot.slane %v757, 4
        %v759 = vsel %vm699, 0, %v758
        %v760 = vsel %vm699, %v739, %v732
        %v762 = vunpack.c.l.s4 1983009808
        %v763 = vunpack.c.0.s8 %v762
        %v764 = vperm.slane %v760, %v763
        %v765 = vrot.slane %v740, 4
        %v766 = vsel %vm699, %v765, %v738
        %v768 = vunpack.c.l.s4 1983009808
        %v769 = vunpack.c.0.s8 %v768
        %v770 = vperm.slane %v766, %v769
        %v771 = vrot.slane %v770, 4
        %v772 = vsel %vm699, %v771, %v764
        %v774 = vunpack.c.l.s4 1934713408
        %v775 = vunpack.c.0.s8 %v774
        %v776 = vperm.slane %v772, %v775
        %v777 = vrot.slane %v776, 4
        %v778 = vsel %vm699, 0, %v777
        %v781 = vpack.i.b16 %v776, %v757
        %v782 = vshrl.u32 %v757, 16
        %v783 = vshrl.u32 %v776, 16
        %v784 = vpack.i.b16 %v783, %v782
        %v787 = vpack.i.b16 %v778, %v759
        %v788 = vshrl.u32 %v759, 16
        %v789 = vshrl.u32 %v778, 16
        %v790 = vpack.i.b16 %v789, %v788
        %791 = vrot.lane.b32.xlu0 %v668, 96
        %v792 = vpop.permute.xlu0 %791
        %793 = vrot.lane.b32.xlu0 %v671, 96
        %v794 = vpop.permute.xlu0 %793
        %795 = vrot.lane.b32.xlu0 %v673, 96
        %v796 = vpop.permute.xlu0 %795
        %797 = vrot.lane.b32.xlu0 %v675, 96
        %v798 = vpop.permute.xlu0 %797
        %v801 = vpack.i.b16 %v794, %v792
        %v802 = vshrl.u32 %v792, 16
        %v803 = vshrl.u32 %v794, 16
        %v804 = vpack.i.b16 %v803, %v802
        %v807 = vpack.i.b16 %v798, %v796
        %v808 = vshrl.u32 %v796, 16
        %v809 = vshrl.u32 %v798, 16
        %v810 = vpack.i.b16 %v809, %v808
        %v813 = vunpack.c.l.s4 1983009808
        %v814 = vunpack.c.0.s8 %v813
        %v815 = vperm.slane %v801, %v814
        %v818 = vunpack.c.l.s4 1983009808
        %v819 = vunpack.c.0.s8 %v818
        %v820 = vperm.slane %v807, %v819
        %v821 = vrot.slane %v820, 4
        %v822 = vsel %vm699, %v821, %v815
        %v823 = vrot.slane %v815, 4
        %v824 = vsel %vm699, %v820, %v823
        %v826 = vunpack.c.l.s4 1934713408
        %v827 = vunpack.c.0.s8 %v826
        %v828 = vperm.slane %v822, %v827
        %v830 = vunpack.c.l.s4 1934713408
        %v831 = vunpack.c.0.s8 %v830
        %v832 = vperm.slane %v824, %v831
        %v833 = vrot.slane %v828, 4
        %v834 = vsel %vm699, 0, %v833
        %v835 = vrot.slane %v832, 4
        %v836 = vsel %vm699, 0, %v835
        %v839 = vunpack.c.l.s4 1983009808
        %v840 = vunpack.c.0.s8 %v839
        %v841 = vperm.slane %v804, %v840
        %v844 = vunpack.c.l.s4 1983009808
        %v845 = vunpack.c.0.s8 %v844
        %v846 = vperm.slane %v810, %v845
        %v847 = vrot.slane %v846, 4
        %v848 = vsel %vm699, %v847, %v841
        %v849 = vrot.slane %v841, 4
        %v850 = vsel %vm699, %v846, %v849
        %v852 = vunpack.c.l.s4 1934713408
        %v853 = vunpack.c.0.s8 %v852
        %v854 = vperm.slane %v848, %v853
        %v856 = vunpack.c.l.s4 1934713408
        %v857 = vunpack.c.0.s8 %v856
        %v858 = vperm.slane %v850, %v857
        %v859 = vrot.slane %v854, 4
        %v860 = vsel %vm699, 0, %v859
        %v861 = vrot.slane %v858, 4
        %v862 = vsel %vm699, 0, %v861
        %v863 = vsel %vm699, %v835, %v828
        %v865 = vunpack.c.l.s4 1983009808
        %v866 = vunpack.c.0.s8 %v865
        %v867 = vperm.slane %v863, %v866
        %v868 = vrot.slane %v836, 4
        %v869 = vsel %vm699, %v868, %v834
        %v871 = vunpack.c.l.s4 1983009808
        %v872 = vunpack.c.0.s8 %v871
        %v873 = vperm.slane %v869, %v872
        %v874 = vrot.slane %v873, 4
        %v875 = vsel %vm699, %v874, %v867
        %v877 = vunpack.c.l.s4 1934713408
        %v878 = vunpack.c.0.s8 %v877
        %v879 = vperm.slane %v875, %v878
        %v880 = vrot.slane %v879, 4
        %v881 = vsel %vm699, 0, %v880
        %v882 = vsel %vm699, %v861, %v854
        %v884 = vunpack.c.l.s4 1983009808
        %v885 = vunpack.c.0.s8 %v884
        %v886 = vperm.slane %v882, %v885
        %v887 = vrot.slane %v862, 4
        %v888 = vsel %vm699, %v887, %v860
        %v890 = vunpack.c.l.s4 1983009808
        %v891 = vunpack.c.0.s8 %v890
        %v892 = vperm.slane %v888, %v891
        %v893 = vrot.slane %v892, 4
        %v894 = vsel %vm699, %v893, %v886
        %v896 = vunpack.c.l.s4 1934713408
        %v897 = vunpack.c.0.s8 %v896
        %v898 = vperm.slane %v894, %v897
        %v899 = vrot.slane %v898, 4
        %v900 = vsel %vm699, 0, %v899
        %v903 = vpack.i.b16 %v898, %v879
        %v904 = vshrl.u32 %v879, 16
        %v905 = vshrl.u32 %v898, 16
        %v906 = vpack.i.b16 %v905, %v904
        %v909 = vpack.i.b16 %v900, %v881
        %v910 = vshrl.u32 %v881, 16
        %v911 = vshrl.u32 %v900, 16
        %v912 = vpack.i.b16 %v911, %v910
        %v913 = vld [vmem:[#allocation2] sm:$0xf]
        %v914 = vld [vmem:[#allocation2 + $0x4] sm:$0xf]
        %v915 = vld [vmem:[#allocation2 + $0x8] sm:$0xf]
        %v916 = vld [vmem:[#allocation2 + $0xc] sm:$0xf]
        %vm917 = vcmask 64512
        %v919 = vsel %vm917, %v913, 0
        %v922 = vsel %vm917, %v781, 0
        %924 = vmatpush.bf16.xpose.msra.mxu0 0
        %925 = vmatpush.bf16.xpose.msra.mxu0 0
        %926 = vmatpush.bf16.xpose.msra.mxu0 0
        %927 = vmatpush.bf16.xpose.msra.mxu0 0
        %928 = vmatpush.bf16.xpose.msra.mxu0 0
        %929 = vmatpush.bf16.xpose.msra.mxu0 0
        %930 = vmatpush.bf16.xpose.msra.mxu0 0
        %931 = vmatpush.bf16.xpose.msra.mxu0 %v922
        %932 = vmatmul.bf16.gmra.mxu0 %v919
        %v933 = vpop.f32.mrf.mxu0
        %v934 = vadd.f32 0.0, %v933
        %v935 = vpop.f32.mrf.mxu0
        %936 = vdwg.mxu0
        %v938 = vsel %vm917, %v914, 0
        %v941 = vsel %vm917, %v784, 0
        %943 = vmatpush.bf16.xpose.msra.mxu0 0
        %944 = vmatpush.bf16.xpose.msra.mxu0 0
        %945 = vmatpush.bf16.xpose.msra.mxu0 0
        %946 = vmatpush.bf16.xpose.msra.mxu0 0
        %947 = vmatpush.bf16.xpose.msra.mxu0 0
        %948 = vmatpush.bf16.xpose.msra.mxu0 0
        %949 = vmatpush.bf16.xpose.msra.mxu0 0
        %950 = vmatpush.bf16.xpose.msra.mxu0 %v941
        %951 = vmatmul.bf16.gmra.mxu0 %v938
        %v952 = vpop.f32.mrf.mxu0
        %v953 = vadd.f32 0.0, %v952
        %v954 = vpop.f32.mrf.mxu0
        %955 = vdwg.mxu0
        %v957 = vsel %vm917, %v915, 0
        %v960 = vsel %vm917, %v787, 0
        %962 = vmatpush.bf16.xpose.msra.mxu0 0
        %963 = vmatpush.bf16.xpose.msra.mxu0 0
        %964 = vmatpush.bf16.xpose.msra.mxu0 0
        %965 = vmatpush.bf16.xpose.msra.mxu0 0
        %966 = vmatpush.bf16.xpose.msra.mxu0 0
        %967 = vmatpush.bf16.xpose.msra.mxu0 0
        %968 = vmatpush.bf16.xpose.msra.mxu0 0
        %969 = vmatpush.bf16.xpose.msra.mxu0 %v960
        %970 = vmatmul.bf16.gmra.mxu0 %v957
        %v971 = vpop.f32.mrf.mxu0
        %v972 = vadd.f32 0.0, %v971
        %v973 = vpop.f32.mrf.mxu0
        %974 = vdwg.mxu0
        %v976 = vsel %vm917, %v916, 0
        %v979 = vsel %vm917, %v790, 0
        %981 = vmatpush.bf16.xpose.msra.mxu0 0
        %982 = vmatpush.bf16.xpose.msra.mxu0 0
        %983 = vmatpush.bf16.xpose.msra.mxu0 0
        %984 = vmatpush.bf16.xpose.msra.mxu0 0
        %985 = vmatpush.bf16.xpose.msra.mxu0 0
        %986 = vmatpush.bf16.xpose.msra.mxu0 0
        %987 = vmatpush.bf16.xpose.msra.mxu0 0
        %988 = vmatpush.bf16.xpose.msra.mxu0 %v979
        %989 = vmatmul.bf16.gmra.mxu0 %v976
        %v990 = vpop.f32.mrf.mxu0
        %v991 = vadd.f32 0.0, %v990
        %v992 = vpop.f32.mrf.mxu0
        %993 = vdwg.mxu0
        %v994 = vld [vmem:[%s391] sm:$0x1]
        %v995 = vld [vmem:[#allocation3] sm:$0xff]
        %v996 = vld [vmem:[#allocation3 + $0x8] sm:$0xff]
        %v997 = vld [vmem:[#allocation3 + $0x10] sm:$0xff]
        %v998 = vld [vmem:[#allocation3 + $0x18] sm:$0xff]
        %v999 = vsel %vm917, %v934, -inf
        %1000 = vmax.xlane.f32.xlu0 %v999
        %v1001 = vpop.xlane.xlu0 %1000
        %v1002 = vsel %vm917, %v953, -inf
        %1003 = vmax.xlane.f32.xlu0 %v1002
        %v1004 = vpop.xlane.xlu0 %1003
        %v1005 = vsel %vm917, %v972, -inf
        %1006 = vmax.xlane.f32.xlu0 %v1005
        %v1007 = vpop.xlane.xlu0 %1006
        %v1008 = vsel %vm917, %v991, -inf
        %1009 = vmax.xlane.f32.xlu0 %v1008
        %v1010 = vpop.xlane.xlu0 %1009
        %v1011 = vmax.f32 %v995, %v1001
        %v1012 = vmax.f32 %v996, %v1004
        %v1013 = vmax.f32 %v997, %v1007
        %v1014 = vmax.f32 %v998, %v1010
        %v1015 = vsub.f32 %v995, %v1011
        %v1016 = vsub.f32 %v996, %v1012
        %v1017 = vsub.f32 %v997, %v1013
        %v1018 = vsub.f32 %v998, %v1014
        %v1019 = vmul.f32 %v1015, 1.442695
        %v1020 = vpow.pop %v1019
        %v1021 = vmul.f32 %v1016, 1.442695
        %v1022 = vpow.pop %v1021
        %v1023 = vmul.f32 %v1017, 1.442695
        %v1024 = vpow.pop %v1023
        %v1025 = vmul.f32 %v1018, 1.442695
        %v1026 = vpow.pop %v1025
        %1028 = vset.pattern.permute.xlu0 0
        %1029 = vperm.xlu0 %1028, %v1011
        %v1030 = vpop.permute.xlu0 %1029
        %1033 = vset.pattern.permute.xlu0 0
        %1034 = vperm.xlu0 %1033, %v1012
        %v1035 = vpop.permute.xlu0 %1034
        %1038 = vset.pattern.permute.xlu0 0
        %1039 = vperm.xlu0 %1038, %v1013
        %v1040 = vpop.permute.xlu0 %1039
        %1043 = vset.pattern.permute.xlu0 0
        %1044 = vperm.xlu0 %1043, %v1014
        %v1045 = vpop.permute.xlu0 %1044
        %v1047 = vsub.f32 %v934, %v1030
        %v1048 = vsub.f32 %v953, %v1035
        %v1049 = vsub.f32 %v972, %v1040
        %v1050 = vsub.f32 %v991, %v1045
        %v1051 = vmul.f32 %v1047, 1.442695
        %v1052 = vpow.pop %v1051
        %v1053 = vmul.f32 %v1048, 1.442695
        %v1054 = vpow.pop %v1053
        %v1055 = vmul.f32 %v1049, 1.442695
        %v1056 = vpow.pop %v1055
        %v1057 = vmul.f32 %v1050, 1.442695
        %v1058 = vpow.pop %v1057
        %v1060 = vperm.slane %v994, 0
        %v1062 = vmul.f32 %v1052, %v1060
        %v1063 = vmul.f32 %v1054, %v1060
        %v1064 = vmul.f32 %v1056, %v1060
        %v1065 = vmul.f32 %v1058, %v1060
        %v1066 = vld [vmem:[#allocation4] sm:$0xff]
        %v1067 = vld [vmem:[#allocation4 + $0x8] sm:$0xff]
        %v1068 = vld [vmem:[#allocation4 + $0x10] sm:$0xff]
        %v1069 = vld [vmem:[#allocation4 + $0x18] sm:$0xff]
        %v1070 = vmul.f32 %v1020, %v1066
        %v1071 = vmul.f32 %v1022, %v1067
        %v1072 = vmul.f32 %v1024, %v1068
        %v1073 = vmul.f32 %v1026, %v1069
        %v1074 = vsel %vm917, %v1062, 0.0
        %1075 = vadd.xlane.f32.xlu0 %v1074
        %v1076 = vpop.xlane.xlu0 %1075
        %v1077 = vsel %vm917, %v1063, 0.0
        %1078 = vadd.xlane.f32.xlu0 %v1077
        %v1079 = vpop.xlane.xlu0 %1078
        %v1080 = vsel %vm917, %v1064, 0.0
        %1081 = vadd.xlane.f32.xlu0 %v1080
        %v1082 = vpop.xlane.xlu0 %1081
        %v1083 = vsel %vm917, %v1065, 0.0
        %1084 = vadd.xlane.f32.xlu0 %v1083
        %v1085 = vpop.xlane.xlu0 %1084
        %v1086 = vadd.f32 %v1070, %v1076
        %v1087 = vadd.f32 %v1071, %v1079
        %v1088 = vadd.f32 %v1072, %v1082
        %v1089 = vadd.f32 %v1073, %v1085
        %vm1090 = vcmask 7168
        %1091 = vst.msk [vmem:[#allocation4] sm:$0xff] %vm1090, %v1086
        %1092 = vst.msk [vmem:[#allocation4 + $0x8] sm:$0xff] %vm1090, %v1087
        %1093 = vst.msk [vmem:[#allocation4 + $0x10] sm:$0xff] %vm1090, %v1088
        %1094 = vst.msk [vmem:[#allocation4 + $0x18] sm:$0xff] %vm1090, %v1089
        %v1095 = vld [vmem:[#allocation5] sm:$0xff]
        %v1096 = vld [vmem:[#allocation5 + $0x8] sm:$0xff]
        %v1097 = vld [vmem:[#allocation5 + $0x10] sm:$0xff]
        %v1098 = vld [vmem:[#allocation5 + $0x18] sm:$0xff]
        %1100 = vset.pattern.permute.xlu0 0
        %1101 = vperm.xlu0 %1100, %v1020
        %v1102 = vpop.permute.xlu0 %1101
        %1105 = vset.pattern.permute.xlu0 0
        %1106 = vperm.xlu0 %1105, %v1022
        %v1107 = vpop.permute.xlu0 %1106
        %1110 = vset.pattern.permute.xlu0 0
        %1111 = vperm.xlu0 %1110, %v1024
        %v1112 = vpop.permute.xlu0 %1111
        %1115 = vset.pattern.permute.xlu0 0
        %1116 = vperm.xlu0 %1115, %v1026
        %v1117 = vpop.permute.xlu0 %1116
        %v1119 = vmul.f32 %v1102, %v1095
        %v1120 = vmul.f32 %v1107, %v1096
        %v1121 = vmul.f32 %v1112, %v1097
        %v1122 = vmul.f32 %v1117, %v1098
        %v1123 = vpack.c.bf16 %v1062, %v1062
        %v1124 = vpack.c.bf16 %v1063, %v1063
        %v1125 = vpack.c.bf16 %v1064, %v1064
        %v1126 = vpack.c.bf16 %v1065, %v1065
        %v1128 = vsel %vm917, %v1123, 0
        %vm1130 = vcmask 1043456
        %v1132 = vsel %vm1130, %v903, 0
        %1134 = vmatpush.bf16.msra.mxu0 0
        %1135 = vmatpush.bf16.msra.mxu0 0
        %1136 = vmatpush.bf16.msra.mxu0 0
        %1137 = vmatpush.bf16.msra.mxu0 0
        %1138 = vmatpush.bf16.msra.mxu0 0
        %1139 = vmatpush.bf16.msra.mxu0 0
        %1140 = vmatpush.bf16.msra.mxu0 0
        %1141 = vmatpush.bf16.msra.mxu0 %v1132
        %1142 = vmatmul.bf16.gmra.mxu0 %v1128
        %v1143 = vpop.f32.mrf.mxu0
        %v1144 = vadd.f32 0.0, %v1143
        %v1145 = vpop.f32.mrf.mxu0
        %1146 = vdwg.mxu0
        %v1148 = vsel %vm917, %v1124, 0
        %v1151 = vsel %vm1130, %v906, 0
        %1153 = vmatpush.bf16.msra.mxu0 0
        %1154 = vmatpush.bf16.msra.mxu0 0
        %1155 = vmatpush.bf16.msra.mxu0 0
        %1156 = vmatpush.bf16.msra.mxu0 0
        %1157 = vmatpush.bf16.msra.mxu0 0
        %1158 = vmatpush.bf16.msra.mxu0 0
        %1159 = vmatpush.bf16.msra.mxu0 0
        %1160 = vmatpush.bf16.msra.mxu0 %v1151
        %1161 = vmatmul.bf16.gmra.mxu0 %v1148
        %v1162 = vpop.f32.mrf.mxu0
        %v1163 = vadd.f32 0.0, %v1162
        %v1164 = vpop.f32.mrf.mxu0
        %1165 = vdwg.mxu0
        %v1167 = vsel %vm917, %v1125, 0
        %v1170 = vsel %vm1130, %v909, 0
        %1172 = vmatpush.bf16.msra.mxu0 0
        %1173 = vmatpush.bf16.msra.mxu0 0
        %1174 = vmatpush.bf16.msra.mxu0 0
        %1175 = vmatpush.bf16.msra.mxu0 0
        %1176 = vmatpush.bf16.msra.mxu0 0
        %1177 = vmatpush.bf16.msra.mxu0 0
        %1178 = vmatpush.bf16.msra.mxu0 0
        %1179 = vmatpush.bf16.msra.mxu0 %v1170
        %1180 = vmatmul.bf16.gmra.mxu0 %v1167
        %v1181 = vpop.f32.mrf.mxu0
        %v1182 = vadd.f32 0.0, %v1181
        %v1183 = vpop.f32.mrf.mxu0
        %1184 = vdwg.mxu0
        %v1186 = vsel %vm917, %v1126, 0
        %v1189 = vsel %vm1130, %v912, 0
        %1191 = vmatpush.bf16.msra.mxu0 0
        %1192 = vmatpush.bf16.msra.mxu0 0
        %1193 = vmatpush.bf16.msra.mxu0 0
        %1194 = vmatpush.bf16.msra.mxu0 0
        %1195 = vmatpush.bf16.msra.mxu0 0
        %1196 = vmatpush.bf16.msra.mxu0 0
        %1197 = vmatpush.bf16.msra.mxu0 0
        %1198 = vmatpush.bf16.msra.mxu0 %v1189
        %1199 = vmatmul.bf16.gmra.mxu0 %v1186
        %v1200 = vpop.f32.mrf.mxu0
        %v1201 = vadd.f32 0.0, %v1200
        %v1202 = vpop.f32.mrf.mxu0
        %1203 = vdwg.mxu0
        %v1204 = vadd.f32 %v1119, %v1144
        %v1205 = vadd.f32 %v1120, %v1163
        %v1206 = vadd.f32 %v1121, %v1182
        %v1207 = vadd.f32 %v1122, %v1201
        %1208 = vst.msk [vmem:[#allocation5] sm:$0xff] %vm917, %v1204
        %1209 = vst.msk [vmem:[#allocation5 + $0x8] sm:$0xff] %vm917, %v1205
        %1210 = vst.msk [vmem:[#allocation5 + $0x10] sm:$0xff] %vm917, %v1206
        %1211 = vst.msk [vmem:[#allocation5 + $0x18] sm:$0xff] %vm917, %v1207
        %1212 = vst.msk [vmem:[#allocation3] sm:$0xff] %vm1090, %v1011
        %1213 = vst.msk [vmem:[#allocation3 + $0x8] sm:$0xff] %vm1090, %v1012
        %1214 = vst.msk [vmem:[#allocation3 + $0x10] sm:$0xff] %vm1090, %v1013
        %1215 = vst.msk [vmem:[#allocation3 + $0x18] sm:$0xff] %vm1090, %v1014
        // Predicated region
        $region77: #{tpu_custom_call.1} parent=47 // pred_check
          %p1216 = pneg %p448
        $region78: #{tpu_custom_call.1} parent=47 // pred_check_branch
          %1218 = sbr.rel (%p1216) target = $region80
        $region79: #{tpu_custom_call.1} parent=47 // pred_region
          %v1219 = vld [vmem:[#allocation5] sm:$0xff]
          %v1220 = vld [vmem:[#allocation5 + $0x8] sm:$0xff]
          %v1221 = vld [vmem:[#allocation5 + $0x10] sm:$0xff]
          %v1222 = vld [vmem:[#allocation5 + $0x18] sm:$0xff]
          %v1223 = vld [vmem:[#allocation4] sm:$0xff]
          %v1224 = vld [vmem:[#allocation4 + $0x8] sm:$0xff]
          %v1225 = vld [vmem:[#allocation4 + $0x10] sm:$0xff]
          %v1226 = vld [vmem:[#allocation4 + $0x18] sm:$0xff]
          %v1227 = vrcp.pop %v1223
          %v1228 = vrcp.pop %v1224
          %v1229 = vrcp.pop %v1225
          %v1230 = vrcp.pop %v1226
          %1232 = vset.pattern.permute.xlu0 0
          %1233 = vperm.xlu0 %1232, %v1227
          %v1234 = vpop.permute.xlu0 %1233
          %1237 = vset.pattern.permute.xlu0 0
          %1238 = vperm.xlu0 %1237, %v1228
          %v1239 = vpop.permute.xlu0 %1238
          %1242 = vset.pattern.permute.xlu0 0
          %1243 = vperm.xlu0 %1242, %v1229
          %v1244 = vpop.permute.xlu0 %1243
          %1247 = vset.pattern.permute.xlu0 0
          %1248 = vperm.xlu0 %1247, %v1230
          %v1249 = vpop.permute.xlu0 %1248
          %v1251 = vmul.f32 %v1219, %v1234
          %v1252 = vmul.f32 %v1220, %v1239
          %v1253 = vmul.f32 %v1221, %v1244
          %v1254 = vmul.f32 %v1222, %v1249
          %v1255 = vpack.c.bf16 %v1251, %v1251
          %v1256 = vpack.c.bf16 %v1252, %v1252
          %v1257 = vpack.c.bf16 %v1253, %v1253
          %v1258 = vpack.c.bf16 %v1254, %v1254
          %v1261 = vpack.i.b16 %v1256, %v1255
          %v1262 = vshrl.u32 %v1255, 16
          %v1263 = vshrl.u32 %v1256, 16
          %v1264 = vpack.i.b16 %v1263, %v1262
          %v1267 = vpack.i.b16 %v1258, %v1257
          %v1268 = vshrl.u32 %v1257, 16
          %v1269 = vshrl.u32 %v1258, 16
          %v1270 = vpack.i.b16 %v1269, %v1268
          %v1273 = vunpack.c.l.s4 1983009808
          %v1274 = vunpack.c.0.s8 %v1273
          %v1275 = vperm.slane %v1261, %v1274
          %v1278 = vunpack.c.l.s4 1983009808
          %v1279 = vunpack.c.0.s8 %v1278
          %v1280 = vperm.slane %v1267, %v1279
          %v1281 = vrot.slane %v1280, 4
          %v1282 = vsel %vm699, %v1281, %v1275
          %v1283 = vrot.slane %v1275, 4
          %v1284 = vsel %vm699, %v1280, %v1283
          %v1286 = vunpack.c.l.s4 1934713408
          %v1287 = vunpack.c.0.s8 %v1286
          %v1288 = vperm.slane %v1282, %v1287
          %v1290 = vunpack.c.l.s4 1934713408
          %v1291 = vunpack.c.0.s8 %v1290
          %v1292 = vperm.slane %v1284, %v1291
          %v1293 = vrot.slane %v1288, 4
          %v1294 = vsel %vm699, 0, %v1293
          %v1295 = vrot.slane %v1292, 4
          %v1296 = vsel %vm699, 0, %v1295
          %v1299 = vunpack.c.l.s4 1983009808
          %v1300 = vunpack.c.0.s8 %v1299
          %v1301 = vperm.slane %v1264, %v1300
          %v1304 = vunpack.c.l.s4 1983009808
          %v1305 = vunpack.c.0.s8 %v1304
          %v1306 = vperm.slane %v1270, %v1305
          %v1307 = vrot.slane %v1306, 4
          %v1308 = vsel %vm699, %v1307, %v1301
          %v1309 = vrot.slane %v1301, 4
          %v1310 = vsel %vm699, %v1306, %v1309
          %v1312 = vunpack.c.l.s4 1934713408
          %v1313 = vunpack.c.0.s8 %v1312
          %v1314 = vperm.slane %v1308, %v1313
          %v1316 = vunpack.c.l.s4 1934713408
          %v1317 = vunpack.c.0.s8 %v1316
          %v1318 = vperm.slane %v1310, %v1317
          %v1319 = vrot.slane %v1314, 4
          %v1320 = vsel %vm699, 0, %v1319
          %v1321 = vrot.slane %v1318, 4
          %v1322 = vsel %vm699, 0, %v1321
          %v1323 = vsel %vm699, %v1295, %v1288
          %v1325 = vunpack.c.l.s4 1983009808
          %v1326 = vunpack.c.0.s8 %v1325
          %v1327 = vperm.slane %v1323, %v1326
          %v1328 = vrot.slane %v1296, 4
          %v1329 = vsel %vm699, %v1328, %v1294
          %v1331 = vunpack.c.l.s4 1983009808
          %v1332 = vunpack.c.0.s8 %v1331
          %v1333 = vperm.slane %v1329, %v1332
          %v1334 = vrot.slane %v1333, 4
          %v1335 = vsel %vm699, %v1334, %v1327
          %v1337 = vunpack.c.l.s4 1934713408
          %v1338 = vunpack.c.0.s8 %v1337
          %v1339 = vperm.slane %v1335, %v1338
          %v1340 = vrot.slane %v1339, 4
          %v1341 = vsel %vm699, 0, %v1340
          %v1342 = vsel %vm699, %v1321, %v1314
          %v1344 = vunpack.c.l.s4 1983009808
          %v1345 = vunpack.c.0.s8 %v1344
          %v1346 = vperm.slane %v1342, %v1345
          %v1347 = vrot.slane %v1322, 4
          %v1348 = vsel %vm699, %v1347, %v1320
          %v1350 = vunpack.c.l.s4 1983009808
          %v1351 = vunpack.c.0.s8 %v1350
          %v1352 = vperm.slane %v1348, %v1351
          %v1353 = vrot.slane %v1352, 4
          %v1354 = vsel %vm699, %v1353, %v1346
          %v1356 = vunpack.c.l.s4 1934713408
          %v1357 = vunpack.c.0.s8 %v1356
          %v1358 = vperm.slane %v1354, %v1357
          %v1359 = vrot.slane %v1358, 4
          %v1360 = vsel %vm699, 0, %v1359
          %v1363 = vpack.i.b16 %v1358, %v1339
          %v1364 = vshrl.u32 %v1339, 16
          %v1365 = vshrl.u32 %v1358, 16
          %v1366 = vpack.i.b16 %v1365, %v1364
          %v1369 = vpack.i.b16 %v1360, %v1341
          %v1370 = vshrl.u32 %v1341, 16
          %v1371 = vshrl.u32 %v1360, 16
          %v1372 = vpack.i.b16 %v1371, %v1370
          %v1373 = vunpack.c.l.b16 %v1366
          %v1374 = vpack.c.b16 %v1373, %v1373
          %1375 = vrot.lane.b32.xlu0 %v1374, 8
          %v1376 = vpop.permute.xlu0 %1375
          %v1377 = vunpack.c.l.b16 %v1369
          %v1378 = vpack.c.b16 %v1377, %v1377
          %1379 = vrot.lane.b32.xlu0 %v1378, 16
          %v1380 = vpop.permute.xlu0 %1379
          %v1381 = vunpack.c.l.b16 %v1372
          %v1382 = vpack.c.b16 %v1381, %v1381
          %1383 = vrot.lane.b32.xlu0 %v1382, 24
          %v1384 = vpop.permute.xlu0 %1383
          %v1387 = vsel %vm917, %v1363, %v1376
          %vm1388 = vcmask 130048
          %v1390 = vsel %vm1388, %v1387, %v1380
          %vm1391 = vcmask 195584
          %v1393 = vsel %vm1391, %v1390, %v1384
          %v1394 = vld [vmem:[#allocation15] sm:$0xf]
          %v1395 = vld [vmem:[#allocation15 + $0x4] sm:$0xf]
          %v1396 = vld [vmem:[#allocation15 + $0x8] sm:$0xf]
          %v1397 = vld [vmem:[#allocation15 + $0xc] sm:$0xf]
          %v1398 = vld [vmem:[%s6] sm:$0x1]
          %v1400 = vperm.slane %v1398, 0
          %v1406 = vunpack.c.l.b16 %v1394
          %v1407 = vunpack.c.l.b16 %v1395
          %v1408 = vunpack.c.l.b16 %v1396
          %v1409 = vunpack.c.l.b16 %v1397
          %v1410 = vpack.c.b16 %v1407, %v1406
          %v1411 = vpack.c.b16 %v1409, %v1408
          %v1414 = vsel %vm651, %v1393, 0
          %1416 = vmatpush.bf16.msra.mxu0 0
          %1417 = vmatpush.bf16.msra.mxu0 0
          %1418 = vmatpush.bf16.msra.mxu0 0
          %1419 = vmatpush.bf16.msra.mxu0 0
          %1420 = vmatpush.bf16.msra.mxu0 0
          %1421 = vmatpush.bf16.msra.mxu0 0
          %1422 = vmatpush.bf16.msra.mxu0 %v1411
          %1423 = vmatpush.bf16.msra.mxu0 %v1410
          %1424 = vmatmul.bf16.gmra.mxu0 %v1414
          %v1425 = vpop.f32.mrf.mxu0
          %v1426 = vadd.f32 %v1400, %v1425
          %v1427 = vpop.f32.mrf.mxu0
          %1428 = vdwg.mxu0
          %1429 = vst.msk [vmem:[%s446] sm:$0xff] %vm651, %v1426
        $region80: #{tpu_custom_call.1} parent=47 // pred_fallthru
          _
        %s1430 = sand.u32 %s226, 1
        %s1431 = scalar_lea.sflag [#allocation8], %s1430
        %s1432 = sand.u32 %s226, 1
        %s1433 = smul.addr %s1432, 8
        %s1434 = scalar_lea.vmem [#allocation17], %s1433
        // Predicated region
        $region81: #{tpu_custom_call.1} parent=47 // pred_check
          %p1435 = pneg %p236
        $region82: #{tpu_custom_call.1} parent=47 // pred_check_branch
          %1437 = sbr.rel (%p1435) target = $region84
        $region83: #{tpu_custom_call.1} parent=47 // pred_region
          %1439 = vsyncadd %s1431, 0
          %s1440 = sadd.s32 %s35, %s34
          %s1441 = smul.addr %s1440, 8
          %s1442 = scalar_lea.hbm %s7, %s1441
          %s1444 = sshll.u32 %s1434, 4
          %s1445 = int_to_ptr.vmem [resolvable:$true] %s1444
          %s1446 = sshll.u32 %s1442, 4
          %s1447 = int_to_ptr.hbm [resolvable:$true] %s1446
          %1449 = dma.vmem_to_hbm [thread:$0]  %s1445, 128, %s1447, %s1431
        $region84: #{tpu_custom_call.1} parent=47 // pred_fallthru
          _
      $region48: #{tpu_custom_call.1} parent=5 // pred_fallthru
        _
      %p1450 = scmp.le.s32.totalorder 2, %s24
      // Predicated region
      $region85: #{tpu_custom_call.1} parent=5 // pred_check
        %p1451 = pneg %p1450
      $region86: #{tpu_custom_call.1} parent=5 // pred_check_branch
        %1453 = sbr.rel (%p1451) target = $region88
      $region87: #{tpu_custom_call.1} parent=5 // pred_region
        %s1454 = ssub.s32 %s24, 2
        // Predicated region
        $region89: #{tpu_custom_call.1} parent=87 // pred_check
          %p1455 = pneg %p242
        $region90: #{tpu_custom_call.1} parent=87 // pred_check_branch
          %1457 = sbr.rel (%p1455) target = $region92
        $region91: #{tpu_custom_call.1} parent=87 // pred_region
          %s1458 = sand.u32 %s227, 1
          %s1459 = scalar_lea.sflag [#allocation8], %s1458
          %s1460 = sand.u32 %s227, 1
          %s1461 = smul.addr %s1460, 8
          %s1462 = scalar_lea.vmem [#allocation17], %s1461
          %1464 = dma.done %s1459, 128
        $region92: #{tpu_custom_call.1} parent=87 // pred_fallthru
          _
      $region88: #{tpu_custom_call.1} parent=5 // pred_fallthru
        _
    $region6: #{tpu_custom_call.1} parent=1 // loop_footer
      %s28 = sadd.s32 1, %s24
    $region7: #{tpu_custom_call.1} parent=1 // loop_footer_branch
      %23 = sbr.rel target = $region3
    $region8: #{tpu_custom_call.1} parent=1 // loop_exit
      _
    %1465 = vsyncpa [#allocation7], 1
    %s1466 = scalar_lea.sflag [#allocation7], 1
    %1467 = vsyncpa %s1466, 1
    %1468 = vsyncpa [#allocation10], 1
    %s1469 = scalar_lea.sflag [#allocation10], 1
    %1470 = vsyncpa %s1469, 1
    %1471 = vsyncpa [#allocation13], 1
    %1472 = vsyncpa [#allocation16], 1
    %1473 = vsyncpa [#allocation8], 1
    %s1474 = scalar_lea.sflag [#allocation8], 1
    %1475 = vsyncpa %s1474, 1

</llo_original>
